<compile_context>
chip_gen: v6e
topology: v6e:2x2x1
jax: 0.10.0
libtpu: 0.0.40
codegen_flags: <defaults>
</compile_context>

<pallas_src>
import functools

import jax
import jax.numpy as jnp
from jax.experimental import pallas as pl
from jax.experimental.pallas import tpu as pltpu

LN_EPS = 1e-5
LANE = 128


def _round_up(x, m):
    return (x + m - 1) // m * m


def _layernorm(x, g, b, d_real):
    """Single-pass LayerNorm over the last dim; statistics use the real width.

    Padded lanes of x are exactly zero, so sums over the padded width equal sums
    over the real width; padded gamma/beta are zero, so padded lanes stay zero.
    """
    inv_d = 1.0 / float(d_real)
    s = jnp.sum(x, axis=-1, keepdims=True)
    s2 = jnp.sum(x * x, axis=-1, keepdims=True)
    mu = s * inv_d
    var = jnp.maximum(s2 * inv_d - mu * mu, 0.0)
    return (x - mu) * jax.lax.rsqrt(var + LN_EPS) * g + b


def r_critic_kernel(d_obs, d_hid,
                    obs_ref, h_ref, m_ref,            # batch-tiled activations
                    fn_g, fn_b,                       # feature_norm (over obs_dim)
                    w1, b1, g1, be1,                  # MLP fc1: Linear+ReLU+LN
                    w2, b2, g2, be2,                  # MLP fc2: Linear+ReLU+LN
                    wi, bi, wh, bhn,                  # fused GRU gate weights/biases
                    gr, br,                           # LayerNorm after GRU
                    vw, vb,                           # v_out weight row + bias
                    val_ref, hout_ref):               # outputs
    Hp = hout_ref.shape[-1]

    # ---- MLPBase ----
    x = obs_ref[...]
    x = _layernorm(x, fn_g[...], fn_b[...], d_obs)

    w1v = w1[...]
    x = jnp.maximum(
        jnp.dot(x.astype(w1v.dtype), w1v, preferred_element_type=jnp.float32)
        + b1[...], 0.0)
    x = _layernorm(x, g1[...], be1[...], d_hid)

    w2v = w2[...]
    x = jnp.maximum(
        jnp.dot(x.astype(w2v.dtype), w2v, preferred_element_type=jnp.float32)
        + b2[...], 0.0)
    x = _layernorm(x, g2[...], be2[...], d_hid)

    # ---- RNNLayer: single-step GRU (recurrent_N = 1), hidden reset by masks ----
    h = h_ref[...] * m_ref[...]

    wiv = wi[...]
    whv = wh[...]
    # gi = x @ [Wir|Wiz|Win] + [bir+bhr | biz+bhz | bin]
    gi = jnp.dot(x.astype(wiv.dtype), wiv,
                 preferred_element_type=jnp.float32) + bi[...]
    # gh = h @ [Whr|Whz|Whn]   (bhn added to the n slice below, before the r*(.))
    gh = jnp.dot(h.astype(whv.dtype), whv,
                 preferred_element_type=jnp.float32)

    rz = jax.nn.sigmoid(gi[:, :2 * Hp] + gh[:, :2 * Hp])
    r = rz[:, :Hp]
    z = rz[:, Hp:]
    n = jnp.tanh(gi[:, 2 * Hp:] + r * (gh[:, 2 * Hp:] + bhn[...]))
    h_new = (1.0 - z) * n + z * h
    hout_ref[...] = h_new

    # LayerNorm after GRU, then value head (VPU multiply + lane reduction).
    y = _layernorm(h_new, gr[...], br[...], d_hid)
    val_ref[...] = jnp.sum(y * vw[...], axis=-1, keepdims=True) + vb[...]


def init_params(key, obs_dim, hidden):
    """Deterministic synthetic parameters, shapes mirroring the PyTorch module."""
    ks = jax.random.split(key, 12)

    def w(k, shape, scale=0.1):
        return (scale * jax.random.normal(k, shape)).astype(jnp.float32)

    ones = lambda n: jnp.ones((1, n), jnp.float32)
    zeros = lambda n: jnp.zeros((1, n), jnp.float32)

    return dict(
        # feature_norm over obs_dim
        fn_g=ones(obs_dim), fn_b=zeros(obs_dim),
        # MLP fc1
        w1=w(ks[0], (obs_dim, hidden)), b1=zeros(hidden),
        g1=ones(hidden), be1=zeros(hidden),
        # MLP fc2 (layer_N = 1)
        w2=w(ks[1], (hidden, hidden)), b2=zeros(hidden),
        g2=ones(hidden), be2=zeros(hidden),
        # GRU (recurrent_N = 1), per-gate weights stored (in, out)
        wir=w(ks[2], (hidden, hidden)), wiz=w(ks[3], (hidden, hidden)),
        win=w(ks[4], (hidden, hidden)),
        bir=zeros(hidden), biz=zeros(hidden), bin=zeros(hidden),
        whr=w(ks[5], (hidden, hidden)), whz=w(ks[6], (hidden, hidden)),
        whn=w(ks[7], (hidden, hidden)),
        bhr=zeros(hidden), bhz=zeros(hidden), bhn=zeros(hidden),
        # LayerNorm after GRU
        gr=ones(hidden), br=zeros(hidden),
        # v_out
        vw=w(ks[8], (hidden, 1)), vb=zeros(1),
    )


def prepare_params(p, mm_dtype=jnp.bfloat16):
    """Pad to lane-dense (multiples of 128), fuse GRU gates, cast matmul weights."""
    obs_dim, hidden = p["w1"].shape
    Dp = _round_up(obs_dim, LANE)
    Hp = _round_up(hidden, LANE)

    def pad_row(v, n):
        return jnp.pad(v, ((0, 0), (0, n - v.shape[1])))

    def pad_mat(w, r, c):
        return jnp.pad(w, ((0, r - w.shape[0]), (0, c - w.shape[1])))

    # Fused GRU gate weights: each gate padded to (Hp, Hp) so the column
    # offsets of r/z/n are lane-tile aligned, then concatenated -> (Hp, 3Hp).
    wi_cat = jnp.concatenate(
        [pad_mat(p["wir"], Hp, Hp), pad_mat(p["wiz"], Hp, Hp),
         pad_mat(p["win"], Hp, Hp)], axis=1)
    wh_cat = jnp.concatenate(
        [pad_mat(p["whr"], Hp, Hp), pad_mat(p["whz"], Hp, Hp),
         pad_mat(p["whn"], Hp, Hp)], axis=1)
    # r/z biases pre-summed (input + hidden); n biases kept separate.
    bi_all = jnp.concatenate(
        [pad_row(p["bir"] + p["bhr"], Hp), pad_row(p["biz"] + p["bhz"], Hp),
         pad_row(p["bin"], Hp)], axis=1)

    return dict(
        fn_g=pad_row(p["fn_g"], Dp), fn_b=pad_row(p["fn_b"], Dp),
        w1=pad_mat(p["w1"], Dp, Hp).astype(mm_dtype), b1=pad_row(p["b1"], Hp),
        g1=pad_row(p["g1"], Hp), be1=pad_row(p["be1"], Hp),
        w2=pad_mat(p["w2"], Hp, Hp).astype(mm_dtype), b2=pad_row(p["b2"], Hp),
        g2=pad_row(p["g2"], Hp), be2=pad_row(p["be2"], Hp),
        wi=wi_cat.astype(mm_dtype), bi=bi_all,
        wh=wh_cat.astype(mm_dtype), bhn=pad_row(p["bhn"], Hp),
        gr=pad_row(p["gr"], Hp), br=pad_row(p["br"], Hp),
        vw=pad_mat(p["vw"], Hp, 1).T,            # (1, Hp) row for VPU mul+reduce
        vb=p["vb"],                              # (1, 1)
        _dims=(obs_dim, hidden, Dp, Hp),
    )


_WEIGHT_ORDER = ("fn_g", "fn_b", "w1", "b1", "g1", "be1",
                 "w2", "b2", "g2", "be2", "wi", "bi", "wh", "bhn",
                 "gr", "br", "vw", "vb")


def r_critic_forward(prep, cent_obs, rnn_states, masks, tile_b=128):
    """cent_obs: (B, obs_dim), rnn_states: (B, 1, H), masks: (B, 1)."""
    obs_dim, hidden, Dp, Hp = prep["_dims"]
    B = cent_obs.shape[0]

    tile_b = min(tile_b, _round_up(B, 8))
    B_pad = _round_up(B, tile_b)
    nb = B_pad // tile_b

    # Zero-pad batch rows and feature lanes (padded lanes stay inert in-kernel).
    obs_p = jnp.zeros((B_pad, Dp), jnp.float32).at[:B, :obs_dim].set(cent_obs)
    h_p = jnp.zeros((B_pad, Hp), jnp.float32).at[:B, :hidden].set(
        rnn_states[:, 0, :])
    m_p = jnp.zeros((B_pad, 1), jnp.float32).at[:B, :].set(masks)

    weights = [prep[k] for k in _WEIGHT_ORDER]

    batch_spec = lambda feat: pl.BlockSpec((tile_b, feat), lambda i: (i, 0))
    const_spec = lambda shp: pl.BlockSpec(shp, lambda i: (0, 0))

    in_specs = ([batch_spec(Dp), batch_spec(Hp), batch_spec(1)]
                + [const_spec(w.shape) for w in weights])
    out_specs = (pl.BlockSpec((tile_b, 1), lambda i: (i, 0)),
                 pl.BlockSpec((tile_b, Hp), lambda i: (i, 0)))
    out_shape = (jax.ShapeDtypeStruct((B_pad, 1), jnp.float32),
                 jax.ShapeDtypeStruct((B_pad, Hp), jnp.float32))

    kernel = functools.partial(r_critic_kernel, obs_dim, hidden)

    values_p, h_new_p = pl.pallas_call(
        kernel,
        out_shape=out_shape,
        grid_spec=pltpu.PrefetchScalarGridSpec(
            num_scalar_prefetch=0,
            grid=(nb,),
            in_specs=in_specs,
            out_specs=out_specs),
        compiler_params=pltpu.CompilerParams(
            dimension_semantics=("parallel",)),
    )(obs_p, h_p, m_p, *weights)

    values = values_p[:B]
    h_new = h_new_p[:B, :hidden]
    return values, h_new[:, None, :]


def r_critic_reference(params, cent_obs, rnn_states, masks):
    """Plain-JAX f32 reference mirroring the PyTorch forward, for validation."""
    def ln(x, g, b):
        mu = x.mean(-1, keepdims=True)
        var = ((x - mu) ** 2).mean(-1, keepdims=True)
        return (x - mu) / jnp.sqrt(var + LN_EPS) * g + b

    x = ln(cent_obs, params["fn_g"], params["fn_b"])
    x = jnp.maximum(x @ params["w1"] + params["b1"], 0.0)
    x = ln(x, params["g1"], params["be1"])
    x = jnp.maximum(x @ params["w2"] + params["b2"], 0.0)
    x = ln(x, params["g2"], params["be2"])

    h = rnn_states[:, 0, :] * masks
    r = jax.nn.sigmoid(x @ params["wir"] + params["bir"]
                       + h @ params["whr"] + params["bhr"])
    z = jax.nn.sigmoid(x @ params["wiz"] + params["biz"]
                       + h @ params["whz"] + params["bhz"])
    n = jnp.tanh(x @ params["win"] + params["bin"]
                 + r * (h @ params["whn"] + params["bhn"]))
    h_new = (1.0 - z) * n + z * h

    y = ln(h_new, params["gr"], params["br"])
    values = y @ params["vw"] + params["vb"]
    return values, h_new[:, None, :]


if __name__ == "__main__":
    # RL critics are typically called on many env rows at once; use a batch
    # that exercises the batch grid (2 tiles of 128) while keeping feature
    # dims at realistic MAPPO sizes.
    B, OBS_DIM, HIDDEN = 256, 54, 64

    key = jax.random.PRNGKey(0)
    k_obs, k_h, k_p = jax.random.split(key, 3)

    cent_obs = jax.random.normal(k_obs, (B, OBS_DIM), jnp.float32)
    rnn_states = jax.random.normal(k_h, (B, 1, HIDDEN), jnp.float32)
    masks = (jnp.arange(B) % 7 != 0).astype(jnp.float32)[:, None]

    params = init_params(k_p, OBS_DIM, HIDDEN)
    prep = prepare_params(params)

    values, new_rnn_states = r_critic_forward(prep, cent_obs, rnn_states, masks)
    jax.block_until_ready((values, new_rnn_states))

    v_ref, h_ref = r_critic_reference(params, cent_obs, rnn_states, masks)
    assert values.shape == (B, 1) and new_rnn_states.shape == (B, 1, HIDDEN)
    # bf16 MXU operands (f32 accumulate) -> relaxed tolerance vs. f32 reference.
    assert jnp.allclose(values, v_ref, atol=5e-2, rtol=5e-2), \
        float(jnp.max(jnp.abs(values - v_ref)))
    assert jnp.allclose(new_rnn_states, h_ref, atol=5e-2, rtol=5e-2), \
        float(jnp.max(jnp.abs(new_rnn_states - h_ref)))

    print("KERNEL_OK")
</pallas_src>

<mosaic_0001>
module attributes {stable_mosaic.version = 11 : i64} {
  func.func @r_critic_kernel(%arg0: i32, %arg1: memref<128x128xf32, #tpu.memory_space<vmem>>, %arg2: memref<128x128xf32, #tpu.memory_space<vmem>>, %arg3: memref<128x1xf32, #tpu.memory_space<vmem>>, %arg4: memref<1x128xf32, #tpu.memory_space<vmem>>, %arg5: memref<1x128xf32, #tpu.memory_space<vmem>>, %arg6: memref<128x128xbf16, #tpu.memory_space<vmem>>, %arg7: memref<1x128xf32, #tpu.memory_space<vmem>>, %arg8: memref<1x128xf32, #tpu.memory_space<vmem>>, %arg9: memref<1x128xf32, #tpu.memory_space<vmem>>, %arg10: memref<128x128xbf16, #tpu.memory_space<vmem>>, %arg11: memref<1x128xf32, #tpu.memory_space<vmem>>, %arg12: memref<1x128xf32, #tpu.memory_space<vmem>>, %arg13: memref<1x128xf32, #tpu.memory_space<vmem>>, %arg14: memref<128x384xbf16, #tpu.memory_space<vmem>>, %arg15: memref<1x384xf32, #tpu.memory_space<vmem>>, %arg16: memref<128x384xbf16, #tpu.memory_space<vmem>>, %arg17: memref<1x128xf32, #tpu.memory_space<vmem>>, %arg18: memref<1x128xf32, #tpu.memory_space<vmem>>, %arg19: memref<1x128xf32, #tpu.memory_space<vmem>>, %arg20: memref<1x128xf32, #tpu.memory_space<vmem>>, %arg21: memref<1x1xf32, #tpu.memory_space<vmem>>, %arg22: memref<128x1xf32, #tpu.memory_space<vmem>>, %arg23: memref<128x128xf32, #tpu.memory_space<vmem>>) attributes {dimension_semantics = [#tpu.dimension_semantics<parallel>], iteration_bounds = array<i64: 2>, scalar_prefetch = 0 : i64, scratch_operands = 0 : i64, tpu.core_type = #tpu.core_type<tc>, window_params = [{transform_indices = @transform_0, window_bounds = array<i64: 128, 128>}, {transform_indices = @transform_1, window_bounds = array<i64: 128, 128>}, {transform_indices = @transform_2, window_bounds = array<i64: 128, 1>}, {pipeline_mode = #tpu.pipeline_mode<synchronous>, transform_indices = @transform_3, window_bounds = array<i64: 1, 128>}, {pipeline_mode = #tpu.pipeline_mode<synchronous>, transform_indices = @transform_4, window_bounds = array<i64: 1, 128>}, {pipeline_mode = #tpu.pipeline_mode<synchronous>, transform_indices = @transform_5, window_bounds = array<i64: 128, 128>}, {pipeline_mode = #tpu.pipeline_mode<synchronous>, transform_indices = @transform_6, window_bounds = array<i64: 1, 128>}, {pipeline_mode = #tpu.pipeline_mode<synchronous>, transform_indices = @transform_7, window_bounds = array<i64: 1, 128>}, {pipeline_mode = #tpu.pipeline_mode<synchronous>, transform_indices = @transform_8, window_bounds = array<i64: 1, 128>}, {pipeline_mode = #tpu.pipeline_mode<synchronous>, transform_indices = @transform_9, window_bounds = array<i64: 128, 128>}, {pipeline_mode = #tpu.pipeline_mode<synchronous>, transform_indices = @transform_10, window_bounds = array<i64: 1, 128>}, {pipeline_mode = #tpu.pipeline_mode<synchronous>, transform_indices = @transform_11, window_bounds = array<i64: 1, 128>}, {pipeline_mode = #tpu.pipeline_mode<synchronous>, transform_indices = @transform_12, window_bounds = array<i64: 1, 128>}, {pipeline_mode = #tpu.pipeline_mode<synchronous>, transform_indices = @transform_13, window_bounds = array<i64: 128, 384>}, {pipeline_mode = #tpu.pipeline_mode<synchronous>, transform_indices = @transform_14, window_bounds = array<i64: 1, 384>}, {pipeline_mode = #tpu.pipeline_mode<synchronous>, transform_indices = @transform_15, window_bounds = array<i64: 128, 384>}, {pipeline_mode = #tpu.pipeline_mode<synchronous>, transform_indices = @transform_16, window_bounds = array<i64: 1, 128>}, {pipeline_mode = #tpu.pipeline_mode<synchronous>, transform_indices = @transform_17, window_bounds = array<i64: 1, 128>}, {pipeline_mode = #tpu.pipeline_mode<synchronous>, transform_indices = @transform_18, window_bounds = array<i64: 1, 128>}, {pipeline_mode = #tpu.pipeline_mode<synchronous>, transform_indices = @transform_19, window_bounds = array<i64: 1, 128>}, {pipeline_mode = #tpu.pipeline_mode<synchronous>, transform_indices = @transform_20, window_bounds = array<i64: 1, 1>}, {transform_indices = @transform_21, window_bounds = array<i64: 128, 1>}, {transform_indices = @transform_22, window_bounds = array<i64: 128, 128>}]} {
    %c0 = arith.constant 0 : index
    %c0_0 = arith.constant 0 : index
    %0 = vector.load %arg1[%c0, %c0_0] : memref<128x128xf32, #tpu.memory_space<vmem>>, vector<128x128xf32>
    %c0_1 = arith.constant 0 : index
    %c0_2 = arith.constant 0 : index
    %1 = vector.load %arg4[%c0_1, %c0_2] : memref<1x128xf32, #tpu.memory_space<vmem>>, vector<1x128xf32>
    %c0_3 = arith.constant 0 : index
    %c0_4 = arith.constant 0 : index
    %2 = vector.load %arg5[%c0_3, %c0_4] : memref<1x128xf32, #tpu.memory_space<vmem>>, vector<1x128xf32>
    %cst = arith.constant dense<0.000000e+00> : vector<128xf32>
    %3 = vector.multi_reduction <add>, %0, %cst [1] : vector<128x128xf32> to vector<128xf32>
    %4 = vector.shape_cast %3 : vector<128xf32> to vector<128x1xf32>
    %5 = arith.mulf %0, %0 : vector<128x128xf32>
    %cst_5 = arith.constant dense<0.000000e+00> : vector<128xf32>
    %6 = vector.multi_reduction <add>, %5, %cst_5 [1] : vector<128x128xf32> to vector<128xf32>
    %7 = vector.shape_cast %6 : vector<128xf32> to vector<128x1xf32>
    %cst_6 = arith.constant 0.0185185187 : f32
    %8 = vector.broadcast %cst_6 : f32 to vector<128x1xf32>
    %9 = arith.mulf %4, %8 : vector<128x1xf32>
    %cst_7 = arith.constant 0.0185185187 : f32
    %10 = vector.broadcast %cst_7 : f32 to vector<128x1xf32>
    %11 = arith.mulf %7, %10 : vector<128x1xf32>
    %12 = arith.mulf %9, %9 : vector<128x1xf32>
    %13 = arith.subf %11, %12 : vector<128x1xf32>
    %cst_8 = arith.constant 0.000000e+00 : f32
    %14 = vector.broadcast %cst_8 : f32 to vector<128x1xf32>
    %15 = arith.maximumf %13, %14 : vector<128x1xf32>
    %16 = vector.broadcast %9 : vector<128x1xf32> to vector<128x128xf32>
    %17 = arith.subf %0, %16 : vector<128x128xf32>
    %cst_9 = arith.constant 9.99999974E-6 : f32
    %18 = vector.broadcast %cst_9 : f32 to vector<128x1xf32>
    %19 = arith.addf %15, %18 : vector<128x1xf32>
    %20 = math.rsqrt %19 : vector<128x1xf32>
    %21 = vector.broadcast %20 : vector<128x1xf32> to vector<128x128xf32>
    %22 = arith.mulf %17, %21 : vector<128x128xf32>
    %23 = vector.broadcast %1 : vector<1x128xf32> to vector<128x128xf32>
    %24 = arith.mulf %22, %23 : vector<128x128xf32>
    %25 = vector.broadcast %2 : vector<1x128xf32> to vector<128x128xf32>
    %26 = arith.addf %24, %25 : vector<128x128xf32>
    %c0_10 = arith.constant 0 : index
    %c0_11 = arith.constant 0 : index
    %27 = vector.load %arg6[%c0_10, %c0_11] : memref<128x128xbf16, #tpu.memory_space<vmem>>, vector<128x128xbf16>
    %28 = arith.truncf %26 : vector<128x128xf32> to vector<128x128xbf16>
    %cst_12 = arith.constant dense<0.000000e+00> : vector<128x128xf32>
    %29 = tpu.matmul %28, %27, %cst_12 {dimension_numbers = #tpu.dot_dimension_numbers<[1], [0], [0], [1], [0, 0, 1, 1], [], []>} : vector<128x128xbf16>, vector<128x128xbf16>, vector<128x128xf32> -> vector<128x128xf32>
    %c0_13 = arith.constant 0 : index
    %c0_14 = arith.constant 0 : index
    %30 = vector.load %arg7[%c0_13, %c0_14] : memref<1x128xf32, #tpu.memory_space<vmem>>, vector<1x128xf32>
    %31 = vector.broadcast %30 : vector<1x128xf32> to vector<128x128xf32>
    %32 = arith.addf %29, %31 : vector<128x128xf32>
    %cst_15 = arith.constant 0.000000e+00 : f32
    %33 = vector.broadcast %cst_15 : f32 to vector<128x128xf32>
    %34 = arith.maximumf %32, %33 : vector<128x128xf32>
    %c0_16 = arith.constant 0 : index
    %c0_17 = arith.constant 0 : index
    %35 = vector.load %arg8[%c0_16, %c0_17] : memref<1x128xf32, #tpu.memory_space<vmem>>, vector<1x128xf32>
    %c0_18 = arith.constant 0 : index
    %c0_19 = arith.constant 0 : index
    %36 = vector.load %arg9[%c0_18, %c0_19] : memref<1x128xf32, #tpu.memory_space<vmem>>, vector<1x128xf32>
    %cst_20 = arith.constant dense<0.000000e+00> : vector<128xf32>
    %37 = vector.multi_reduction <add>, %34, %cst_20 [1] : vector<128x128xf32> to vector<128xf32>
    %38 = vector.shape_cast %37 : vector<128xf32> to vector<128x1xf32>
    %39 = arith.mulf %34, %34 : vector<128x128xf32>
    %cst_21 = arith.constant dense<0.000000e+00> : vector<128xf32>
    %40 = vector.multi_reduction <add>, %39, %cst_21 [1] : vector<128x128xf32> to vector<128xf32>
    %41 = vector.shape_cast %40 : vector<128xf32> to vector<128x1xf32>
    %cst_22 = arith.constant 1.562500e-02 : f32
    %42 = vector.broadcast %cst_22 : f32 to vector<128x1xf32>
    %43 = arith.mulf %38, %42 : vector<128x1xf32>
    %cst_23 = arith.constant 1.562500e-02 : f32
    %44 = vector.broadcast %cst_23 : f32 to vector<128x1xf32>
    %45 = arith.mulf %41, %44 : vector<128x1xf32>
    %46 = arith.mulf %43, %43 : vector<128x1xf32>
    %47 = arith.subf %45, %46 : vector<128x1xf32>
    %cst_24 = arith.constant 0.000000e+00 : f32
    %48 = vector.broadcast %cst_24 : f32 to vector<128x1xf32>
    %49 = arith.maximumf %47, %48 : vector<128x1xf32>
    %50 = vector.broadcast %43 : vector<128x1xf32> to vector<128x128xf32>
    %51 = arith.subf %34, %50 : vector<128x128xf32>
    %cst_25 = arith.constant 9.99999974E-6 : f32
    %52 = vector.broadcast %cst_25 : f32 to vector<128x1xf32>
    %53 = arith.addf %49, %52 : vector<128x1xf32>
    %54 = math.rsqrt %53 : vector<128x1xf32>
    %55 = vector.broadcast %54 : vector<128x1xf32> to vector<128x128xf32>
    %56 = arith.mulf %51, %55 : vector<128x128xf32>
    %57 = vector.broadcast %35 : vector<1x128xf32> to vector<128x128xf32>
    %58 = arith.mulf %56, %57 : vector<128x128xf32>
    %59 = vector.broadcast %36 : vector<1x128xf32> to vector<128x128xf32>
    %60 = arith.addf %58, %59 : vector<128x128xf32>
    %c0_26 = arith.constant 0 : index
    %c0_27 = arith.constant 0 : index
    %61 = vector.load %arg10[%c0_26, %c0_27] : memref<128x128xbf16, #tpu.memory_space<vmem>>, vector<128x128xbf16>
    %62 = arith.truncf %60 : vector<128x128xf32> to vector<128x128xbf16>
    %cst_28 = arith.constant dense<0.000000e+00> : vector<128x128xf32>
    %63 = tpu.matmul %62, %61, %cst_28 {dimension_numbers = #tpu.dot_dimension_numbers<[1], [0], [0], [1], [0, 0, 1, 1], [], []>} : vector<128x128xbf16>, vector<128x128xbf16>, vector<128x128xf32> -> vector<128x128xf32>
    %c0_29 = arith.constant 0 : index
    %c0_30 = arith.constant 0 : index
    %64 = vector.load %arg11[%c0_29, %c0_30] : memref<1x128xf32, #tpu.memory_space<vmem>>, vector<1x128xf32>
    %65 = vector.broadcast %64 : vector<1x128xf32> to vector<128x128xf32>
    %66 = arith.addf %63, %65 : vector<128x128xf32>
    %cst_31 = arith.constant 0.000000e+00 : f32
    %67 = vector.broadcast %cst_31 : f32 to vector<128x128xf32>
    %68 = arith.maximumf %66, %67 : vector<128x128xf32>
    %c0_32 = arith.constant 0 : index
    %c0_33 = arith.constant 0 : index
    %69 = vector.load %arg12[%c0_32, %c0_33] : memref<1x128xf32, #tpu.memory_space<vmem>>, vector<1x128xf32>
    %c0_34 = arith.constant 0 : index
    %c0_35 = arith.constant 0 : index
    %70 = vector.load %arg13[%c0_34, %c0_35] : memref<1x128xf32, #tpu.memory_space<vmem>>, vector<1x128xf32>
    %cst_36 = arith.constant dense<0.000000e+00> : vector<128xf32>
    %71 = vector.multi_reduction <add>, %68, %cst_36 [1] : vector<128x128xf32> to vector<128xf32>
    %72 = vector.shape_cast %71 : vector<128xf32> to vector<128x1xf32>
    %73 = arith.mulf %68, %68 : vector<128x128xf32>
    %cst_37 = arith.constant dense<0.000000e+00> : vector<128xf32>
    %74 = vector.multi_reduction <add>, %73, %cst_37 [1] : vector<128x128xf32> to vector<128xf32>
    %75 = vector.shape_cast %74 : vector<128xf32> to vector<128x1xf32>
    %cst_38 = arith.constant 1.562500e-02 : f32
    %76 = vector.broadcast %cst_38 : f32 to vector<128x1xf32>
    %77 = arith.mulf %72, %76 : vector<128x1xf32>
    %cst_39 = arith.constant 1.562500e-02 : f32
    %78 = vector.broadcast %cst_39 : f32 to vector<128x1xf32>
    %79 = arith.mulf %75, %78 : vector<128x1xf32>
    %80 = arith.mulf %77, %77 : vector<128x1xf32>
    %81 = arith.subf %79, %80 : vector<128x1xf32>
    %cst_40 = arith.constant 0.000000e+00 : f32
    %82 = vector.broadcast %cst_40 : f32 to vector<128x1xf32>
    %83 = arith.maximumf %81, %82 : vector<128x1xf32>
    %84 = vector.broadcast %77 : vector<128x1xf32> to vector<128x128xf32>
    %85 = arith.subf %68, %84 : vector<128x128xf32>
    %cst_41 = arith.constant 9.99999974E-6 : f32
    %86 = vector.broadcast %cst_41 : f32 to vector<128x1xf32>
    %87 = arith.addf %83, %86 : vector<128x1xf32>
    %88 = math.rsqrt %87 : vector<128x1xf32>
    %89 = vector.broadcast %88 : vector<128x1xf32> to vector<128x128xf32>
    %90 = arith.mulf %85, %89 : vector<128x128xf32>
    %91 = vector.broadcast %69 : vector<1x128xf32> to vector<128x128xf32>
    %92 = arith.mulf %90, %91 : vector<128x128xf32>
    %93 = vector.broadcast %70 : vector<1x128xf32> to vector<128x128xf32>
    %94 = arith.addf %92, %93 : vector<128x128xf32>
    %c0_42 = arith.constant 0 : index
    %c0_43 = arith.constant 0 : index
    %95 = vector.load %arg2[%c0_42, %c0_43] : memref<128x128xf32, #tpu.memory_space<vmem>>, vector<128x128xf32>
    %c0_44 = arith.constant 0 : index
    %c0_45 = arith.constant 0 : index
    %96 = vector.load %arg3[%c0_44, %c0_45] : memref<128x1xf32, #tpu.memory_space<vmem>>, vector<128x1xf32>
    %97 = vector.broadcast %96 : vector<128x1xf32> to vector<128x128xf32>
    %98 = arith.mulf %95, %97 : vector<128x128xf32>
    %c0_46 = arith.constant 0 : index
    %c0_47 = arith.constant 0 : index
    %99 = vector.load %arg14[%c0_46, %c0_47] : memref<128x384xbf16, #tpu.memory_space<vmem>>, vector<128x384xbf16>
    %c0_48 = arith.constant 0 : index
    %c0_49 = arith.constant 0 : index
    %100 = vector.load %arg16[%c0_48, %c0_49] : memref<128x384xbf16, #tpu.memory_space<vmem>>, vector<128x384xbf16>
    %101 = arith.truncf %94 : vector<128x128xf32> to vector<128x128xbf16>
    %cst_50 = arith.constant dense<0.000000e+00> : vector<128x384xf32>
    %102 = tpu.matmul %101, %99, %cst_50 {dimension_numbers = #tpu.dot_dimension_numbers<[1], [0], [0], [1], [0, 0, 1, 1], [], []>} : vector<128x128xbf16>, vector<128x384xbf16>, vector<128x384xf32> -> vector<128x384xf32>
    %c0_51 = arith.constant 0 : index
    %c0_52 = arith.constant 0 : index
    %103 = vector.load %arg15[%c0_51, %c0_52] : memref<1x384xf32, #tpu.memory_space<vmem>>, vector<1x384xf32>
    %104 = vector.broadcast %103 : vector<1x384xf32> to vector<128x384xf32>
    %105 = arith.addf %102, %104 : vector<128x384xf32>
    %106 = arith.truncf %98 : vector<128x128xf32> to vector<128x128xbf16>
    %cst_53 = arith.constant dense<0.000000e+00> : vector<128x384xf32>
    %107 = tpu.matmul %106, %100, %cst_53 {dimension_numbers = #tpu.dot_dimension_numbers<[1], [0], [0], [1], [0, 0, 1, 1], [], []>} : vector<128x128xbf16>, vector<128x384xbf16>, vector<128x384xf32> -> vector<128x384xf32>
    %108 = vector.extract_strided_slice %105 {offsets = [0, 0], sizes = [128, 256], strides = [1, 1]} : vector<128x384xf32> to vector<128x256xf32>
    %109 = vector.extract_strided_slice %107 {offsets = [0, 0], sizes = [128, 256], strides = [1, 1]} : vector<128x384xf32> to vector<128x256xf32>
    %110 = arith.addf %108, %109 : vector<128x256xf32>
    %111 = arith.negf %110 : vector<128x256xf32>
    %112 = math.exp %111 : vector<128x256xf32>
    %cst_54 = arith.constant 1.000000e+00 : f32
    %113 = vector.broadcast %cst_54 : f32 to vector<128x256xf32>
    %114 = arith.addf %113, %112 : vector<128x256xf32>
    %115 = arith.divf %113, %114 : vector<128x256xf32>
    %116 = vector.extract_strided_slice %115 {offsets = [0, 0], sizes = [128, 128], strides = [1, 1]} : vector<128x256xf32> to vector<128x128xf32>
    %117 = vector.extract_strided_slice %115 {offsets = [0, 128], sizes = [128, 128], strides = [1, 1]} : vector<128x256xf32> to vector<128x128xf32>
    %118 = vector.extract_strided_slice %105 {offsets = [0, 256], sizes = [128, 128], strides = [1, 1]} : vector<128x384xf32> to vector<128x128xf32>
    %119 = vector.extract_strided_slice %107 {offsets = [0, 256], sizes = [128, 128], strides = [1, 1]} : vector<128x384xf32> to vector<128x128xf32>
    %c0_55 = arith.constant 0 : index
    %c0_56 = arith.constant 0 : index
    %120 = vector.load %arg17[%c0_55, %c0_56] : memref<1x128xf32, #tpu.memory_space<vmem>>, vector<1x128xf32>
    %121 = vector.broadcast %120 : vector<1x128xf32> to vector<128x128xf32>
    %122 = arith.addf %119, %121 : vector<128x128xf32>
    %123 = arith.mulf %116, %122 : vector<128x128xf32>
    %124 = arith.addf %118, %123 : vector<128x128xf32>
    %125 = math.tanh %124 : vector<128x128xf32>
    %cst_57 = arith.constant 1.000000e+00 : f32
    %126 = vector.broadcast %cst_57 : f32 to vector<128x128xf32>
    %127 = arith.subf %126, %117 : vector<128x128xf32>
    %128 = arith.mulf %127, %125 : vector<128x128xf32>
    %129 = arith.mulf %117, %98 : vector<128x128xf32>
    %130 = arith.addf %128, %129 : vector<128x128xf32>
    %c0_58 = arith.constant 0 : index
    %c0_59 = arith.constant 0 : index
    %131 = vector.load %arg23[%c0_58, %c0_59] : memref<128x128xf32, #tpu.memory_space<vmem>>, vector<128x128xf32>
    tpu.vector_store %arg23[%c0_58, %c0_59], %130 {strides = array<i32>} : memref<128x128xf32, #tpu.memory_space<vmem>>, vector<128x128xf32>,
    %c0_60 = arith.constant 0 : index
    %c0_61 = arith.constant 0 : index
    %132 = vector.load %arg18[%c0_60, %c0_61] : memref<1x128xf32, #tpu.memory_space<vmem>>, vector<1x128xf32>
    %c0_62 = arith.constant 0 : index
    %c0_63 = arith.constant 0 : index
    %133 = vector.load %arg19[%c0_62, %c0_63] : memref<1x128xf32, #tpu.memory_space<vmem>>, vector<1x128xf32>
    %cst_64 = arith.constant dense<0.000000e+00> : vector<128xf32>
    %134 = vector.multi_reduction <add>, %130, %cst_64 [1] : vector<128x128xf32> to vector<128xf32>
    %135 = vector.shape_cast %134 : vector<128xf32> to vector<128x1xf32>
    %136 = arith.mulf %130, %130 : vector<128x128xf32>
    %cst_65 = arith.constant dense<0.000000e+00> : vector<128xf32>
    %137 = vector.multi_reduction <add>, %136, %cst_65 [1] : vector<128x128xf32> to vector<128xf32>
    %138 = vector.shape_cast %137 : vector<128xf32> to vector<128x1xf32>
    %cst_66 = arith.constant 1.562500e-02 : f32
    %139 = vector.broadcast %cst_66 : f32 to vector<128x1xf32>
    %140 = arith.mulf %135, %139 : vector<128x1xf32>
    %cst_67 = arith.constant 1.562500e-02 : f32
    %141 = vector.broadcast %cst_67 : f32 to vector<128x1xf32>
    %142 = arith.mulf %138, %141 : vector<128x1xf32>
    %143 = arith.mulf %140, %140 : vector<128x1xf32>
    %144 = arith.subf %142, %143 : vector<128x1xf32>
    %cst_68 = arith.constant 0.000000e+00 : f32
    %145 = vector.broadcast %cst_68 : f32 to vector<128x1xf32>
    %146 = arith.maximumf %144, %145 : vector<128x1xf32>
    %147 = vector.broadcast %140 : vector<128x1xf32> to vector<128x128xf32>
    %148 = arith.subf %130, %147 : vector<128x128xf32>
    %cst_69 = arith.constant 9.99999974E-6 : f32
    %149 = vector.broadcast %cst_69 : f32 to vector<128x1xf32>
    %150 = arith.addf %146, %149 : vector<128x1xf32>
    %151 = math.rsqrt %150 : vector<128x1xf32>
    %152 = vector.broadcast %151 : vector<128x1xf32> to vector<128x128xf32>
    %153 = arith.mulf %148, %152 : vector<128x128xf32>
    %154 = vector.broadcast %132 : vector<1x128xf32> to vector<128x128xf32>
    %155 = arith.mulf %153, %154 : vector<128x128xf32>
    %156 = vector.broadcast %133 : vector<1x128xf32> to vector<128x128xf32>
    %157 = arith.addf %155, %156 : vector<128x128xf32>
    %c0_70 = arith.constant 0 : index
    %c0_71 = arith.constant 0 : index
    %158 = vector.load %arg20[%c0_70, %c0_71] : memref<1x128xf32, #tpu.memory_space<vmem>>, vector<1x128xf32>
    %159 = vector.broadcast %158 : vector<1x128xf32> to vector<128x128xf32>
    %160 = arith.mulf %157, %159 : vector<128x128xf32>
    %cst_72 = arith.constant dense<0.000000e+00> : vector<128xf32>
    %161 = vector.multi_reduction <add>, %160, %cst_72 [1] : vector<128x128xf32> to vector<128xf32>
    %162 = vector.shape_cast %161 : vector<128xf32> to vector<128x1xf32>
    %c0_73 = arith.constant 0 : index
    %c0_74 = arith.constant 0 : index
    %163 = vector.load %arg21[%c0_73, %c0_74] : memref<1x1xf32, #tpu.memory_space<vmem>>, vector<1x1xf32>
    %164 = vector.broadcast %163 : vector<1x1xf32> to vector<128x1xf32>
    %165 = arith.addf %162, %164 : vector<128x1xf32>
    %c0_75 = arith.constant 0 : index
    %c0_76 = arith.constant 0 : index
    %166 = vector.load %arg22[%c0_75, %c0_76] : memref<128x1xf32, #tpu.memory_space<vmem>>, vector<128x1xf32>
    tpu.vector_store %arg22[%c0_75, %c0_76], %165 {strides = array<i32>} : memref<128x1xf32, #tpu.memory_space<vmem>>, vector<128x1xf32>,
    return
  }
  func.func @transform_0(%arg0: i32) -> (i32, i32) {
    %c0_i32 = arith.constant 0 : i32
    %c0_i32_0 = arith.constant 0 : i32
    return %arg0, %c0_i32 : i32, i32
  }
  func.func @transform_1(%arg0: i32) -> (i32, i32) {
    %c0_i32 = arith.constant 0 : i32
    %c0_i32_0 = arith.constant 0 : i32
    return %arg0, %c0_i32 : i32, i32
  }
  func.func @transform_2(%arg0: i32) -> (i32, i32) {
    %c0_i32 = arith.constant 0 : i32
    %c0_i32_0 = arith.constant 0 : i32
    return %arg0, %c0_i32 : i32, i32
  }
  func.func @transform_3(%arg0: i32) -> (i32, i32) {
    %c0_i32 = arith.constant 0 : i32
    %c0_i32_0 = arith.constant 0 : i32
    %c0_i32_1 = arith.constant 0 : i32
    return %c0_i32, %c0_i32_0 : i32, i32
  }
  func.func @transform_4(%arg0: i32) -> (i32, i32) {
    %c0_i32 = arith.constant 0 : i32
    %c0_i32_0 = arith.constant 0 : i32
    %c0_i32_1 = arith.constant 0 : i32
    return %c0_i32, %c0_i32_0 : i32, i32
  }
  func.func @transform_5(%arg0: i32) -> (i32, i32) {
    %c0_i32 = arith.constant 0 : i32
    %c0_i32_0 = arith.constant 0 : i32
    %c0_i32_1 = arith.constant 0 : i32
    return %c0_i32, %c0_i32_0 : i32, i32
  }
  func.func @transform_6(%arg0: i32) -> (i32, i32) {
    %c0_i32 = arith.constant 0 : i32
    %c0_i32_0 = arith.constant 0 : i32
    %c0_i32_1 = arith.constant 0 : i32
    return %c0_i32, %c0_i32_0 : i32, i32
  }
  func.func @transform_7(%arg0: i32) -> (i32, i32) {
    %c0_i32 = arith.constant 0 : i32
    %c0_i32_0 = arith.constant 0 : i32
    %c0_i32_1 = arith.constant 0 : i32
    return %c0_i32, %c0_i32_0 : i32, i32
  }
  func.func @transform_8(%arg0: i32) -> (i32, i32) {
    %c0_i32 = arith.constant 0 : i32
    %c0_i32_0 = arith.constant 0 : i32
    %c0_i32_1 = arith.constant 0 : i32
    return %c0_i32, %c0_i32_0 : i32, i32
  }
  func.func @transform_9(%arg0: i32) -> (i32, i32) {
    %c0_i32 = arith.constant 0 : i32
    %c0_i32_0 = arith.constant 0 : i32
    %c0_i32_1 = arith.constant 0 : i32
    return %c0_i32, %c0_i32_0 : i32, i32
  }
  func.func @transform_10(%arg0: i32) -> (i32, i32) {
    %c0_i32 = arith.constant 0 : i32
    %c0_i32_0 = arith.constant 0 : i32
    %c0_i32_1 = arith.constant 0 : i32
    return %c0_i32, %c0_i32_0 : i32, i32
  }
  func.func @transform_11(%arg0: i32) -> (i32, i32) {
    %c0_i32 = arith.constant 0 : i32
    %c0_i32_0 = arith.constant 0 : i32
    %c0_i32_1 = arith.constant 0 : i32
    return %c0_i32, %c0_i32_0 : i32, i32
  }
  func.func @transform_12(%arg0: i32) -> (i32, i32) {
    %c0_i32 = arith.constant 0 : i32
    %c0_i32_0 = arith.constant 0 : i32
    %c0_i32_1 = arith.constant 0 : i32
    return %c0_i32, %c0_i32_0 : i32, i32
  }
  func.func @transform_13(%arg0: i32) -> (i32, i32) {
    %c0_i32 = arith.constant 0 : i32
    %c0_i32_0 = arith.constant 0 : i32
    %c0_i32_1 = arith.constant 0 : i32
    return %c0_i32, %c0_i32_0 : i32, i32
  }
  func.func @transform_14(%arg0: i32) -> (i32, i32) {
    %c0_i32 = arith.constant 0 : i32
    %c0_i32_0 = arith.constant 0 : i32
    %c0_i32_1 = arith.constant 0 : i32
    return %c0_i32, %c0_i32_0 : i32, i32
  }
  func.func @transform_15(%arg0: i32) -> (i32, i32) {
    %c0_i32 = arith.constant 0 : i32
    %c0_i32_0 = arith.constant 0 : i32
    %c0_i32_1 = arith.constant 0 : i32
    return %c0_i32, %c0_i32_0 : i32, i32
  }
  func.func @transform_16(%arg0: i32) -> (i32, i32) {
    %c0_i32 = arith.constant 0 : i32
    %c0_i32_0 = arith.constant 0 : i32
    %c0_i32_1 = arith.constant 0 : i32
    return %c0_i32, %c0_i32_0 : i32, i32
  }
  func.func @transform_17(%arg0: i32) -> (i32, i32) {
    %c0_i32 = arith.constant 0 : i32
    %c0_i32_0 = arith.constant 0 : i32
    %c0_i32_1 = arith.constant 0 : i32
    return %c0_i32, %c0_i32_0 : i32, i32
  }
  func.func @transform_18(%arg0: i32) -> (i32, i32) {
    %c0_i32 = arith.constant 0 : i32
    %c0_i32_0 = arith.constant 0 : i32
    %c0_i32_1 = arith.constant 0 : i32
    return %c0_i32, %c0_i32_0 : i32, i32
  }
  func.func @transform_19(%arg0: i32) -> (i32, i32) {
    %c0_i32 = arith.constant 0 : i32
    %c0_i32_0 = arith.constant 0 : i32
    %c0_i32_1 = arith.constant 0 : i32
    return %c0_i32, %c0_i32_0 : i32, i32
  }
  func.func @transform_20(%arg0: i32) -> (i32, i32) {
    %c0_i32 = arith.constant 0 : i32
    %c0_i32_0 = arith.constant 0 : i32
    %c0_i32_1 = arith.constant 0 : i32
    return %c0_i32, %c0_i32_0 : i32, i32
  }
  func.func @transform_21(%arg0: i32) -> (i32, i32) {
    %c0_i32 = arith.constant 0 : i32
    %c0_i32_0 = arith.constant 0 : i32
    return %arg0, %c0_i32 : i32, i32
  }
  func.func @transform_22(%arg0: i32) -> (i32, i32) {
    %c0_i32 = arith.constant 0 : i32
    %c0_i32_0 = arith.constant 0 : i32
    return %arg0, %c0_i32 : i32, i32
  }
}

</mosaic_0001>

<llo_original>
// kernel: tpu_custom_call.1
$region0: #{tpu_custom_call.1}
  #allocation0 [shape = 'u32[]', space=smem, size = 0x4, offset = 0x4, fixed_abs, tag = 'smem constant byte address 0x4 - core index']
  #allocation1 [shape = 'u32[144,128]{1,0:T(1,128)}', space=vmem, size = 0x12000, scoped, tag = 'internal scratch']
  #allocation2 [shape = 'f32[1,1]{1,0:T(1,128)S(1)}', space=vmem, size = 0x200, scoped, tag = 'scoped memory for tpu_custom_call.1']
  %s0 = inlined_call_operand.vmem [shape: f32[256,128], index: 0, kind: input, shape index: {}]
  %s1 = inlined_call_operand.hbm [shape: f32[256,128], index: 1, kind: input, shape index: {}]
  %s2 = inlined_call_operand.vmem [shape: f32[256,1], index: 2, kind: input, shape index: {}]
  %s3 = inlined_call_operand.vmem [shape: f32[1,128], index: 3, kind: input, shape index: {}]
  %s4 = inlined_call_operand.vmem [shape: f32[1,128], index: 4, kind: input, shape index: {}]
  %s5 = inlined_call_operand.hbm [shape: bf16[128,128], index: 5, kind: input, shape index: {}]
  %s6 = inlined_call_operand.vmem [shape: f32[1,128], index: 6, kind: input, shape index: {}]
  %s7 = inlined_call_operand.vmem [shape: f32[1,128], index: 7, kind: input, shape index: {}]
  %s8 = inlined_call_operand.vmem [shape: f32[1,128], index: 8, kind: input, shape index: {}]
  %s9 = inlined_call_operand.hbm [shape: bf16[128,128], index: 9, kind: input, shape index: {}]
  %s10 = inlined_call_operand.vmem [shape: f32[1,128], index: 10, kind: input, shape index: {}]
  %s11 = inlined_call_operand.vmem [shape: f32[1,128], index: 11, kind: input, shape index: {}]
  %s12 = inlined_call_operand.vmem [shape: f32[1,128], index: 12, kind: input, shape index: {}]
  %s13 = inlined_call_operand.hbm [shape: bf16[128,384], index: 13, kind: input, shape index: {}]
  %s14 = inlined_call_operand.vmem [shape: f32[1,384], index: 14, kind: input, shape index: {}]
  %s15 = inlined_call_operand.hbm [shape: bf16[128,384], index: 15, kind: input, shape index: {}]
  %s16 = inlined_call_operand.vmem [shape: f32[1,128], index: 16, kind: input, shape index: {}]
  %s17 = inlined_call_operand.vmem [shape: f32[1,128], index: 17, kind: input, shape index: {}]
  %s18 = inlined_call_operand.vmem [shape: f32[1,128], index: 18, kind: input, shape index: {}]
  %s19 = inlined_call_operand.vmem [shape: f32[1,128], index: 19, kind: input, shape index: {}]
  %s20 = inlined_call_operand.<no memory space> [shape: f32[1,1], index: 20, kind: input, shape index: {}]
  %s21 = inlined_call_operand.vmem [shape: f32[256,1], index: 21, kind: output, shape index: {0}]
  %s22 = inlined_call_operand.hbm [shape: f32[256,128], index: 22, kind: output, shape index: {1}]
  %23 = xla_tuple %s21, %s22
  %s24 = sld [smem:[#allocation0]]
  $region145: #{tpu_custom_call.1} parent=0
    _
  %s26 = ssub.s32 1, %s24
  %s27 = scalar_select 0, %s26, %s24
  %v28 = vstv %s20
  %29 = vst [vmem:[#allocation2] sm:$0x1] %v28
  $region1: #{tpu_custom_call.1} parent=0
    #allocation3 [shape = 'u8[131072]{0}', space=vmem, size = 0x20000, scoped, tag = 'input window, operand 1']
    #allocation4 [shape = 's32[2]{0}', space=sflag, size = 0x8, scoped, tag = 'scoped memory for tpu_custom_call.1']
    #allocation5 [shape = 's32[2]{0}', space=sflag, size = 0x8, scoped, tag = 'scoped memory for tpu_custom_call.1']
    #allocation6 [shape = 'u8[32768]{0}', space=vmem, size = 0x8000, scoped, tag = 'input window, operand 5, single buffered']
    #allocation7 [shape = 's32[1]{0}', space=sflag, size = 0x4, scoped, tag = 'scoped memory for tpu_custom_call.1']
    #allocation8 [shape = 'u8[32768]{0}', space=vmem, size = 0x8000, scoped, tag = 'input window, operand 9, single buffered']
    #allocation9 [shape = 'u8[98304]{0}', space=vmem, size = 0x18000, scoped, tag = 'input window, operand 13, single buffered']
    #allocation10 [shape = 's32[1]{0}', space=sflag, size = 0x4, scoped, tag = 'scoped memory for tpu_custom_call.1']
    #allocation11 [shape = 'u8[98304]{0}', space=vmem, size = 0x18000, scoped, tag = 'input window, operand 15, single buffered']
    #allocation12 [shape = 'u8[131072]{0}', space=vmem, size = 0x20000, scoped, tag = 'output window, operand 1']
    %30 = vsyncpa [#allocation4], 0
    %s31 = scalar_lea.sflag [#allocation4], 1
    %32 = vsyncpa %s31, 0
    %33 = vsyncpa [#allocation7], 0
    %34 = vsyncpa [#allocation10], 0
    %35 = vsyncpa [#allocation5], 0
    %s36 = scalar_lea.sflag [#allocation5], 1
    %37 = vsyncpa %s36, 0
    loop: start=0, step=1, limit=4
    $region2: #{tpu_custom_call.1} parent=1 // loop_pre_header
      _
    $region3: #{tpu_custom_call.1} parent=1 // loop_header
      %s39 = sphi 0, %s43
      %p40 = scmp.ge.s32.totalorder %s39, 4
      %s49 = sphi 0, %s51
      %s52 = sphi 0, %s49
      %s53 = sphi 0, %s52
      %s69 = sphi 0, %s53
      %s75 = sphi 0, %s77
      %s78 = sphi 0, %s75
      %s79 = sphi 0, %s78
      %s95 = sphi 0, %s79
      %s101 = sphi 0, %s103
      %s104 = sphi 0, %s101
      %s105 = sphi 0, %s104
      %s121 = sphi 0, %s105
      %s125 = sphi 0, %s125
      %s127 = sphi 0, %s125
      %s128 = sphi 0, %s127
      %s142 = sphi 0, %s128
      %s146 = sphi 0, %s146
      %s148 = sphi 0, %s146
      %s149 = sphi 0, %s148
      %s163 = sphi 0, %s149
      %s167 = sphi 0, %s167
      %s169 = sphi 0, %s167
      %s170 = sphi 0, %s169
      %s184 = sphi 0, %s170
      %s188 = sphi 0, %s188
      %s190 = sphi 0, %s188
      %s191 = sphi 0, %s190
      %s205 = sphi 0, %s191
      %s209 = sphi 0, %s209
      %s211 = sphi 0, %s209
      %s212 = sphi 0, %s211
      %s226 = sphi 0, %s212
      %s230 = sphi 0, %s230
      %s232 = sphi 0, %s230
      %s233 = sphi 0, %s232
      %s247 = sphi 0, %s233
      %s251 = sphi 0, %s251
      %s253 = sphi 0, %s251
      %s254 = sphi 0, %s253
      %s268 = sphi 0, %s254
      %s272 = sphi 0, %s272
      %s274 = sphi 0, %s272
      %s275 = sphi 0, %s274
      %s289 = sphi 0, %s275
      %s293 = sphi 0, %s293
      %s295 = sphi 0, %s293
      %s296 = sphi 0, %s295
      %s310 = sphi 0, %s296
      %s314 = sphi 0, %s314
      %s316 = sphi 0, %s314
      %s317 = sphi 0, %s316
      %s331 = sphi 0, %s317
      %s335 = sphi 0, %s335
      %s337 = sphi 0, %s335
      %s338 = sphi 0, %s337
      %s352 = sphi 0, %s338
      %s356 = sphi 0, %s356
      %s358 = sphi 0, %s356
      %s359 = sphi 0, %s358
      %s373 = sphi 0, %s359
      %s377 = sphi 0, %s377
      %s379 = sphi 0, %s377
      %s380 = sphi 0, %s379
      %s394 = sphi 0, %s380
      %s398 = sphi 0, %s398
      %s400 = sphi 0, %s398
      %s401 = sphi 0, %s400
      %s415 = sphi 0, %s401
      %s419 = sphi 0, %s419
      %s421 = sphi 0, %s419
      %s422 = sphi 0, %s421
      %s436 = sphi 0, %s422
      %s440 = sphi 0, %s440
      %s442 = sphi 0, %s440
      %s443 = sphi 0, %s442
      %s457 = sphi 0, %s443
      %s461 = sphi 0, %s461
      %s463 = sphi 0, %s461
      %s464 = sphi 0, %s463
      %s478 = sphi 0, %s464
      %s482 = sphi 0, %s482
      %s484 = sphi 0, %s482
      %s485 = sphi 0, %s484
      %s499 = sphi 0, %s485
      %s505 = sphi 0, %s507
      %s508 = sphi 0, %s505
      %s509 = sphi 0, %s508
      %s525 = sphi 0, %s509
      %s531 = sphi 0, %s533
      %s534 = sphi 0, %s531
      %s535 = sphi 0, %s534
      %s551 = sphi 0, %s535
    $region4: #{tpu_custom_call.1} parent=1 // loop_header_branch
      %42 = sbr.rel (%p40) target = $region8
    $region5: #{tpu_custom_call.1} parent=1 // loop_body
      %s44 = ssub.s32 %s39, 1
      %s45 = ssub.s32 %s39, 2
      %s46 = sadd.s32 %s39, 1
      %s47 = ssub.s32 %s39, %s46
      %p48 = scmp.eq.s32.totalorder %s47, 0
      %s50 = sadd.s32 %s49, 1
      %s51 = scalar_select %p48, %s49, %s50
      %p54 = pneg %p48
      %p55 = scmp.eq.s32.totalorder %s39, 1
      %p56 = por %p54, %p55
      %p57 = scmp.ne.s32.totalorder %s49, %s52
      %p58 = scmp.eq.s32.totalorder %s39, 0
      %p59 = por %p57, %p58
      %p60 = scmp.ne.s32.totalorder %s49, %s52
      %p61 = scmp.eq.s32.totalorder %s44, 1
      %p62 = por %p60, %p61
      %p63 = scmp.ne.s32.totalorder %s52, %s53
      %p64 = scmp.eq.s32.totalorder %s44, 0
      %p65 = por %p63, %p64
      %p66 = scmp.ne.s32.totalorder %s52, %s53
      %p67 = scmp.eq.s32.totalorder %s45, 1
      %p68 = por %p66, %p67
      %p70 = scmp.ne.s32.totalorder %s53, %s69
      %p71 = scmp.eq.s32.totalorder %s45, 0
      %p72 = por %p70, %p71
      %s73 = ssub.s32 %s39, %s46
      %p74 = scmp.eq.s32.totalorder %s73, 0
      %s76 = sadd.s32 %s75, 1
      %s77 = scalar_select %p74, %s75, %s76
      %p80 = pneg %p74
      %p81 = scmp.eq.s32.totalorder %s39, 1
      %p82 = por %p80, %p81
      %p83 = scmp.ne.s32.totalorder %s75, %s78
      %p84 = scmp.eq.s32.totalorder %s39, 0
      %p85 = por %p83, %p84
      %p86 = scmp.ne.s32.totalorder %s75, %s78
      %p87 = scmp.eq.s32.totalorder %s44, 1
      %p88 = por %p86, %p87
      %p89 = scmp.ne.s32.totalorder %s78, %s79
      %p90 = scmp.eq.s32.totalorder %s44, 0
      %p91 = por %p89, %p90
      %p92 = scmp.ne.s32.totalorder %s78, %s79
      %p93 = scmp.eq.s32.totalorder %s45, 1
      %p94 = por %p92, %p93
      %p96 = scmp.ne.s32.totalorder %s79, %s95
      %p97 = scmp.eq.s32.totalorder %s45, 0
      %p98 = por %p96, %p97
      %s99 = ssub.s32 %s39, %s46
      %p100 = scmp.eq.s32.totalorder %s99, 0
      %s102 = sadd.s32 %s101, 1
      %s103 = scalar_select %p100, %s101, %s102
      %p106 = pneg %p100
      %p107 = scmp.eq.s32.totalorder %s39, 1
      %p108 = por %p106, %p107
      %p109 = scmp.ne.s32.totalorder %s101, %s104
      %p110 = scmp.eq.s32.totalorder %s39, 0
      %p111 = por %p109, %p110
      %p112 = scmp.ne.s32.totalorder %s101, %s104
      %p113 = scmp.eq.s32.totalorder %s44, 1
      %p114 = por %p112, %p113
      %p115 = scmp.ne.s32.totalorder %s104, %s105
      %p116 = scmp.eq.s32.totalorder %s44, 0
      %p117 = por %p115, %p116
      %p118 = scmp.ne.s32.totalorder %s104, %s105
      %p119 = scmp.eq.s32.totalorder %s45, 1
      %p120 = por %p118, %p119
      %p122 = scmp.ne.s32.totalorder %s105, %s121
      %p123 = scmp.eq.s32.totalorder %s45, 0
      %p124 = por %p122, %p123
      %s126 = sadd.s32 %s125, 1
      %p129 = scmp.eq.s32.totalorder %s39, 1
      %p130 = scmp.ne.s32.totalorder %s125, %s127
      %p131 = scmp.eq.s32.totalorder %s39, 0
      %p132 = por %p130, %p131
      %p133 = scmp.ne.s32.totalorder %s125, %s127
      %p134 = scmp.eq.s32.totalorder %s44, 1
      %p135 = por %p133, %p134
      %p136 = scmp.ne.s32.totalorder %s127, %s128
      %p137 = scmp.eq.s32.totalorder %s44, 0
      %p138 = por %p136, %p137
      %p139 = scmp.ne.s32.totalorder %s127, %s128
      %p140 = scmp.eq.s32.totalorder %s45, 1
      %p141 = por %p139, %p140
      %p143 = scmp.ne.s32.totalorder %s128, %s142
      %p144 = scmp.eq.s32.totalorder %s45, 0
      %p145 = por %p143, %p144
      %s147 = sadd.s32 %s146, 1
      %p150 = scmp.eq.s32.totalorder %s39, 1
      %p151 = scmp.ne.s32.totalorder %s146, %s148
      %p152 = scmp.eq.s32.totalorder %s39, 0
      %p153 = por %p151, %p152
      %p154 = scmp.ne.s32.totalorder %s146, %s148
      %p155 = scmp.eq.s32.totalorder %s44, 1
      %p156 = por %p154, %p155
      %p157 = scmp.ne.s32.totalorder %s148, %s149
      %p158 = scmp.eq.s32.totalorder %s44, 0
      %p159 = por %p157, %p158
      %p160 = scmp.ne.s32.totalorder %s148, %s149
      %p161 = scmp.eq.s32.totalorder %s45, 1
      %p162 = por %p160, %p161
      %p164 = scmp.ne.s32.totalorder %s149, %s163
      %p165 = scmp.eq.s32.totalorder %s45, 0
      %p166 = por %p164, %p165
      %s168 = sadd.s32 %s167, 1
      %p171 = scmp.eq.s32.totalorder %s39, 1
      %p172 = scmp.ne.s32.totalorder %s167, %s169
      %p173 = scmp.eq.s32.totalorder %s39, 0
      %p174 = por %p172, %p173
      %p175 = scmp.ne.s32.totalorder %s167, %s169
      %p176 = scmp.eq.s32.totalorder %s44, 1
      %p177 = por %p175, %p176
      %p178 = scmp.ne.s32.totalorder %s169, %s170
      %p179 = scmp.eq.s32.totalorder %s44, 0
      %p180 = por %p178, %p179
      %p181 = scmp.ne.s32.totalorder %s169, %s170
      %p182 = scmp.eq.s32.totalorder %s45, 1
      %p183 = por %p181, %p182
      %p185 = scmp.ne.s32.totalorder %s170, %s184
      %p186 = scmp.eq.s32.totalorder %s45, 0
      %p187 = por %p185, %p186
      %s189 = sadd.s32 %s188, 1
      %p192 = scmp.eq.s32.totalorder %s39, 1
      %p193 = scmp.ne.s32.totalorder %s188, %s190
      %p194 = scmp.eq.s32.totalorder %s39, 0
      %p195 = por %p193, %p194
      %p196 = scmp.ne.s32.totalorder %s188, %s190
      %p197 = scmp.eq.s32.totalorder %s44, 1
      %p198 = por %p196, %p197
      %p199 = scmp.ne.s32.totalorder %s190, %s191
      %p200 = scmp.eq.s32.totalorder %s44, 0
      %p201 = por %p199, %p200
      %p202 = scmp.ne.s32.totalorder %s190, %s191
      %p203 = scmp.eq.s32.totalorder %s45, 1
      %p204 = por %p202, %p203
      %p206 = scmp.ne.s32.totalorder %s191, %s205
      %p207 = scmp.eq.s32.totalorder %s45, 0
      %p208 = por %p206, %p207
      %s210 = sadd.s32 %s209, 1
      %p213 = scmp.eq.s32.totalorder %s39, 1
      %p214 = scmp.ne.s32.totalorder %s209, %s211
      %p215 = scmp.eq.s32.totalorder %s39, 0
      %p216 = por %p214, %p215
      %p217 = scmp.ne.s32.totalorder %s209, %s211
      %p218 = scmp.eq.s32.totalorder %s44, 1
      %p219 = por %p217, %p218
      %p220 = scmp.ne.s32.totalorder %s211, %s212
      %p221 = scmp.eq.s32.totalorder %s44, 0
      %p222 = por %p220, %p221
      %p223 = scmp.ne.s32.totalorder %s211, %s212
      %p224 = scmp.eq.s32.totalorder %s45, 1
      %p225 = por %p223, %p224
      %p227 = scmp.ne.s32.totalorder %s212, %s226
      %p228 = scmp.eq.s32.totalorder %s45, 0
      %p229 = por %p227, %p228
      %s231 = sadd.s32 %s230, 1
      %p234 = scmp.eq.s32.totalorder %s39, 1
      %p235 = scmp.ne.s32.totalorder %s230, %s232
      %p236 = scmp.eq.s32.totalorder %s39, 0
      %p237 = por %p235, %p236
      %p238 = scmp.ne.s32.totalorder %s230, %s232
      %p239 = scmp.eq.s32.totalorder %s44, 1
      %p240 = por %p238, %p239
      %p241 = scmp.ne.s32.totalorder %s232, %s233
      %p242 = scmp.eq.s32.totalorder %s44, 0
      %p243 = por %p241, %p242
      %p244 = scmp.ne.s32.totalorder %s232, %s233
      %p245 = scmp.eq.s32.totalorder %s45, 1
      %p246 = por %p244, %p245
      %p248 = scmp.ne.s32.totalorder %s233, %s247
      %p249 = scmp.eq.s32.totalorder %s45, 0
      %p250 = por %p248, %p249
      %s252 = sadd.s32 %s251, 1
      %p255 = scmp.eq.s32.totalorder %s39, 1
      %p256 = scmp.ne.s32.totalorder %s251, %s253
      %p257 = scmp.eq.s32.totalorder %s39, 0
      %p258 = por %p256, %p257
      %p259 = scmp.ne.s32.totalorder %s251, %s253
      %p260 = scmp.eq.s32.totalorder %s44, 1
      %p261 = por %p259, %p260
      %p262 = scmp.ne.s32.totalorder %s253, %s254
      %p263 = scmp.eq.s32.totalorder %s44, 0
      %p264 = por %p262, %p263
      %p265 = scmp.ne.s32.totalorder %s253, %s254
      %p266 = scmp.eq.s32.totalorder %s45, 1
      %p267 = por %p265, %p266
      %p269 = scmp.ne.s32.totalorder %s254, %s268
      %p270 = scmp.eq.s32.totalorder %s45, 0
      %p271 = por %p269, %p270
      %s273 = sadd.s32 %s272, 1
      %p276 = scmp.eq.s32.totalorder %s39, 1
      %p277 = scmp.ne.s32.totalorder %s272, %s274
      %p278 = scmp.eq.s32.totalorder %s39, 0
      %p279 = por %p277, %p278
      %p280 = scmp.ne.s32.totalorder %s272, %s274
      %p281 = scmp.eq.s32.totalorder %s44, 1
      %p282 = por %p280, %p281
      %p283 = scmp.ne.s32.totalorder %s274, %s275
      %p284 = scmp.eq.s32.totalorder %s44, 0
      %p285 = por %p283, %p284
      %p286 = scmp.ne.s32.totalorder %s274, %s275
      %p287 = scmp.eq.s32.totalorder %s45, 1
      %p288 = por %p286, %p287
      %p290 = scmp.ne.s32.totalorder %s275, %s289
      %p291 = scmp.eq.s32.totalorder %s45, 0
      %p292 = por %p290, %p291
      %s294 = sadd.s32 %s293, 1
      %p297 = scmp.eq.s32.totalorder %s39, 1
      %p298 = scmp.ne.s32.totalorder %s293, %s295
      %p299 = scmp.eq.s32.totalorder %s39, 0
      %p300 = por %p298, %p299
      %p301 = scmp.ne.s32.totalorder %s293, %s295
      %p302 = scmp.eq.s32.totalorder %s44, 1
      %p303 = por %p301, %p302
      %p304 = scmp.ne.s32.totalorder %s295, %s296
      %p305 = scmp.eq.s32.totalorder %s44, 0
      %p306 = por %p304, %p305
      %p307 = scmp.ne.s32.totalorder %s295, %s296
      %p308 = scmp.eq.s32.totalorder %s45, 1
      %p309 = por %p307, %p308
      %p311 = scmp.ne.s32.totalorder %s296, %s310
      %p312 = scmp.eq.s32.totalorder %s45, 0
      %p313 = por %p311, %p312
      %s315 = sadd.s32 %s314, 1
      %p318 = scmp.eq.s32.totalorder %s39, 1
      %p319 = scmp.ne.s32.totalorder %s314, %s316
      %p320 = scmp.eq.s32.totalorder %s39, 0
      %p321 = por %p319, %p320
      %p322 = scmp.ne.s32.totalorder %s314, %s316
      %p323 = scmp.eq.s32.totalorder %s44, 1
      %p324 = por %p322, %p323
      %p325 = scmp.ne.s32.totalorder %s316, %s317
      %p326 = scmp.eq.s32.totalorder %s44, 0
      %p327 = por %p325, %p326
      %p328 = scmp.ne.s32.totalorder %s316, %s317
      %p329 = scmp.eq.s32.totalorder %s45, 1
      %p330 = por %p328, %p329
      %p332 = scmp.ne.s32.totalorder %s317, %s331
      %p333 = scmp.eq.s32.totalorder %s45, 0
      %p334 = por %p332, %p333
      %s336 = sadd.s32 %s335, 1
      %p339 = scmp.eq.s32.totalorder %s39, 1
      %p340 = scmp.ne.s32.totalorder %s335, %s337
      %p341 = scmp.eq.s32.totalorder %s39, 0
      %p342 = por %p340, %p341
      %p343 = scmp.ne.s32.totalorder %s335, %s337
      %p344 = scmp.eq.s32.totalorder %s44, 1
      %p345 = por %p343, %p344
      %p346 = scmp.ne.s32.totalorder %s337, %s338
      %p347 = scmp.eq.s32.totalorder %s44, 0
      %p348 = por %p346, %p347
      %p349 = scmp.ne.s32.totalorder %s337, %s338
      %p350 = scmp.eq.s32.totalorder %s45, 1
      %p351 = por %p349, %p350
      %p353 = scmp.ne.s32.totalorder %s338, %s352
      %p354 = scmp.eq.s32.totalorder %s45, 0
      %p355 = por %p353, %p354
      %s357 = sadd.s32 %s356, 1
      %p360 = scmp.eq.s32.totalorder %s39, 1
      %p361 = scmp.ne.s32.totalorder %s356, %s358
      %p362 = scmp.eq.s32.totalorder %s39, 0
      %p363 = por %p361, %p362
      %p364 = scmp.ne.s32.totalorder %s356, %s358
      %p365 = scmp.eq.s32.totalorder %s44, 1
      %p366 = por %p364, %p365
      %p367 = scmp.ne.s32.totalorder %s358, %s359
      %p368 = scmp.eq.s32.totalorder %s44, 0
      %p369 = por %p367, %p368
      %p370 = scmp.ne.s32.totalorder %s358, %s359
      %p371 = scmp.eq.s32.totalorder %s45, 1
      %p372 = por %p370, %p371
      %p374 = scmp.ne.s32.totalorder %s359, %s373
      %p375 = scmp.eq.s32.totalorder %s45, 0
      %p376 = por %p374, %p375
      %s378 = sadd.s32 %s377, 1
      %p381 = scmp.eq.s32.totalorder %s39, 1
      %p382 = scmp.ne.s32.totalorder %s377, %s379
      %p383 = scmp.eq.s32.totalorder %s39, 0
      %p384 = por %p382, %p383
      %p385 = scmp.ne.s32.totalorder %s377, %s379
      %p386 = scmp.eq.s32.totalorder %s44, 1
      %p387 = por %p385, %p386
      %p388 = scmp.ne.s32.totalorder %s379, %s380
      %p389 = scmp.eq.s32.totalorder %s44, 0
      %p390 = por %p388, %p389
      %p391 = scmp.ne.s32.totalorder %s379, %s380
      %p392 = scmp.eq.s32.totalorder %s45, 1
      %p393 = por %p391, %p392
      %p395 = scmp.ne.s32.totalorder %s380, %s394
      %p396 = scmp.eq.s32.totalorder %s45, 0
      %p397 = por %p395, %p396
      %s399 = sadd.s32 %s398, 1
      %p402 = scmp.eq.s32.totalorder %s39, 1
      %p403 = scmp.ne.s32.totalorder %s398, %s400
      %p404 = scmp.eq.s32.totalorder %s39, 0
      %p405 = por %p403, %p404
      %p406 = scmp.ne.s32.totalorder %s398, %s400
      %p407 = scmp.eq.s32.totalorder %s44, 1
      %p408 = por %p406, %p407
      %p409 = scmp.ne.s32.totalorder %s400, %s401
      %p410 = scmp.eq.s32.totalorder %s44, 0
      %p411 = por %p409, %p410
      %p412 = scmp.ne.s32.totalorder %s400, %s401
      %p413 = scmp.eq.s32.totalorder %s45, 1
      %p414 = por %p412, %p413
      %p416 = scmp.ne.s32.totalorder %s401, %s415
      %p417 = scmp.eq.s32.totalorder %s45, 0
      %p418 = por %p416, %p417
      %s420 = sadd.s32 %s419, 1
      %p423 = scmp.eq.s32.totalorder %s39, 1
      %p424 = scmp.ne.s32.totalorder %s419, %s421
      %p425 = scmp.eq.s32.totalorder %s39, 0
      %p426 = por %p424, %p425
      %p427 = scmp.ne.s32.totalorder %s419, %s421
      %p428 = scmp.eq.s32.totalorder %s44, 1
      %p429 = por %p427, %p428
      %p430 = scmp.ne.s32.totalorder %s421, %s422
      %p431 = scmp.eq.s32.totalorder %s44, 0
      %p432 = por %p430, %p431
      %p433 = scmp.ne.s32.totalorder %s421, %s422
      %p434 = scmp.eq.s32.totalorder %s45, 1
      %p435 = por %p433, %p434
      %p437 = scmp.ne.s32.totalorder %s422, %s436
      %p438 = scmp.eq.s32.totalorder %s45, 0
      %p439 = por %p437, %p438
      %s441 = sadd.s32 %s440, 1
      %p444 = scmp.eq.s32.totalorder %s39, 1
      %p445 = scmp.ne.s32.totalorder %s440, %s442
      %p446 = scmp.eq.s32.totalorder %s39, 0
      %p447 = por %p445, %p446
      %p448 = scmp.ne.s32.totalorder %s440, %s442
      %p449 = scmp.eq.s32.totalorder %s44, 1
      %p450 = por %p448, %p449
      %p451 = scmp.ne.s32.totalorder %s442, %s443
      %p452 = scmp.eq.s32.totalorder %s44, 0
      %p453 = por %p451, %p452
      %p454 = scmp.ne.s32.totalorder %s442, %s443
      %p455 = scmp.eq.s32.totalorder %s45, 1
      %p456 = por %p454, %p455
      %p458 = scmp.ne.s32.totalorder %s443, %s457
      %p459 = scmp.eq.s32.totalorder %s45, 0
      %p460 = por %p458, %p459
      %s462 = sadd.s32 %s461, 1
      %p465 = scmp.eq.s32.totalorder %s39, 1
      %p466 = scmp.ne.s32.totalorder %s461, %s463
      %p467 = scmp.eq.s32.totalorder %s39, 0
      %p468 = por %p466, %p467
      %p469 = scmp.ne.s32.totalorder %s461, %s463
      %p470 = scmp.eq.s32.totalorder %s44, 1
      %p471 = por %p469, %p470
      %p472 = scmp.ne.s32.totalorder %s463, %s464
      %p473 = scmp.eq.s32.totalorder %s44, 0
      %p474 = por %p472, %p473
      %p475 = scmp.ne.s32.totalorder %s463, %s464
      %p476 = scmp.eq.s32.totalorder %s45, 1
      %p477 = por %p475, %p476
      %p479 = scmp.ne.s32.totalorder %s464, %s478
      %p480 = scmp.eq.s32.totalorder %s45, 0
      %p481 = por %p479, %p480
      %s483 = sadd.s32 %s482, 1
      %p486 = scmp.eq.s32.totalorder %s39, 1
      %p487 = scmp.ne.s32.totalorder %s482, %s484
      %p488 = scmp.eq.s32.totalorder %s39, 0
      %p489 = por %p487, %p488
      %p490 = scmp.ne.s32.totalorder %s482, %s484
      %p491 = scmp.eq.s32.totalorder %s44, 1
      %p492 = por %p490, %p491
      %p493 = scmp.ne.s32.totalorder %s484, %s485
      %p494 = scmp.eq.s32.totalorder %s44, 0
      %p495 = por %p493, %p494
      %p496 = scmp.ne.s32.totalorder %s484, %s485
      %p497 = scmp.eq.s32.totalorder %s45, 1
      %p498 = por %p496, %p497
      %p500 = scmp.ne.s32.totalorder %s485, %s499
      %p501 = scmp.eq.s32.totalorder %s45, 0
      %p502 = por %p500, %p501
      %s503 = ssub.s32 %s39, %s46
      %p504 = scmp.eq.s32.totalorder %s503, 0
      %s506 = sadd.s32 %s505, 1
      %s507 = scalar_select %p504, %s505, %s506
      %p510 = pneg %p504
      %p511 = scmp.eq.s32.totalorder %s39, 1
      %p512 = por %p510, %p511
      %p513 = scmp.ne.s32.totalorder %s505, %s508
      %p514 = scmp.eq.s32.totalorder %s39, 0
      %p515 = por %p513, %p514
      %p516 = scmp.ne.s32.totalorder %s505, %s508
      %p517 = scmp.eq.s32.totalorder %s44, 1
      %p518 = por %p516, %p517
      %p519 = scmp.ne.s32.totalorder %s508, %s509
      %p520 = scmp.eq.s32.totalorder %s44, 0
      %p521 = por %p519, %p520
      %p522 = scmp.ne.s32.totalorder %s508, %s509
      %p523 = scmp.eq.s32.totalorder %s45, 1
      %p524 = por %p522, %p523
      %p526 = scmp.ne.s32.totalorder %s509, %s525
      %p527 = scmp.eq.s32.totalorder %s45, 0
      %p528 = por %p526, %p527
      %s529 = ssub.s32 %s39, %s46
      %p530 = scmp.eq.s32.totalorder %s529, 0
      %s532 = sadd.s32 %s531, 1
      %s533 = scalar_select %p530, %s531, %s532
      %p536 = pneg %p530
      %p537 = scmp.eq.s32.totalorder %s39, 1
      %p538 = por %p536, %p537
      %p539 = scmp.ne.s32.totalorder %s531, %s534
      %p540 = scmp.eq.s32.totalorder %s39, 0
      %p541 = por %p539, %p540
      %p542 = scmp.ne.s32.totalorder %s531, %s534
      %p543 = scmp.eq.s32.totalorder %s44, 1
      %p544 = por %p542, %p543
      %p545 = scmp.ne.s32.totalorder %s534, %s535
      %p546 = scmp.eq.s32.totalorder %s44, 0
      %p547 = por %p545, %p546
      %p548 = scmp.ne.s32.totalorder %s534, %s535
      %p549 = scmp.eq.s32.totalorder %s45, 1
      %p550 = por %p548, %p549
      %p552 = scmp.ne.s32.totalorder %s535, %s551
      %p553 = scmp.eq.s32.totalorder %s45, 0
      %p554 = por %p552, %p553
      %p555 = scmp.le.s32.totalorder 1, %s39
      %p556 = scmp.lt.s32.totalorder %s39, 3
      %p557 = pnand %p555, %p556
      %p558 = pneg %p557
      // Predicated region
      $region9: #{tpu_custom_call.1} parent=5 // pred_check
        _
      $region10: #{tpu_custom_call.1} parent=5 // pred_check_branch
        %560 = sbr.rel (%p557) target = $region12
      $region11: #{tpu_custom_call.1} parent=5 // pred_region
        %s561 = ssub.s32 %s39, 1
        // Predicated region
        $region13: #{tpu_custom_call.1} parent=11 // pred_check
          %p562 = pneg %p138
        $region14: #{tpu_custom_call.1} parent=11 // pred_check_branch
          %564 = sbr.rel (%p562) target = $region16
        $region15: #{tpu_custom_call.1} parent=11 // pred_region
          _
        $region16: #{tpu_custom_call.1} parent=11 // pred_fallthru
          _
        // Predicated region
        $region17: #{tpu_custom_call.1} parent=11 // pred_check
          %p565 = pneg %p159
        $region18: #{tpu_custom_call.1} parent=11 // pred_check_branch
          %567 = sbr.rel (%p565) target = $region20
        $region19: #{tpu_custom_call.1} parent=11 // pred_region
          _
        $region20: #{tpu_custom_call.1} parent=11 // pred_fallthru
          _
        // Predicated region
        $region21: #{tpu_custom_call.1} parent=11 // pred_check
          %p568 = pneg %p180
        $region22: #{tpu_custom_call.1} parent=11 // pred_check_branch
          %570 = sbr.rel (%p568) target = $region24
        $region23: #{tpu_custom_call.1} parent=11 // pred_region
          %s572 = ssub.s32 1024, 1024
          %573 = vsyncadd [#allocation7], %s572
          %s574 = sshll.u32 [#allocation6], 4
          %s575 = int_to_ptr.vmem [resolvable:$true] %s574
          %580 = dma.hbm_to_vmem [thread:$0]  %s5, 1024, %s575, [#allocation7], 64, 64, 4
        $region24: #{tpu_custom_call.1} parent=11 // pred_fallthru
          _
        // Predicated region
        $region25: #{tpu_custom_call.1} parent=11 // pred_check
          %p581 = pneg %p201
        $region26: #{tpu_custom_call.1} parent=11 // pred_check_branch
          %583 = sbr.rel (%p581) target = $region28
        $region27: #{tpu_custom_call.1} parent=11 // pred_region
          _
        $region28: #{tpu_custom_call.1} parent=11 // pred_fallthru
          _
        // Predicated region
        $region29: #{tpu_custom_call.1} parent=11 // pred_check
          %p584 = pneg %p222
        $region30: #{tpu_custom_call.1} parent=11 // pred_check_branch
          %586 = sbr.rel (%p584) target = $region32
        $region31: #{tpu_custom_call.1} parent=11 // pred_region
          _
        $region32: #{tpu_custom_call.1} parent=11 // pred_fallthru
          _
        // Predicated region
        $region33: #{tpu_custom_call.1} parent=11 // pred_check
          %p587 = pneg %p243
        $region34: #{tpu_custom_call.1} parent=11 // pred_check_branch
          %589 = sbr.rel (%p587) target = $region36
        $region35: #{tpu_custom_call.1} parent=11 // pred_region
          _
        $region36: #{tpu_custom_call.1} parent=11 // pred_fallthru
          _
        // Predicated region
        $region37: #{tpu_custom_call.1} parent=11 // pred_check
          %p590 = pneg %p264
        $region38: #{tpu_custom_call.1} parent=11 // pred_check_branch
          %592 = sbr.rel (%p590) target = $region40
        $region39: #{tpu_custom_call.1} parent=11 // pred_region
          %s594 = ssub.s32 1024, 1024
          %595 = vsyncadd [#allocation7], %s594
          %s596 = sshll.u32 [#allocation8], 4
          %s597 = int_to_ptr.vmem [resolvable:$true] %s596
          %602 = dma.hbm_to_vmem [thread:$0]  %s9, 1024, %s597, [#allocation7], 64, 64, 4
        $region40: #{tpu_custom_call.1} parent=11 // pred_fallthru
          _
        // Predicated region
        $region41: #{tpu_custom_call.1} parent=11 // pred_check
          %p603 = pneg %p285
        $region42: #{tpu_custom_call.1} parent=11 // pred_check_branch
          %605 = sbr.rel (%p603) target = $region44
        $region43: #{tpu_custom_call.1} parent=11 // pred_region
          _
        $region44: #{tpu_custom_call.1} parent=11 // pred_fallthru
          _
        // Predicated region
        $region45: #{tpu_custom_call.1} parent=11 // pred_check
          %p606 = pneg %p306
        $region46: #{tpu_custom_call.1} parent=11 // pred_check_branch
          %608 = sbr.rel (%p606) target = $region48
        $region47: #{tpu_custom_call.1} parent=11 // pred_region
          _
        $region48: #{tpu_custom_call.1} parent=11 // pred_fallthru
          _
        // Predicated region
        $region49: #{tpu_custom_call.1} parent=11 // pred_check
          %p609 = pneg %p327
        $region50: #{tpu_custom_call.1} parent=11 // pred_check_branch
          %611 = sbr.rel (%p609) target = $region52
        $region51: #{tpu_custom_call.1} parent=11 // pred_region
          _
        $region52: #{tpu_custom_call.1} parent=11 // pred_fallthru
          _
        // Predicated region
        $region53: #{tpu_custom_call.1} parent=11 // pred_check
          %p612 = pneg %p348
        $region54: #{tpu_custom_call.1} parent=11 // pred_check_branch
          %614 = sbr.rel (%p612) target = $region56
        $region55: #{tpu_custom_call.1} parent=11 // pred_region
          %s616 = ssub.s32 3072, 3072
          %617 = vsyncadd [#allocation10], %s616
          %s618 = sshll.u32 [#allocation9], 4
          %s619 = int_to_ptr.vmem [resolvable:$true] %s618
          %624 = dma.hbm_to_vmem [thread:$0]  %s13, 3072, %s619, [#allocation10], 192, 192, 12
        $region56: #{tpu_custom_call.1} parent=11 // pred_fallthru
          _
        // Predicated region
        $region57: #{tpu_custom_call.1} parent=11 // pred_check
          %p625 = pneg %p369
        $region58: #{tpu_custom_call.1} parent=11 // pred_check_branch
          %627 = sbr.rel (%p625) target = $region60
        $region59: #{tpu_custom_call.1} parent=11 // pred_region
          _
        $region60: #{tpu_custom_call.1} parent=11 // pred_fallthru
          _
        // Predicated region
        $region61: #{tpu_custom_call.1} parent=11 // pred_check
          %p628 = pneg %p390
        $region62: #{tpu_custom_call.1} parent=11 // pred_check_branch
          %630 = sbr.rel (%p628) target = $region64
        $region63: #{tpu_custom_call.1} parent=11 // pred_region
          %s632 = ssub.s32 3072, 3072
          %633 = vsyncadd [#allocation10], %s632
          %s634 = sshll.u32 [#allocation11], 4
          %s635 = int_to_ptr.vmem [resolvable:$true] %s634
          %640 = dma.hbm_to_vmem [thread:$0]  %s15, 3072, %s635, [#allocation10], 192, 192, 12
        $region64: #{tpu_custom_call.1} parent=11 // pred_fallthru
          _
        // Predicated region
        $region65: #{tpu_custom_call.1} parent=11 // pred_check
          %p641 = pneg %p411
        $region66: #{tpu_custom_call.1} parent=11 // pred_check_branch
          %643 = sbr.rel (%p641) target = $region68
        $region67: #{tpu_custom_call.1} parent=11 // pred_region
          _
        $region68: #{tpu_custom_call.1} parent=11 // pred_fallthru
          _
        // Predicated region
        $region69: #{tpu_custom_call.1} parent=11 // pred_check
          %p644 = pneg %p432
        $region70: #{tpu_custom_call.1} parent=11 // pred_check_branch
          %646 = sbr.rel (%p644) target = $region72
        $region71: #{tpu_custom_call.1} parent=11 // pred_region
          _
        $region72: #{tpu_custom_call.1} parent=11 // pred_fallthru
          _
        // Predicated region
        $region73: #{tpu_custom_call.1} parent=11 // pred_check
          %p647 = pneg %p453
        $region74: #{tpu_custom_call.1} parent=11 // pred_check_branch
          %649 = sbr.rel (%p647) target = $region76
        $region75: #{tpu_custom_call.1} parent=11 // pred_region
          _
        $region76: #{tpu_custom_call.1} parent=11 // pred_fallthru
          _
        // Predicated region
        $region77: #{tpu_custom_call.1} parent=11 // pred_check
          %p650 = pneg %p474
        $region78: #{tpu_custom_call.1} parent=11 // pred_check_branch
          %652 = sbr.rel (%p650) target = $region80
        $region79: #{tpu_custom_call.1} parent=11 // pred_region
          _
        $region80: #{tpu_custom_call.1} parent=11 // pred_fallthru
          _
        // Predicated region
        $region81: #{tpu_custom_call.1} parent=11 // pred_check
          %p653 = pneg %p495
        $region82: #{tpu_custom_call.1} parent=11 // pred_check_branch
          %655 = sbr.rel (%p653) target = $region84
        $region83: #{tpu_custom_call.1} parent=11 // pred_region
          _
        $region84: #{tpu_custom_call.1} parent=11 // pred_fallthru
          _
      $region12: #{tpu_custom_call.1} parent=5 // pred_fallthru
        _
      %p656 = scmp.lt.s32.totalorder %s39, 2
      // Predicated region
      $region85: #{tpu_custom_call.1} parent=5 // pred_check
        %p657 = pneg %p656
      $region86: #{tpu_custom_call.1} parent=5 // pred_check_branch
        %659 = sbr.rel (%p657) target = $region88
      $region87: #{tpu_custom_call.1} parent=5 // pred_region
        // Predicated region
        $region89: #{tpu_custom_call.1} parent=87 // pred_check
          %p660 = pneg %p59
        $region90: #{tpu_custom_call.1} parent=87 // pred_check_branch
          %662 = sbr.rel (%p660) target = $region92
        $region91: #{tpu_custom_call.1} parent=87 // pred_region
          %s663 = smul.u32 16, %s39
          %p664 = scmp.lt.s32.totalorder %s663, 31
          %s665 = scalar_select %p664, %s663, 31
          %s666 = smul.addr %s665, 8
          %s667 = scalar_lea.vmem %s0, %s666
          %s668 = smul.u32 16, %s39
        $region92: #{tpu_custom_call.1} parent=87 // pred_fallthru
          _
        // Predicated region
        $region93: #{tpu_custom_call.1} parent=87 // pred_check
          %p669 = pneg %p85
        $region94: #{tpu_custom_call.1} parent=87 // pred_check_branch
          %671 = sbr.rel (%p669) target = $region96
        $region95: #{tpu_custom_call.1} parent=87 // pred_region
          %s672 = sand.u32 %s75, 1
          %s673 = scalar_lea.sflag [#allocation4], %s672
          %s674 = sand.u32 %s75, 1
          %s675 = smul.addr %s674, 128
          %s676 = scalar_lea.vmem [#allocation3], %s675
          %s677 = smul.u32 16, %s39
          %s679 = ssub.s32 2048, 2048
          %680 = vsyncadd %s673, %s679
          %s681 = smul.addr %s677, 128
          %s682 = scalar_lea.hbm %s1, %s681
          %s683 = sshll.u32 %s676, 4
          %s684 = int_to_ptr.vmem [resolvable:$true] %s683
          %689 = dma.hbm_to_vmem [thread:$0]  %s682, 2048, %s684, %s673, 128, 128, 8
        $region96: #{tpu_custom_call.1} parent=87 // pred_fallthru
          _
        // Predicated region
        $region97: #{tpu_custom_call.1} parent=87 // pred_check
          %p690 = pneg %p111
        $region98: #{tpu_custom_call.1} parent=87 // pred_check_branch
          %692 = sbr.rel (%p690) target = $region100
        $region99: #{tpu_custom_call.1} parent=87 // pred_region
          %s693 = smul.u32 16, %s39
          %p694 = scmp.lt.s32.totalorder %s693, 31
          %s695 = scalar_select %p694, %s693, 31
          %s696 = smul.addr %s695, 8
          %s697 = scalar_lea.vmem %s2, %s696
          %s698 = smul.u32 16, %s39
        $region100: #{tpu_custom_call.1} parent=87 // pred_fallthru
          _
      $region88: #{tpu_custom_call.1} parent=5 // pred_fallthru
        _
      %p699 = scmp.le.s32.totalorder 1, %s39
      %p700 = scmp.lt.s32.totalorder %s39, 3
      %p701 = pnand %p699, %p700
      %p702 = pneg %p701
      // Predicated region
      $region101: #{tpu_custom_call.1} parent=5 // pred_check
        _
      $region102: #{tpu_custom_call.1} parent=5 // pred_check_branch
        %704 = sbr.rel (%p701) target = $region104
      $region103: #{tpu_custom_call.1} parent=5 // pred_region
        %s705 = ssub.s32 %s39, 1
        %s706 = sand.u32 %s78, 1
        %s707 = scalar_lea.sflag [#allocation4], %s706
        %s708 = sand.u32 %s78, 1
        %s709 = smul.addr %s708, 128
        %s710 = scalar_lea.vmem [#allocation3], %s709
        // Predicated region
        $region105: #{tpu_custom_call.1} parent=103 // pred_check
          %p711 = pneg %p91
        $region106: #{tpu_custom_call.1} parent=103 // pred_check_branch
          %713 = sbr.rel (%p711) target = $region108
        $region107: #{tpu_custom_call.1} parent=103 // pred_region
          %714 = dma.done %s707, 2048
        $region108: #{tpu_custom_call.1} parent=103 // pred_fallthru
          _
        // Predicated region
        $region109: #{tpu_custom_call.1} parent=103 // pred_check
          %p715 = pneg %p180
        $region110: #{tpu_custom_call.1} parent=103 // pred_check_branch
          %717 = sbr.rel (%p715) target = $region112
        $region111: #{tpu_custom_call.1} parent=103 // pred_region
          %718 = dma.done [#allocation7], 1024
        $region112: #{tpu_custom_call.1} parent=103 // pred_fallthru
          _
        // Predicated region
        $region113: #{tpu_custom_call.1} parent=103 // pred_check
          %p719 = pneg %p264
        $region114: #{tpu_custom_call.1} parent=103 // pred_check_branch
          %721 = sbr.rel (%p719) target = $region116
        $region115: #{tpu_custom_call.1} parent=103 // pred_region
          %722 = dma.done [#allocation7], 1024
        $region116: #{tpu_custom_call.1} parent=103 // pred_fallthru
          _
        // Predicated region
        $region117: #{tpu_custom_call.1} parent=103 // pred_check
          %p723 = pneg %p348
        $region118: #{tpu_custom_call.1} parent=103 // pred_check_branch
          %725 = sbr.rel (%p723) target = $region120
        $region119: #{tpu_custom_call.1} parent=103 // pred_region
          %726 = dma.done [#allocation10], 3072
        $region120: #{tpu_custom_call.1} parent=103 // pred_fallthru
          _
        // Predicated region
        $region121: #{tpu_custom_call.1} parent=103 // pred_check
          %p727 = pneg %p390
        $region122: #{tpu_custom_call.1} parent=103 // pred_check_branch
          %729 = sbr.rel (%p727) target = $region124
        $region123: #{tpu_custom_call.1} parent=103 // pred_region
          %730 = dma.done [#allocation10], 3072
        $region124: #{tpu_custom_call.1} parent=103 // pred_fallthru
          _
        %s731 = smul.u32 16, %s44
        %p732 = scmp.lt.s32.totalorder %s731, 31
        %s733 = scalar_select %p732, %s731, 31
        %s734 = smul.addr %s733, 8
        %s735 = scalar_lea.vmem %s0, %s734
        %p736 = pneg %p65
        %p737 = pneg %p62
        %s738 = sand.u32 %s78, 1
        %s739 = scalar_lea.sflag [#allocation4], %s738
        %s740 = sand.u32 %s78, 1
        %s741 = smul.addr %s740, 128
        %s742 = scalar_lea.vmem [#allocation3], %s741
        %p743 = pneg %p91
        %p744 = pneg %p88
        %s745 = smul.u32 16, %s44
        %p746 = scmp.lt.s32.totalorder %s745, 31
        %s747 = scalar_select %p746, %s745, 31
        %s748 = smul.addr %s747, 8
        %s749 = scalar_lea.vmem %s2, %s748
        %p750 = pneg %p117
        %p751 = pneg %p114
        %p752 = pneg %p138
        %p753 = pneg %p135
        %p754 = pneg %p159
        %p755 = pneg %p156
        %p756 = pneg %p180
        %p757 = pneg %p177
        %p758 = pneg %p201
        %p759 = pneg %p198
        %p760 = pneg %p222
        %p761 = pneg %p219
        %p762 = pneg %p243
        %p763 = pneg %p240
        %p764 = pneg %p264
        %p765 = pneg %p261
        %p766 = pneg %p285
        %p767 = pneg %p282
        %p768 = pneg %p306
        %p769 = pneg %p303
        %p770 = pneg %p327
        %p771 = pneg %p324
        %p772 = pneg %p348
        %p773 = pneg %p345
        %p774 = pneg %p369
        %p775 = pneg %p366
        %p776 = pneg %p390
        %p777 = pneg %p387
        %p778 = pneg %p411
        %p779 = pneg %p408
        %p780 = pneg %p432
        %p781 = pneg %p429
        %p782 = pneg %p453
        %p783 = pneg %p450
        %p784 = pneg %p474
        %p785 = pneg %p471
        %p786 = pneg %p495
        %p787 = pneg %p492
        %p788 = pneg %p521
        %p789 = pneg %p518
        %s790 = smul.u32 16, %s44
        %p791 = scmp.lt.s32.totalorder %s790, 31
        %s792 = scalar_select %p791, %s790, 31
        %s793 = smul.addr %s792, 8
        %s794 = scalar_lea.vmem %s21, %s793
        %p795 = pneg %p547
        %p796 = pneg %p544
        %s797 = sand.u32 %s534, 1
        %s798 = scalar_lea.sflag [#allocation5], %s797
        %s799 = sand.u32 %s534, 1
        %s800 = smul.addr %s799, 128
        %s801 = scalar_lea.vmem [#allocation12], %s800
        %s802 = smul.u32 16, %s44
        %p803 = scmp.lt.s32.totalorder %s802, 31
        %s804 = scalar_select %p803, %s802, 31
        %s805 = smul.addr %s804, 8
        %s806 = scalar_lea.vmem %s0, %s805
        %s807 = smul.u32 16, %s44
        %s808 = smul.u32 16, %s44
        %s809 = smul.u32 16, %s44
        %p810 = scmp.lt.s32.totalorder %s809, 31
        %s811 = scalar_select %p810, %s809, 31
        %s812 = smul.addr %s811, 8
        %s813 = scalar_lea.vmem %s2, %s812
        %s814 = smul.u32 16, %s44
        %s815 = smul.u32 16, %s44
        %p816 = scmp.lt.s32.totalorder %s815, 31
        %s817 = scalar_select %p816, %s815, 31
        %s818 = smul.addr %s817, 8
        %s819 = scalar_lea.vmem %s21, %s818
        %s820 = smul.u32 16, %s44
        %s821 = smul.u32 16, %s44
        %v823 = vld [vmem:[%s806] sm:$0xff]
        %v824 = vld [vmem:[%s806 + $0x8] sm:$0xff]
        %v825 = vld [vmem:[%s806 + $0x10] sm:$0xff]
        %v826 = vld [vmem:[%s806 + $0x18] sm:$0xff]
        %v827 = vld [vmem:[%s806 + $0x20] sm:$0xff]
        %v828 = vld [vmem:[%s806 + $0x28] sm:$0xff]
        %v829 = vld [vmem:[%s806 + $0x30] sm:$0xff]
        %v830 = vld [vmem:[%s806 + $0x38] sm:$0xff]
        %v831 = vld [vmem:[%s806 + $0x40] sm:$0xff]
        %v832 = vld [vmem:[%s806 + $0x48] sm:$0xff]
        %v833 = vld [vmem:[%s806 + $0x50] sm:$0xff]
        %v834 = vld [vmem:[%s806 + $0x58] sm:$0xff]
        %v835 = vld [vmem:[%s806 + $0x60] sm:$0xff]
        %v836 = vld [vmem:[%s806 + $0x68] sm:$0xff]
        %v837 = vld [vmem:[%s806 + $0x70] sm:$0xff]
        %v838 = vld [vmem:[%s806 + $0x78] sm:$0xff]
        %v839 = vld [vmem:[%s3] sm:$0x1]
        %v840 = vld [vmem:[%s4] sm:$0x1]
        %841 = vadd.xlane.f32.xlu0 %v823
        %v842 = vpop.xlane.xlu0 %841
        %843 = vadd.xlane.f32.xlu0 %v824
        %v844 = vpop.xlane.xlu0 %843
        %845 = vadd.xlane.f32.xlu0 %v825
        %v846 = vpop.xlane.xlu0 %845
        %847 = vadd.xlane.f32.xlu0 %v826
        %v848 = vpop.xlane.xlu0 %847
        %849 = vadd.xlane.f32.xlu0 %v827
        %v850 = vpop.xlane.xlu0 %849
        %851 = vadd.xlane.f32.xlu0 %v828
        %v852 = vpop.xlane.xlu0 %851
        %853 = vadd.xlane.f32.xlu0 %v829
        %v854 = vpop.xlane.xlu0 %853
        %855 = vadd.xlane.f32.xlu0 %v830
        %v856 = vpop.xlane.xlu0 %855
        %857 = vadd.xlane.f32.xlu0 %v831
        %v858 = vpop.xlane.xlu0 %857
        %859 = vadd.xlane.f32.xlu0 %v832
        %v860 = vpop.xlane.xlu0 %859
        %861 = vadd.xlane.f32.xlu0 %v833
        %v862 = vpop.xlane.xlu0 %861
        %863 = vadd.xlane.f32.xlu0 %v834
        %v864 = vpop.xlane.xlu0 %863
        %865 = vadd.xlane.f32.xlu0 %v835
        %v866 = vpop.xlane.xlu0 %865
        %867 = vadd.xlane.f32.xlu0 %v836
        %v868 = vpop.xlane.xlu0 %867
        %869 = vadd.xlane.f32.xlu0 %v837
        %v870 = vpop.xlane.xlu0 %869
        %871 = vadd.xlane.f32.xlu0 %v838
        %v872 = vpop.xlane.xlu0 %871
        %v873 = vmul.f32 %v823, %v823
        %v874 = vmul.f32 %v824, %v824
        %v875 = vmul.f32 %v825, %v825
        %v876 = vmul.f32 %v826, %v826
        %v877 = vmul.f32 %v827, %v827
        %v878 = vmul.f32 %v828, %v828
        %v879 = vmul.f32 %v829, %v829
        %v880 = vmul.f32 %v830, %v830
        %v881 = vmul.f32 %v831, %v831
        %v882 = vmul.f32 %v832, %v832
        %v883 = vmul.f32 %v833, %v833
        %v884 = vmul.f32 %v834, %v834
        %v885 = vmul.f32 %v835, %v835
        %v886 = vmul.f32 %v836, %v836
        %v887 = vmul.f32 %v837, %v837
        %v888 = vmul.f32 %v838, %v838
        %889 = vadd.xlane.f32.xlu0 %v873
        %v890 = vpop.xlane.xlu0 %889
        %891 = vadd.xlane.f32.xlu0 %v874
        %v892 = vpop.xlane.xlu0 %891
        %893 = vadd.xlane.f32.xlu0 %v875
        %v894 = vpop.xlane.xlu0 %893
        %895 = vadd.xlane.f32.xlu0 %v876
        %v896 = vpop.xlane.xlu0 %895
        %897 = vadd.xlane.f32.xlu0 %v877
        %v898 = vpop.xlane.xlu0 %897
        %899 = vadd.xlane.f32.xlu0 %v878
        %v900 = vpop.xlane.xlu0 %899
        %901 = vadd.xlane.f32.xlu0 %v879
        %v902 = vpop.xlane.xlu0 %901
        %903 = vadd.xlane.f32.xlu0 %v880
        %v904 = vpop.xlane.xlu0 %903
        %905 = vadd.xlane.f32.xlu0 %v881
        %v906 = vpop.xlane.xlu0 %905
        %907 = vadd.xlane.f32.xlu0 %v882
        %v908 = vpop.xlane.xlu0 %907
        %909 = vadd.xlane.f32.xlu0 %v883
        %v910 = vpop.xlane.xlu0 %909
        %911 = vadd.xlane.f32.xlu0 %v884
        %v912 = vpop.xlane.xlu0 %911
        %913 = vadd.xlane.f32.xlu0 %v885
        %v914 = vpop.xlane.xlu0 %913
        %915 = vadd.xlane.f32.xlu0 %v886
        %v916 = vpop.xlane.xlu0 %915
        %917 = vadd.xlane.f32.xlu0 %v887
        %v918 = vpop.xlane.xlu0 %917
        %919 = vadd.xlane.f32.xlu0 %v888
        %v920 = vpop.xlane.xlu0 %919
        %v921 = vmul.f32 %v842, 0.018518519
        %v922 = vmul.f32 %v844, 0.018518519
        %v923 = vmul.f32 %v846, 0.018518519
        %v924 = vmul.f32 %v848, 0.018518519
        %v925 = vmul.f32 %v850, 0.018518519
        %v926 = vmul.f32 %v852, 0.018518519
        %v927 = vmul.f32 %v854, 0.018518519
        %v928 = vmul.f32 %v856, 0.018518519
        %v929 = vmul.f32 %v858, 0.018518519
        %v930 = vmul.f32 %v860, 0.018518519
        %v931 = vmul.f32 %v862, 0.018518519
        %v932 = vmul.f32 %v864, 0.018518519
        %v933 = vmul.f32 %v866, 0.018518519
        %v934 = vmul.f32 %v868, 0.018518519
        %v935 = vmul.f32 %v870, 0.018518519
        %v936 = vmul.f32 %v872, 0.018518519
        %v937 = vmul.f32 %v890, 0.018518519
        %v938 = vmul.f32 %v892, 0.018518519
        %v939 = vmul.f32 %v894, 0.018518519
        %v940 = vmul.f32 %v896, 0.018518519
        %v941 = vmul.f32 %v898, 0.018518519
        %v942 = vmul.f32 %v900, 0.018518519
        %v943 = vmul.f32 %v902, 0.018518519
        %v944 = vmul.f32 %v904, 0.018518519
        %v945 = vmul.f32 %v906, 0.018518519
        %v946 = vmul.f32 %v908, 0.018518519
        %v947 = vmul.f32 %v910, 0.018518519
        %v948 = vmul.f32 %v912, 0.018518519
        %v949 = vmul.f32 %v914, 0.018518519
        %v950 = vmul.f32 %v916, 0.018518519
        %v951 = vmul.f32 %v918, 0.018518519
        %v952 = vmul.f32 %v920, 0.018518519
        %v953 = vmul.f32 %v921, %v921
        %v954 = vmul.f32 %v922, %v922
        %v955 = vmul.f32 %v923, %v923
        %v956 = vmul.f32 %v924, %v924
        %v957 = vmul.f32 %v925, %v925
        %v958 = vmul.f32 %v926, %v926
        %v959 = vmul.f32 %v927, %v927
        %v960 = vmul.f32 %v928, %v928
        %v961 = vmul.f32 %v929, %v929
        %v962 = vmul.f32 %v930, %v930
        %v963 = vmul.f32 %v931, %v931
        %v964 = vmul.f32 %v932, %v932
        %v965 = vmul.f32 %v933, %v933
        %v966 = vmul.f32 %v934, %v934
        %v967 = vmul.f32 %v935, %v935
        %v968 = vmul.f32 %v936, %v936
        %v969 = vsub.f32 %v937, %v953
        %v970 = vsub.f32 %v938, %v954
        %v971 = vsub.f32 %v939, %v955
        %v972 = vsub.f32 %v940, %v956
        %v973 = vsub.f32 %v941, %v957
        %v974 = vsub.f32 %v942, %v958
        %v975 = vsub.f32 %v943, %v959
        %v976 = vsub.f32 %v944, %v960
        %v977 = vsub.f32 %v945, %v961
        %v978 = vsub.f32 %v946, %v962
        %v979 = vsub.f32 %v947, %v963
        %v980 = vsub.f32 %v948, %v964
        %v981 = vsub.f32 %v949, %v965
        %v982 = vsub.f32 %v950, %v966
        %v983 = vsub.f32 %v951, %v967
        %v984 = vsub.f32 %v952, %v968
        %v985 = vmax.f32 %v969, 0.0
        %v986 = vmax.f32 %v970, 0.0
        %v987 = vmax.f32 %v971, 0.0
        %v988 = vmax.f32 %v972, 0.0
        %v989 = vmax.f32 %v973, 0.0
        %v990 = vmax.f32 %v974, 0.0
        %v991 = vmax.f32 %v975, 0.0
        %v992 = vmax.f32 %v976, 0.0
        %v993 = vmax.f32 %v977, 0.0
        %v994 = vmax.f32 %v978, 0.0
        %v995 = vmax.f32 %v979, 0.0
        %v996 = vmax.f32 %v980, 0.0
        %v997 = vmax.f32 %v981, 0.0
        %v998 = vmax.f32 %v982, 0.0
        %v999 = vmax.f32 %v983, 0.0
        %v1000 = vmax.f32 %v984, 0.0
        %v1001 = vsub.f32 %v823, %v921
        %v1002 = vsub.f32 %v824, %v922
        %v1003 = vsub.f32 %v825, %v923
        %v1004 = vsub.f32 %v826, %v924
        %v1005 = vsub.f32 %v827, %v925
        %v1006 = vsub.f32 %v828, %v926
        %v1007 = vsub.f32 %v829, %v927
        %v1008 = vsub.f32 %v830, %v928
        %v1009 = vsub.f32 %v831, %v929
        %v1010 = vsub.f32 %v832, %v930
        %v1011 = vsub.f32 %v833, %v931
        %v1012 = vsub.f32 %v834, %v932
        %v1013 = vsub.f32 %v835, %v933
        %v1014 = vsub.f32 %v836, %v934
        %v1015 = vsub.f32 %v837, %v935
        %v1016 = vsub.f32 %v838, %v936
        %v1017 = vadd.f32 %v985, 1e-05
        %v1018 = vadd.f32 %v986, 1e-05
        %v1019 = vadd.f32 %v987, 1e-05
        %v1020 = vadd.f32 %v988, 1e-05
        %v1021 = vadd.f32 %v989, 1e-05
        %v1022 = vadd.f32 %v990, 1e-05
        %v1023 = vadd.f32 %v991, 1e-05
        %v1024 = vadd.f32 %v992, 1e-05
        %v1025 = vadd.f32 %v993, 1e-05
        %v1026 = vadd.f32 %v994, 1e-05
        %v1027 = vadd.f32 %v995, 1e-05
        %v1028 = vadd.f32 %v996, 1e-05
        %v1029 = vadd.f32 %v997, 1e-05
        %v1030 = vadd.f32 %v998, 1e-05
        %v1031 = vadd.f32 %v999, 1e-05
        %v1032 = vadd.f32 %v1000, 1e-05
        %v1033 = vrsqrt.pop %v1017
        %v1034 = vrsqrt.pop %v1018
        %v1035 = vrsqrt.pop %v1019
        %v1036 = vrsqrt.pop %v1020
        %v1037 = vrsqrt.pop %v1021
        %v1038 = vrsqrt.pop %v1022
        %v1039 = vrsqrt.pop %v1023
        %v1040 = vrsqrt.pop %v1024
        %v1041 = vrsqrt.pop %v1025
        %v1042 = vrsqrt.pop %v1026
        %v1043 = vrsqrt.pop %v1027
        %v1044 = vrsqrt.pop %v1028
        %v1045 = vrsqrt.pop %v1029
        %v1046 = vrsqrt.pop %v1030
        %v1047 = vrsqrt.pop %v1031
        %v1048 = vrsqrt.pop %v1032
        %v1049 = vmul.f32 %v1001, %v1033
        %v1050 = vmul.f32 %v1002, %v1034
        %v1051 = vmul.f32 %v1003, %v1035
        %v1052 = vmul.f32 %v1004, %v1036
        %v1053 = vmul.f32 %v1005, %v1037
        %v1054 = vmul.f32 %v1006, %v1038
        %v1055 = vmul.f32 %v1007, %v1039
        %v1056 = vmul.f32 %v1008, %v1040
        %v1057 = vmul.f32 %v1009, %v1041
        %v1058 = vmul.f32 %v1010, %v1042
        %v1059 = vmul.f32 %v1011, %v1043
        %v1060 = vmul.f32 %v1012, %v1044
        %v1061 = vmul.f32 %v1013, %v1045
        %v1062 = vmul.f32 %v1014, %v1046
        %v1063 = vmul.f32 %v1015, %v1047
        %v1064 = vmul.f32 %v1016, %v1048
        %v1066 = vlaneseq
        %v1067 = vshrl.u32 %v1066, 7
        %v1068 = vsub.s32 0, %v1067
        %v1069 = vrot.slane %v839, %v1068
        %v1071 = vmul.f32 %v1049, %v1069
        %v1072 = vmul.f32 %v1050, %v1069
        %v1073 = vmul.f32 %v1051, %v1069
        %v1074 = vmul.f32 %v1052, %v1069
        %v1075 = vmul.f32 %v1053, %v1069
        %v1076 = vmul.f32 %v1054, %v1069
        %v1077 = vmul.f32 %v1055, %v1069
        %v1078 = vmul.f32 %v1056, %v1069
        %v1079 = vmul.f32 %v1057, %v1069
        %v1080 = vmul.f32 %v1058, %v1069
        %v1081 = vmul.f32 %v1059, %v1069
        %v1082 = vmul.f32 %v1060, %v1069
        %v1083 = vmul.f32 %v1061, %v1069
        %v1084 = vmul.f32 %v1062, %v1069
        %v1085 = vmul.f32 %v1063, %v1069
        %v1086 = vmul.f32 %v1064, %v1069
        %v1088 = vlaneseq
        %v1089 = vshrl.u32 %v1088, 7
        %v1090 = vsub.s32 0, %v1089
        %v1091 = vrot.slane %v840, %v1090
        %v1093 = vadd.f32 %v1071, %v1091
        %v1094 = vadd.f32 %v1072, %v1091
        %v1095 = vadd.f32 %v1073, %v1091
        %v1096 = vadd.f32 %v1074, %v1091
        %v1097 = vadd.f32 %v1075, %v1091
        %v1098 = vadd.f32 %v1076, %v1091
        %v1099 = vadd.f32 %v1077, %v1091
        %v1100 = vadd.f32 %v1078, %v1091
        %v1101 = vadd.f32 %v1079, %v1091
        %v1102 = vadd.f32 %v1080, %v1091
        %v1103 = vadd.f32 %v1081, %v1091
        %v1104 = vadd.f32 %v1082, %v1091
        %v1105 = vadd.f32 %v1083, %v1091
        %v1106 = vadd.f32 %v1084, %v1091
        %v1107 = vadd.f32 %v1085, %v1091
        %v1108 = vadd.f32 %v1086, %v1091
        %v1109 = vld [vmem:[#allocation6] sm:$0xf]
        %v1110 = vld [vmem:[#allocation6 + $0x4] sm:$0xf]
        %v1111 = vld [vmem:[#allocation6 + $0x8] sm:$0xf]
        %v1112 = vld [vmem:[#allocation6 + $0xc] sm:$0xf]
        %v1113 = vld [vmem:[#allocation6 + $0x10] sm:$0xf]
        %v1114 = vld [vmem:[#allocation6 + $0x14] sm:$0xf]
        %v1115 = vld [vmem:[#allocation6 + $0x18] sm:$0xf]
        %v1116 = vld [vmem:[#allocation6 + $0x1c] sm:$0xf]
        %v1117 = vld [vmem:[#allocation6 + $0x20] sm:$0xf]
        %v1118 = vld [vmem:[#allocation6 + $0x24] sm:$0xf]
        %v1119 = vld [vmem:[#allocation6 + $0x28] sm:$0xf]
        %v1120 = vld [vmem:[#allocation6 + $0x2c] sm:$0xf]
        %v1121 = vld [vmem:[#allocation6 + $0x30] sm:$0xf]
        %v1122 = vld [vmem:[#allocation6 + $0x34] sm:$0xf]
        %v1123 = vld [vmem:[#allocation6 + $0x38] sm:$0xf]
        %v1124 = vld [vmem:[#allocation6 + $0x3c] sm:$0xf]
        %v1125 = vpack.c.bf16 %v1094, %v1093
        %v1126 = vpack.c.bf16 %v1096, %v1095
        %v1127 = vpack.c.bf16 %v1098, %v1097
        %v1128 = vpack.c.bf16 %v1100, %v1099
        %v1129 = vpack.c.bf16 %v1102, %v1101
        %v1130 = vpack.c.bf16 %v1104, %v1103
        %v1131 = vpack.c.bf16 %v1106, %v1105
        %v1132 = vpack.c.bf16 %v1108, %v1107
        %v1133 = vld [vmem:[%s6] sm:$0x1]
        %v1135 = vlaneseq
        %v1136 = vshrl.u32 %v1135, 7
        %v1137 = vsub.s32 0, %v1136
        %v1138 = vrot.slane %v1133, %v1137
        %v1156 = vunpack.c.l.b16 %v1109
        %v1157 = vunpack.c.l.b16 %v1110
        %v1158 = vunpack.c.l.b16 %v1111
        %v1159 = vunpack.c.l.b16 %v1112
        %v1160 = vunpack.c.l.b16 %v1113
        %v1161 = vunpack.c.l.b16 %v1114
        %v1162 = vunpack.c.l.b16 %v1115
        %v1163 = vunpack.c.l.b16 %v1116
        %v1164 = vunpack.c.l.b16 %v1117
        %v1165 = vunpack.c.l.b16 %v1118
        %v1166 = vunpack.c.l.b16 %v1119
        %v1167 = vunpack.c.l.b16 %v1120
        %v1168 = vunpack.c.l.b16 %v1121
        %v1169 = vunpack.c.l.b16 %v1122
        %v1170 = vunpack.c.l.b16 %v1123
        %v1171 = vunpack.c.l.b16 %v1124
        %v1172 = vpack.c.b16 %v1157, %v1156
        %v1173 = vpack.c.b16 %v1159, %v1158
        %v1174 = vpack.c.b16 %v1161, %v1160
        %v1175 = vpack.c.b16 %v1163, %v1162
        %v1176 = vpack.c.b16 %v1165, %v1164
        %v1177 = vpack.c.b16 %v1167, %v1166
        %v1178 = vpack.c.b16 %v1169, %v1168
        %v1179 = vpack.c.b16 %v1171, %v1170
        %1188 = vmatprep.subr.bf16.mxu0 0
        %1189 = vmatpush1.bf16.msra.mxu0 %v1179
        %1190 = vmatprep.subr.bf16.mxu0 0
        %1191 = vmatpush1.bf16.msra.mxu0 %v1178
        %1192 = vmatprep.subr.bf16.mxu0 0
        %1193 = vmatpush1.bf16.msra.mxu0 %v1177
        %1194 = vmatprep.subr.bf16.mxu0 0
        %1195 = vmatpush1.bf16.msra.mxu0 %v1176
        %1196 = vmatprep.subr.bf16.mxu0 0
        %1197 = vmatpush1.bf16.msra.mxu0 %v1175
        %1198 = vmatprep.subr.bf16.mxu0 0
        %1199 = vmatpush1.bf16.msra.mxu0 %v1174
        %1200 = vmatprep.subr.bf16.mxu0 0
        %1201 = vmatpush1.bf16.msra.mxu0 %v1173
        %1202 = vmatprep.subr.bf16.mxu0 0
        %1203 = vmatpush1.bf16.msra.mxu0 %v1172
        %1204 = vmatprep.subr.bf16.mxu0 0
        %1205 = vmatpush2.bf16.msra.mxu0 0
        %1206 = vmatprep.subr.bf16.mxu0 0
        %1207 = vmatpush2.bf16.msra.mxu0 0
        %1208 = vmatprep.subr.bf16.mxu0 0
        %1209 = vmatpush2.bf16.msra.mxu0 0
        %1210 = vmatprep.subr.bf16.mxu0 0
        %1211 = vmatpush2.bf16.msra.mxu0 0
        %1212 = vmatprep.subr.bf16.mxu0 0
        %1213 = vmatpush2.bf16.msra.mxu0 0
        %1214 = vmatprep.subr.bf16.mxu0 0
        %1215 = vmatpush2.bf16.msra.mxu0 0
        %1216 = vmatprep.subr.bf16.mxu0 0
        %1217 = vmatpush2.bf16.msra.mxu0 0
        %1218 = vmatprep.subr.bf16.mxu0 0
        %1219 = vmatpush2.bf16.msra.mxu0 0
        %1220 = vmatprep.mubr.bf16.mxu0 0
        %1221 = vmatmul.mubr.bf16.gmra.mxu0 %v1125
        %v1222 = vpop.f32.mrf.mxu0
        %v1223 = vadd.f32 %v1138, %v1222
        %v1224 = vpop.f32.mrf.mxu0
        %v1225 = vpop.f32.mrf.mxu0
        %v1226 = vadd.f32 %v1138, %v1225
        %v1227 = vpop.f32.mrf.mxu0
        %1228 = vmatprep.mubr.bf16.mxu0 0
        %1229 = vmatmul.mubr.bf16.gmra.mxu0 %v1126
        %v1230 = vpop.f32.mrf.mxu0
        %v1231 = vadd.f32 %v1138, %v1230
        %v1232 = vpop.f32.mrf.mxu0
        %v1233 = vpop.f32.mrf.mxu0
        %v1234 = vadd.f32 %v1138, %v1233
        %v1235 = vpop.f32.mrf.mxu0
        %1236 = vmatprep.mubr.bf16.mxu0 0
        %1237 = vmatmul.mubr.bf16.gmra.mxu0 %v1127
        %v1238 = vpop.f32.mrf.mxu0
        %v1239 = vadd.f32 %v1138, %v1238
        %v1240 = vpop.f32.mrf.mxu0
        %v1241 = vpop.f32.mrf.mxu0
        %v1242 = vadd.f32 %v1138, %v1241
        %v1243 = vpop.f32.mrf.mxu0
        %1244 = vmatprep.mubr.bf16.mxu0 0
        %1245 = vmatmul.mubr.bf16.gmra.mxu0 %v1128
        %v1246 = vpop.f32.mrf.mxu0
        %v1247 = vadd.f32 %v1138, %v1246
        %v1248 = vpop.f32.mrf.mxu0
        %v1249 = vpop.f32.mrf.mxu0
        %v1250 = vadd.f32 %v1138, %v1249
        %v1251 = vpop.f32.mrf.mxu0
        %1252 = vmatprep.mubr.bf16.mxu0 0
        %1253 = vmatmul.mubr.bf16.gmra.mxu0 %v1129
        %v1254 = vpop.f32.mrf.mxu0
        %v1255 = vadd.f32 %v1138, %v1254
        %v1256 = vpop.f32.mrf.mxu0
        %v1257 = vpop.f32.mrf.mxu0
        %v1258 = vadd.f32 %v1138, %v1257
        %v1259 = vpop.f32.mrf.mxu0
        %1260 = vmatprep.mubr.bf16.mxu0 0
        %1261 = vmatmul.mubr.bf16.gmra.mxu0 %v1130
        %v1262 = vpop.f32.mrf.mxu0
        %v1263 = vadd.f32 %v1138, %v1262
        %v1264 = vpop.f32.mrf.mxu0
        %v1265 = vpop.f32.mrf.mxu0
        %v1266 = vadd.f32 %v1138, %v1265
        %v1267 = vpop.f32.mrf.mxu0
        %1268 = vmatprep.mubr.bf16.mxu0 0
        %1269 = vmatmul.mubr.bf16.gmra.mxu0 %v1131
        %v1270 = vpop.f32.mrf.mxu0
        %v1271 = vadd.f32 %v1138, %v1270
        %v1272 = vpop.f32.mrf.mxu0
        %v1273 = vpop.f32.mrf.mxu0
        %v1274 = vadd.f32 %v1138, %v1273
        %v1275 = vpop.f32.mrf.mxu0
        %1276 = vmatprep.mubr.bf16.mxu0 0
        %1277 = vmatmul.mubr.bf16.gmra.mxu0 %v1132
        %v1278 = vpop.f32.mrf.mxu0
        %v1279 = vadd.f32 %v1138, %v1278
        %v1280 = vpop.f32.mrf.mxu0
        %v1281 = vpop.f32.mrf.mxu0
        %v1282 = vadd.f32 %v1138, %v1281
        %v1283 = vpop.f32.mrf.mxu0
        %1284 = vdwg.mxu0
        %v1285 = vmax.f32 %v1223, 0.0
        %v1286 = vmax.f32 %v1226, 0.0
        %v1287 = vmax.f32 %v1231, 0.0
        %v1288 = vmax.f32 %v1234, 0.0
        %v1289 = vmax.f32 %v1239, 0.0
        %v1290 = vmax.f32 %v1242, 0.0
        %v1291 = vmax.f32 %v1247, 0.0
        %v1292 = vmax.f32 %v1250, 0.0
        %v1293 = vmax.f32 %v1255, 0.0
        %v1294 = vmax.f32 %v1258, 0.0
        %v1295 = vmax.f32 %v1263, 0.0
        %v1296 = vmax.f32 %v1266, 0.0
        %v1297 = vmax.f32 %v1271, 0.0
        %v1298 = vmax.f32 %v1274, 0.0
        %v1299 = vmax.f32 %v1279, 0.0
        %v1300 = vmax.f32 %v1282, 0.0
        %v1301 = vld [vmem:[%s7] sm:$0x1]
        %v1302 = vld [vmem:[%s8] sm:$0x1]
        %1303 = vadd.xlane.f32.xlu0 %v1285
        %v1304 = vpop.xlane.xlu0 %1303
        %1305 = vadd.xlane.f32.xlu0 %v1286
        %v1306 = vpop.xlane.xlu0 %1305
        %1307 = vadd.xlane.f32.xlu0 %v1287
        %v1308 = vpop.xlane.xlu0 %1307
        %1309 = vadd.xlane.f32.xlu0 %v1288
        %v1310 = vpop.xlane.xlu0 %1309
        %1311 = vadd.xlane.f32.xlu0 %v1289
        %v1312 = vpop.xlane.xlu0 %1311
        %1313 = vadd.xlane.f32.xlu0 %v1290
        %v1314 = vpop.xlane.xlu0 %1313
        %1315 = vadd.xlane.f32.xlu0 %v1291
        %v1316 = vpop.xlane.xlu0 %1315
        %1317 = vadd.xlane.f32.xlu0 %v1292
        %v1318 = vpop.xlane.xlu0 %1317
        %1319 = vadd.xlane.f32.xlu0 %v1293
        %v1320 = vpop.xlane.xlu0 %1319
        %1321 = vadd.xlane.f32.xlu0 %v1294
        %v1322 = vpop.xlane.xlu0 %1321
        %1323 = vadd.xlane.f32.xlu0 %v1295
        %v1324 = vpop.xlane.xlu0 %1323
        %1325 = vadd.xlane.f32.xlu0 %v1296
        %v1326 = vpop.xlane.xlu0 %1325
        %1327 = vadd.xlane.f32.xlu0 %v1297
        %v1328 = vpop.xlane.xlu0 %1327
        %1329 = vadd.xlane.f32.xlu0 %v1298
        %v1330 = vpop.xlane.xlu0 %1329
        %1331 = vadd.xlane.f32.xlu0 %v1299
        %v1332 = vpop.xlane.xlu0 %1331
        %1333 = vadd.xlane.f32.xlu0 %v1300
        %v1334 = vpop.xlane.xlu0 %1333
        %v1335 = vmul.f32 %v1285, %v1285
        %v1336 = vmul.f32 %v1286, %v1286
        %v1337 = vmul.f32 %v1287, %v1287
        %v1338 = vmul.f32 %v1288, %v1288
        %v1339 = vmul.f32 %v1289, %v1289
        %v1340 = vmul.f32 %v1290, %v1290
        %v1341 = vmul.f32 %v1291, %v1291
        %v1342 = vmul.f32 %v1292, %v1292
        %v1343 = vmul.f32 %v1293, %v1293
        %v1344 = vmul.f32 %v1294, %v1294
        %v1345 = vmul.f32 %v1295, %v1295
        %v1346 = vmul.f32 %v1296, %v1296
        %v1347 = vmul.f32 %v1297, %v1297
        %v1348 = vmul.f32 %v1298, %v1298
        %v1349 = vmul.f32 %v1299, %v1299
        %v1350 = vmul.f32 %v1300, %v1300
        %1351 = vadd.xlane.f32.xlu0 %v1335
        %v1352 = vpop.xlane.xlu0 %1351
        %1353 = vadd.xlane.f32.xlu0 %v1336
        %v1354 = vpop.xlane.xlu0 %1353
        %1355 = vadd.xlane.f32.xlu0 %v1337
        %v1356 = vpop.xlane.xlu0 %1355
        %1357 = vadd.xlane.f32.xlu0 %v1338
        %v1358 = vpop.xlane.xlu0 %1357
        %1359 = vadd.xlane.f32.xlu0 %v1339
        %v1360 = vpop.xlane.xlu0 %1359
        %1361 = vadd.xlane.f32.xlu0 %v1340
        %v1362 = vpop.xlane.xlu0 %1361
        %1363 = vadd.xlane.f32.xlu0 %v1341
        %v1364 = vpop.xlane.xlu0 %1363
        %1365 = vadd.xlane.f32.xlu0 %v1342
        %v1366 = vpop.xlane.xlu0 %1365
        %1367 = vadd.xlane.f32.xlu0 %v1343
        %v1368 = vpop.xlane.xlu0 %1367
        %1369 = vadd.xlane.f32.xlu0 %v1344
        %v1370 = vpop.xlane.xlu0 %1369
        %1371 = vadd.xlane.f32.xlu0 %v1345
        %v1372 = vpop.xlane.xlu0 %1371
        %1373 = vadd.xlane.f32.xlu0 %v1346
        %v1374 = vpop.xlane.xlu0 %1373
        %1375 = vadd.xlane.f32.xlu0 %v1347
        %v1376 = vpop.xlane.xlu0 %1375
        %1377 = vadd.xlane.f32.xlu0 %v1348
        %v1378 = vpop.xlane.xlu0 %1377
        %1379 = vadd.xlane.f32.xlu0 %v1349
        %v1380 = vpop.xlane.xlu0 %1379
        %1381 = vadd.xlane.f32.xlu0 %v1350
        %v1382 = vpop.xlane.xlu0 %1381
        %v1383 = vmul.f32 %v1304, 0.015625
        %v1384 = vmul.f32 %v1306, 0.015625
        %v1385 = vmul.f32 %v1308, 0.015625
        %v1386 = vmul.f32 %v1310, 0.015625
        %v1387 = vmul.f32 %v1312, 0.015625
        %v1388 = vmul.f32 %v1314, 0.015625
        %v1389 = vmul.f32 %v1316, 0.015625
        %v1390 = vmul.f32 %v1318, 0.015625
        %v1391 = vmul.f32 %v1320, 0.015625
        %v1392 = vmul.f32 %v1322, 0.015625
        %v1393 = vmul.f32 %v1324, 0.015625
        %v1394 = vmul.f32 %v1326, 0.015625
        %v1395 = vmul.f32 %v1328, 0.015625
        %v1396 = vmul.f32 %v1330, 0.015625
        %v1397 = vmul.f32 %v1332, 0.015625
        %v1398 = vmul.f32 %v1334, 0.015625
        %v1399 = vmul.f32 %v1352, 0.015625
        %v1400 = vmul.f32 %v1354, 0.015625
        %v1401 = vmul.f32 %v1356, 0.015625
        %v1402 = vmul.f32 %v1358, 0.015625
        %v1403 = vmul.f32 %v1360, 0.015625
        %v1404 = vmul.f32 %v1362, 0.015625
        %v1405 = vmul.f32 %v1364, 0.015625
        %v1406 = vmul.f32 %v1366, 0.015625
        %v1407 = vmul.f32 %v1368, 0.015625
        %v1408 = vmul.f32 %v1370, 0.015625
        %v1409 = vmul.f32 %v1372, 0.015625
        %v1410 = vmul.f32 %v1374, 0.015625
        %v1411 = vmul.f32 %v1376, 0.015625
        %v1412 = vmul.f32 %v1378, 0.015625
        %v1413 = vmul.f32 %v1380, 0.015625
        %v1414 = vmul.f32 %v1382, 0.015625
        %v1415 = vmul.f32 %v1383, %v1383
        %v1416 = vmul.f32 %v1384, %v1384
        %v1417 = vmul.f32 %v1385, %v1385
        %v1418 = vmul.f32 %v1386, %v1386
        %v1419 = vmul.f32 %v1387, %v1387
        %v1420 = vmul.f32 %v1388, %v1388
        %v1421 = vmul.f32 %v1389, %v1389
        %v1422 = vmul.f32 %v1390, %v1390
        %v1423 = vmul.f32 %v1391, %v1391
        %v1424 = vmul.f32 %v1392, %v1392
        %v1425 = vmul.f32 %v1393, %v1393
        %v1426 = vmul.f32 %v1394, %v1394
        %v1427 = vmul.f32 %v1395, %v1395
        %v1428 = vmul.f32 %v1396, %v1396
        %v1429 = vmul.f32 %v1397, %v1397
        %v1430 = vmul.f32 %v1398, %v1398
        %v1431 = vsub.f32 %v1399, %v1415
        %v1432 = vsub.f32 %v1400, %v1416
        %v1433 = vsub.f32 %v1401, %v1417
        %v1434 = vsub.f32 %v1402, %v1418
        %v1435 = vsub.f32 %v1403, %v1419
        %v1436 = vsub.f32 %v1404, %v1420
        %v1437 = vsub.f32 %v1405, %v1421
        %v1438 = vsub.f32 %v1406, %v1422
        %v1439 = vsub.f32 %v1407, %v1423
        %v1440 = vsub.f32 %v1408, %v1424
        %v1441 = vsub.f32 %v1409, %v1425
        %v1442 = vsub.f32 %v1410, %v1426
        %v1443 = vsub.f32 %v1411, %v1427
        %v1444 = vsub.f32 %v1412, %v1428
        %v1445 = vsub.f32 %v1413, %v1429
        %v1446 = vsub.f32 %v1414, %v1430
        %v1447 = vmax.f32 %v1431, 0.0
        %v1448 = vmax.f32 %v1432, 0.0
        %v1449 = vmax.f32 %v1433, 0.0
        %v1450 = vmax.f32 %v1434, 0.0
        %v1451 = vmax.f32 %v1435, 0.0
        %v1452 = vmax.f32 %v1436, 0.0
        %v1453 = vmax.f32 %v1437, 0.0
        %v1454 = vmax.f32 %v1438, 0.0
        %v1455 = vmax.f32 %v1439, 0.0
        %v1456 = vmax.f32 %v1440, 0.0
        %v1457 = vmax.f32 %v1441, 0.0
        %v1458 = vmax.f32 %v1442, 0.0
        %v1459 = vmax.f32 %v1443, 0.0
        %v1460 = vmax.f32 %v1444, 0.0
        %v1461 = vmax.f32 %v1445, 0.0
        %v1462 = vmax.f32 %v1446, 0.0
        %v1463 = vsub.f32 %v1285, %v1383
        %v1464 = vsub.f32 %v1286, %v1384
        %v1465 = vsub.f32 %v1287, %v1385
        %v1466 = vsub.f32 %v1288, %v1386
        %v1467 = vsub.f32 %v1289, %v1387
        %v1468 = vsub.f32 %v1290, %v1388
        %v1469 = vsub.f32 %v1291, %v1389
        %v1470 = vsub.f32 %v1292, %v1390
        %v1471 = vsub.f32 %v1293, %v1391
        %v1472 = vsub.f32 %v1294, %v1392
        %v1473 = vsub.f32 %v1295, %v1393
        %v1474 = vsub.f32 %v1296, %v1394
        %v1475 = vsub.f32 %v1297, %v1395
        %v1476 = vsub.f32 %v1298, %v1396
        %v1477 = vsub.f32 %v1299, %v1397
        %v1478 = vsub.f32 %v1300, %v1398
        %v1479 = vadd.f32 %v1447, 1e-05
        %v1480 = vadd.f32 %v1448, 1e-05
        %v1481 = vadd.f32 %v1449, 1e-05
        %v1482 = vadd.f32 %v1450, 1e-05
        %v1483 = vadd.f32 %v1451, 1e-05
        %v1484 = vadd.f32 %v1452, 1e-05
        %v1485 = vadd.f32 %v1453, 1e-05
        %v1486 = vadd.f32 %v1454, 1e-05
        %v1487 = vadd.f32 %v1455, 1e-05
        %v1488 = vadd.f32 %v1456, 1e-05
        %v1489 = vadd.f32 %v1457, 1e-05
        %v1490 = vadd.f32 %v1458, 1e-05
        %v1491 = vadd.f32 %v1459, 1e-05
        %v1492 = vadd.f32 %v1460, 1e-05
        %v1493 = vadd.f32 %v1461, 1e-05
        %v1494 = vadd.f32 %v1462, 1e-05
        %v1495 = vrsqrt.pop %v1479
        %v1496 = vrsqrt.pop %v1480
        %v1497 = vrsqrt.pop %v1481
        %v1498 = vrsqrt.pop %v1482
        %v1499 = vrsqrt.pop %v1483
        %v1500 = vrsqrt.pop %v1484
        %v1501 = vrsqrt.pop %v1485
        %v1502 = vrsqrt.pop %v1486
        %v1503 = vrsqrt.pop %v1487
        %v1504 = vrsqrt.pop %v1488
        %v1505 = vrsqrt.pop %v1489
        %v1506 = vrsqrt.pop %v1490
        %v1507 = vrsqrt.pop %v1491
        %v1508 = vrsqrt.pop %v1492
        %v1509 = vrsqrt.pop %v1493
        %v1510 = vrsqrt.pop %v1494
        %v1511 = vmul.f32 %v1463, %v1495
        %v1512 = vmul.f32 %v1464, %v1496
        %v1513 = vmul.f32 %v1465, %v1497
        %v1514 = vmul.f32 %v1466, %v1498
        %v1515 = vmul.f32 %v1467, %v1499
        %v1516 = vmul.f32 %v1468, %v1500
        %v1517 = vmul.f32 %v1469, %v1501
        %v1518 = vmul.f32 %v1470, %v1502
        %v1519 = vmul.f32 %v1471, %v1503
        %v1520 = vmul.f32 %v1472, %v1504
        %v1521 = vmul.f32 %v1473, %v1505
        %v1522 = vmul.f32 %v1474, %v1506
        %v1523 = vmul.f32 %v1475, %v1507
        %v1524 = vmul.f32 %v1476, %v1508
        %v1525 = vmul.f32 %v1477, %v1509
        %v1526 = vmul.f32 %v1478, %v1510
        %v1528 = vlaneseq
        %v1529 = vshrl.u32 %v1528, 7
        %v1530 = vsub.s32 0, %v1529
        %v1531 = vrot.slane %v1301, %v1530
        %v1533 = vmul.f32 %v1511, %v1531
        %v1534 = vmul.f32 %v1512, %v1531
        %v1535 = vmul.f32 %v1513, %v1531
        %v1536 = vmul.f32 %v1514, %v1531
        %v1537 = vmul.f32 %v1515, %v1531
        %v1538 = vmul.f32 %v1516, %v1531
        %v1539 = vmul.f32 %v1517, %v1531
        %v1540 = vmul.f32 %v1518, %v1531
        %v1541 = vmul.f32 %v1519, %v1531
        %v1542 = vmul.f32 %v1520, %v1531
        %v1543 = vmul.f32 %v1521, %v1531
        %v1544 = vmul.f32 %v1522, %v1531
        %v1545 = vmul.f32 %v1523, %v1531
        %v1546 = vmul.f32 %v1524, %v1531
        %v1547 = vmul.f32 %v1525, %v1531
        %v1548 = vmul.f32 %v1526, %v1531
        %v1550 = vlaneseq
        %v1551 = vshrl.u32 %v1550, 7
        %v1552 = vsub.s32 0, %v1551
        %v1553 = vrot.slane %v1302, %v1552
        %v1555 = vadd.f32 %v1533, %v1553
        %v1556 = vadd.f32 %v1534, %v1553
        %v1557 = vadd.f32 %v1535, %v1553
        %v1558 = vadd.f32 %v1536, %v1553
        %v1559 = vadd.f32 %v1537, %v1553
        %v1560 = vadd.f32 %v1538, %v1553
        %v1561 = vadd.f32 %v1539, %v1553
        %v1562 = vadd.f32 %v1540, %v1553
        %v1563 = vadd.f32 %v1541, %v1553
        %v1564 = vadd.f32 %v1542, %v1553
        %v1565 = vadd.f32 %v1543, %v1553
        %v1566 = vadd.f32 %v1544, %v1553
        %v1567 = vadd.f32 %v1545, %v1553
        %v1568 = vadd.f32 %v1546, %v1553
        %v1569 = vadd.f32 %v1547, %v1553
        %v1570 = vadd.f32 %v1548, %v1553
        %v1571 = vld [vmem:[#allocation8] sm:$0xf]
        %v1572 = vld [vmem:[#allocation8 + $0x4] sm:$0xf]
        %v1573 = vld [vmem:[#allocation8 + $0x8] sm:$0xf]
        %v1574 = vld [vmem:[#allocation8 + $0xc] sm:$0xf]
        %v1575 = vld [vmem:[#allocation8 + $0x10] sm:$0xf]
        %v1576 = vld [vmem:[#allocation8 + $0x14] sm:$0xf]
        %v1577 = vld [vmem:[#allocation8 + $0x18] sm:$0xf]
        %v1578 = vld [vmem:[#allocation8 + $0x1c] sm:$0xf]
        %v1579 = vld [vmem:[#allocation8 + $0x20] sm:$0xf]
        %v1580 = vld [vmem:[#allocation8 + $0x24] sm:$0xf]
        %v1581 = vld [vmem:[#allocation8 + $0x28] sm:$0xf]
        %v1582 = vld [vmem:[#allocation8 + $0x2c] sm:$0xf]
        %v1583 = vld [vmem:[#allocation8 + $0x30] sm:$0xf]
        %v1584 = vld [vmem:[#allocation8 + $0x34] sm:$0xf]
        %v1585 = vld [vmem:[#allocation8 + $0x38] sm:$0xf]
        %v1586 = vld [vmem:[#allocation8 + $0x3c] sm:$0xf]
        %v1587 = vpack.c.bf16 %v1556, %v1555
        %v1588 = vpack.c.bf16 %v1558, %v1557
        %v1589 = vpack.c.bf16 %v1560, %v1559
        %v1590 = vpack.c.bf16 %v1562, %v1561
        %v1591 = vpack.c.bf16 %v1564, %v1563
        %v1592 = vpack.c.bf16 %v1566, %v1565
        %v1593 = vpack.c.bf16 %v1568, %v1567
        %v1594 = vpack.c.bf16 %v1570, %v1569
        %v1595 = vld [vmem:[%s10] sm:$0x1]
        %v1597 = vlaneseq
        %v1598 = vshrl.u32 %v1597, 7
        %v1599 = vsub.s32 0, %v1598
        %v1600 = vrot.slane %v1595, %v1599
        %v1618 = vunpack.c.l.b16 %v1571
        %v1619 = vunpack.c.l.b16 %v1572
        %v1620 = vunpack.c.l.b16 %v1573
        %v1621 = vunpack.c.l.b16 %v1574
        %v1622 = vunpack.c.l.b16 %v1575
        %v1623 = vunpack.c.l.b16 %v1576
        %v1624 = vunpack.c.l.b16 %v1577
        %v1625 = vunpack.c.l.b16 %v1578
        %v1626 = vunpack.c.l.b16 %v1579
        %v1627 = vunpack.c.l.b16 %v1580
        %v1628 = vunpack.c.l.b16 %v1581
        %v1629 = vunpack.c.l.b16 %v1582
        %v1630 = vunpack.c.l.b16 %v1583
        %v1631 = vunpack.c.l.b16 %v1584
        %v1632 = vunpack.c.l.b16 %v1585
        %v1633 = vunpack.c.l.b16 %v1586
        %v1634 = vpack.c.b16 %v1619, %v1618
        %v1635 = vpack.c.b16 %v1621, %v1620
        %v1636 = vpack.c.b16 %v1623, %v1622
        %v1637 = vpack.c.b16 %v1625, %v1624
        %v1638 = vpack.c.b16 %v1627, %v1626
        %v1639 = vpack.c.b16 %v1629, %v1628
        %v1640 = vpack.c.b16 %v1631, %v1630
        %v1641 = vpack.c.b16 %v1633, %v1632
        %1650 = vmatprep.subr.bf16.mxu0 0
        %1651 = vmatpush1.bf16.msra.mxu0 %v1641
        %1652 = vmatprep.subr.bf16.mxu0 0
        %1653 = vmatpush1.bf16.msra.mxu0 %v1640
        %1654 = vmatprep.subr.bf16.mxu0 0
        %1655 = vmatpush1.bf16.msra.mxu0 %v1639
        %1656 = vmatprep.subr.bf16.mxu0 0
        %1657 = vmatpush1.bf16.msra.mxu0 %v1638
        %1658 = vmatprep.subr.bf16.mxu0 0
        %1659 = vmatpush1.bf16.msra.mxu0 %v1637
        %1660 = vmatprep.subr.bf16.mxu0 0
        %1661 = vmatpush1.bf16.msra.mxu0 %v1636
        %1662 = vmatprep.subr.bf16.mxu0 0
        %1663 = vmatpush1.bf16.msra.mxu0 %v1635
        %1664 = vmatprep.subr.bf16.mxu0 0
        %1665 = vmatpush1.bf16.msra.mxu0 %v1634
        %1666 = vmatprep.subr.bf16.mxu0 0
        %1667 = vmatpush2.bf16.msra.mxu0 0
        %1668 = vmatprep.subr.bf16.mxu0 0
        %1669 = vmatpush2.bf16.msra.mxu0 0
        %1670 = vmatprep.subr.bf16.mxu0 0
        %1671 = vmatpush2.bf16.msra.mxu0 0
        %1672 = vmatprep.subr.bf16.mxu0 0
        %1673 = vmatpush2.bf16.msra.mxu0 0
        %1674 = vmatprep.subr.bf16.mxu0 0
        %1675 = vmatpush2.bf16.msra.mxu0 0
        %1676 = vmatprep.subr.bf16.mxu0 0
        %1677 = vmatpush2.bf16.msra.mxu0 0
        %1678 = vmatprep.subr.bf16.mxu0 0
        %1679 = vmatpush2.bf16.msra.mxu0 0
        %1680 = vmatprep.subr.bf16.mxu0 0
        %1681 = vmatpush2.bf16.msra.mxu0 0
        %1682 = vmatprep.mubr.bf16.mxu0 0
        %1683 = vmatmul.mubr.bf16.gmra.mxu0 %v1587
        %v1684 = vpop.f32.mrf.mxu0
        %v1685 = vadd.f32 %v1600, %v1684
        %v1686 = vpop.f32.mrf.mxu0
        %v1687 = vpop.f32.mrf.mxu0
        %v1688 = vadd.f32 %v1600, %v1687
        %v1689 = vpop.f32.mrf.mxu0
        %1690 = vmatprep.mubr.bf16.mxu0 0
        %1691 = vmatmul.mubr.bf16.gmra.mxu0 %v1588
        %v1692 = vpop.f32.mrf.mxu0
        %v1693 = vadd.f32 %v1600, %v1692
        %v1694 = vpop.f32.mrf.mxu0
        %v1695 = vpop.f32.mrf.mxu0
        %v1696 = vadd.f32 %v1600, %v1695
        %v1697 = vpop.f32.mrf.mxu0
        %1698 = vmatprep.mubr.bf16.mxu0 0
        %1699 = vmatmul.mubr.bf16.gmra.mxu0 %v1589
        %v1700 = vpop.f32.mrf.mxu0
        %v1701 = vadd.f32 %v1600, %v1700
        %v1702 = vpop.f32.mrf.mxu0
        %v1703 = vpop.f32.mrf.mxu0
        %v1704 = vadd.f32 %v1600, %v1703
        %v1705 = vpop.f32.mrf.mxu0
        %1706 = vmatprep.mubr.bf16.mxu0 0
        %1707 = vmatmul.mubr.bf16.gmra.mxu0 %v1590
        %v1708 = vpop.f32.mrf.mxu0
        %v1709 = vadd.f32 %v1600, %v1708
        %v1710 = vpop.f32.mrf.mxu0
        %v1711 = vpop.f32.mrf.mxu0
        %v1712 = vadd.f32 %v1600, %v1711
        %v1713 = vpop.f32.mrf.mxu0
        %1714 = vmatprep.mubr.bf16.mxu0 0
        %1715 = vmatmul.mubr.bf16.gmra.mxu0 %v1591
        %v1716 = vpop.f32.mrf.mxu0
        %v1717 = vadd.f32 %v1600, %v1716
        %v1718 = vpop.f32.mrf.mxu0
        %v1719 = vpop.f32.mrf.mxu0
        %v1720 = vadd.f32 %v1600, %v1719
        %v1721 = vpop.f32.mrf.mxu0
        %1722 = vmatprep.mubr.bf16.mxu0 0
        %1723 = vmatmul.mubr.bf16.gmra.mxu0 %v1592
        %v1724 = vpop.f32.mrf.mxu0
        %v1725 = vadd.f32 %v1600, %v1724
        %v1726 = vpop.f32.mrf.mxu0
        %v1727 = vpop.f32.mrf.mxu0
        %v1728 = vadd.f32 %v1600, %v1727
        %v1729 = vpop.f32.mrf.mxu0
        %1730 = vmatprep.mubr.bf16.mxu0 0
        %1731 = vmatmul.mubr.bf16.gmra.mxu0 %v1593
        %v1732 = vpop.f32.mrf.mxu0
        %v1733 = vadd.f32 %v1600, %v1732
        %v1734 = vpop.f32.mrf.mxu0
        %v1735 = vpop.f32.mrf.mxu0
        %v1736 = vadd.f32 %v1600, %v1735
        %v1737 = vpop.f32.mrf.mxu0
        %1738 = vmatprep.mubr.bf16.mxu0 0
        %1739 = vmatmul.mubr.bf16.gmra.mxu0 %v1594
        %v1740 = vpop.f32.mrf.mxu0
        %v1741 = vadd.f32 %v1600, %v1740
        %v1742 = vpop.f32.mrf.mxu0
        %v1743 = vpop.f32.mrf.mxu0
        %v1744 = vadd.f32 %v1600, %v1743
        %v1745 = vpop.f32.mrf.mxu0
        %1746 = vdwg.mxu0
        %v1747 = vmax.f32 %v1685, 0.0
        %v1748 = vmax.f32 %v1688, 0.0
        %v1749 = vmax.f32 %v1693, 0.0
        %v1750 = vmax.f32 %v1696, 0.0
        %v1751 = vmax.f32 %v1701, 0.0
        %v1752 = vmax.f32 %v1704, 0.0
        %v1753 = vmax.f32 %v1709, 0.0
        %v1754 = vmax.f32 %v1712, 0.0
        %v1755 = vmax.f32 %v1717, 0.0
        %v1756 = vmax.f32 %v1720, 0.0
        %v1757 = vmax.f32 %v1725, 0.0
        %v1758 = vmax.f32 %v1728, 0.0
        %v1759 = vmax.f32 %v1733, 0.0
        %v1760 = vmax.f32 %v1736, 0.0
        %v1761 = vmax.f32 %v1741, 0.0
        %v1762 = vmax.f32 %v1744, 0.0
        %v1763 = vld [vmem:[%s11] sm:$0x1]
        %v1764 = vld [vmem:[%s12] sm:$0x1]
        %1765 = vadd.xlane.f32.xlu0 %v1747
        %v1766 = vpop.xlane.xlu0 %1765
        %1767 = vadd.xlane.f32.xlu0 %v1748
        %v1768 = vpop.xlane.xlu0 %1767
        %1769 = vadd.xlane.f32.xlu0 %v1749
        %v1770 = vpop.xlane.xlu0 %1769
        %1771 = vadd.xlane.f32.xlu0 %v1750
        %v1772 = vpop.xlane.xlu0 %1771
        %1773 = vadd.xlane.f32.xlu0 %v1751
        %v1774 = vpop.xlane.xlu0 %1773
        %1775 = vadd.xlane.f32.xlu0 %v1752
        %v1776 = vpop.xlane.xlu0 %1775
        %1777 = vadd.xlane.f32.xlu0 %v1753
        %v1778 = vpop.xlane.xlu0 %1777
        %1779 = vadd.xlane.f32.xlu0 %v1754
        %v1780 = vpop.xlane.xlu0 %1779
        %1781 = vadd.xlane.f32.xlu0 %v1755
        %v1782 = vpop.xlane.xlu0 %1781
        %1783 = vadd.xlane.f32.xlu0 %v1756
        %v1784 = vpop.xlane.xlu0 %1783
        %1785 = vadd.xlane.f32.xlu0 %v1757
        %v1786 = vpop.xlane.xlu0 %1785
        %1787 = vadd.xlane.f32.xlu0 %v1758
        %v1788 = vpop.xlane.xlu0 %1787
        %1789 = vadd.xlane.f32.xlu0 %v1759
        %v1790 = vpop.xlane.xlu0 %1789
        %1791 = vadd.xlane.f32.xlu0 %v1760
        %v1792 = vpop.xlane.xlu0 %1791
        %1793 = vadd.xlane.f32.xlu0 %v1761
        %v1794 = vpop.xlane.xlu0 %1793
        %1795 = vadd.xlane.f32.xlu0 %v1762
        %v1796 = vpop.xlane.xlu0 %1795
        %v1797 = vmul.f32 %v1747, %v1747
        %v1798 = vmul.f32 %v1748, %v1748
        %v1799 = vmul.f32 %v1749, %v1749
        %v1800 = vmul.f32 %v1750, %v1750
        %v1801 = vmul.f32 %v1751, %v1751
        %v1802 = vmul.f32 %v1752, %v1752
        %v1803 = vmul.f32 %v1753, %v1753
        %v1804 = vmul.f32 %v1754, %v1754
        %v1805 = vmul.f32 %v1755, %v1755
        %v1806 = vmul.f32 %v1756, %v1756
        %v1807 = vmul.f32 %v1757, %v1757
        %v1808 = vmul.f32 %v1758, %v1758
        %v1809 = vmul.f32 %v1759, %v1759
        %v1810 = vmul.f32 %v1760, %v1760
        %v1811 = vmul.f32 %v1761, %v1761
        %v1812 = vmul.f32 %v1762, %v1762
        %1813 = vadd.xlane.f32.xlu0 %v1797
        %v1814 = vpop.xlane.xlu0 %1813
        %1815 = vadd.xlane.f32.xlu0 %v1798
        %v1816 = vpop.xlane.xlu0 %1815
        %1817 = vadd.xlane.f32.xlu0 %v1799
        %v1818 = vpop.xlane.xlu0 %1817
        %1819 = vadd.xlane.f32.xlu0 %v1800
        %v1820 = vpop.xlane.xlu0 %1819
        %1821 = vadd.xlane.f32.xlu0 %v1801
        %v1822 = vpop.xlane.xlu0 %1821
        %1823 = vadd.xlane.f32.xlu0 %v1802
        %v1824 = vpop.xlane.xlu0 %1823
        %1825 = vadd.xlane.f32.xlu0 %v1803
        %v1826 = vpop.xlane.xlu0 %1825
        %1827 = vadd.xlane.f32.xlu0 %v1804
        %v1828 = vpop.xlane.xlu0 %1827
        %1829 = vadd.xlane.f32.xlu0 %v1805
        %v1830 = vpop.xlane.xlu0 %1829
        %1831 = vadd.xlane.f32.xlu0 %v1806
        %v1832 = vpop.xlane.xlu0 %1831
        %1833 = vadd.xlane.f32.xlu0 %v1807
        %v1834 = vpop.xlane.xlu0 %1833
        %1835 = vadd.xlane.f32.xlu0 %v1808
        %v1836 = vpop.xlane.xlu0 %1835
        %1837 = vadd.xlane.f32.xlu0 %v1809
        %v1838 = vpop.xlane.xlu0 %1837
        %1839 = vadd.xlane.f32.xlu0 %v1810
        %v1840 = vpop.xlane.xlu0 %1839
        %1841 = vadd.xlane.f32.xlu0 %v1811
        %v1842 = vpop.xlane.xlu0 %1841
        %1843 = vadd.xlane.f32.xlu0 %v1812
        %v1844 = vpop.xlane.xlu0 %1843
        %v1845 = vmul.f32 %v1766, 0.015625
        %v1846 = vmul.f32 %v1768, 0.015625
        %v1847 = vmul.f32 %v1770, 0.015625
        %v1848 = vmul.f32 %v1772, 0.015625
        %v1849 = vmul.f32 %v1774, 0.015625
        %v1850 = vmul.f32 %v1776, 0.015625
        %v1851 = vmul.f32 %v1778, 0.015625
        %v1852 = vmul.f32 %v1780, 0.015625
        %v1853 = vmul.f32 %v1782, 0.015625
        %v1854 = vmul.f32 %v1784, 0.015625
        %v1855 = vmul.f32 %v1786, 0.015625
        %v1856 = vmul.f32 %v1788, 0.015625
        %v1857 = vmul.f32 %v1790, 0.015625
        %v1858 = vmul.f32 %v1792, 0.015625
        %v1859 = vmul.f32 %v1794, 0.015625
        %v1860 = vmul.f32 %v1796, 0.015625
        %v1861 = vmul.f32 %v1814, 0.015625
        %v1862 = vmul.f32 %v1816, 0.015625
        %v1863 = vmul.f32 %v1818, 0.015625
        %v1864 = vmul.f32 %v1820, 0.015625
        %v1865 = vmul.f32 %v1822, 0.015625
        %v1866 = vmul.f32 %v1824, 0.015625
        %v1867 = vmul.f32 %v1826, 0.015625
        %v1868 = vmul.f32 %v1828, 0.015625
        %v1869 = vmul.f32 %v1830, 0.015625
        %v1870 = vmul.f32 %v1832, 0.015625
        %v1871 = vmul.f32 %v1834, 0.015625
        %v1872 = vmul.f32 %v1836, 0.015625
        %v1873 = vmul.f32 %v1838, 0.015625
        %v1874 = vmul.f32 %v1840, 0.015625
        %v1875 = vmul.f32 %v1842, 0.015625
        %v1876 = vmul.f32 %v1844, 0.015625
        %v1877 = vmul.f32 %v1845, %v1845
        %v1878 = vmul.f32 %v1846, %v1846
        %v1879 = vmul.f32 %v1847, %v1847
        %v1880 = vmul.f32 %v1848, %v1848
        %v1881 = vmul.f32 %v1849, %v1849
        %v1882 = vmul.f32 %v1850, %v1850
        %v1883 = vmul.f32 %v1851, %v1851
        %v1884 = vmul.f32 %v1852, %v1852
        %v1885 = vmul.f32 %v1853, %v1853
        %v1886 = vmul.f32 %v1854, %v1854
        %v1887 = vmul.f32 %v1855, %v1855
        %v1888 = vmul.f32 %v1856, %v1856
        %v1889 = vmul.f32 %v1857, %v1857
        %v1890 = vmul.f32 %v1858, %v1858
        %v1891 = vmul.f32 %v1859, %v1859
        %v1892 = vmul.f32 %v1860, %v1860
        %v1893 = vsub.f32 %v1861, %v1877
        %v1894 = vsub.f32 %v1862, %v1878
        %v1895 = vsub.f32 %v1863, %v1879
        %v1896 = vsub.f32 %v1864, %v1880
        %v1897 = vsub.f32 %v1865, %v1881
        %v1898 = vsub.f32 %v1866, %v1882
        %v1899 = vsub.f32 %v1867, %v1883
        %v1900 = vsub.f32 %v1868, %v1884
        %v1901 = vsub.f32 %v1869, %v1885
        %v1902 = vsub.f32 %v1870, %v1886
        %v1903 = vsub.f32 %v1871, %v1887
        %v1904 = vsub.f32 %v1872, %v1888
        %v1905 = vsub.f32 %v1873, %v1889
        %v1906 = vsub.f32 %v1874, %v1890
        %v1907 = vsub.f32 %v1875, %v1891
        %v1908 = vsub.f32 %v1876, %v1892
        %v1909 = vmax.f32 %v1893, 0.0
        %v1910 = vmax.f32 %v1894, 0.0
        %v1911 = vmax.f32 %v1895, 0.0
        %v1912 = vmax.f32 %v1896, 0.0
        %v1913 = vmax.f32 %v1897, 0.0
        %v1914 = vmax.f32 %v1898, 0.0
        %v1915 = vmax.f32 %v1899, 0.0
        %v1916 = vmax.f32 %v1900, 0.0
        %v1917 = vmax.f32 %v1901, 0.0
        %v1918 = vmax.f32 %v1902, 0.0
        %v1919 = vmax.f32 %v1903, 0.0
        %v1920 = vmax.f32 %v1904, 0.0
        %v1921 = vmax.f32 %v1905, 0.0
        %v1922 = vmax.f32 %v1906, 0.0
        %v1923 = vmax.f32 %v1907, 0.0
        %v1924 = vmax.f32 %v1908, 0.0
        %v1925 = vsub.f32 %v1747, %v1845
        %v1926 = vsub.f32 %v1748, %v1846
        %v1927 = vsub.f32 %v1749, %v1847
        %v1928 = vsub.f32 %v1750, %v1848
        %v1929 = vsub.f32 %v1751, %v1849
        %v1930 = vsub.f32 %v1752, %v1850
        %v1931 = vsub.f32 %v1753, %v1851
        %v1932 = vsub.f32 %v1754, %v1852
        %v1933 = vsub.f32 %v1755, %v1853
        %v1934 = vsub.f32 %v1756, %v1854
        %v1935 = vsub.f32 %v1757, %v1855
        %v1936 = vsub.f32 %v1758, %v1856
        %v1937 = vsub.f32 %v1759, %v1857
        %v1938 = vsub.f32 %v1760, %v1858
        %v1939 = vsub.f32 %v1761, %v1859
        %v1940 = vsub.f32 %v1762, %v1860
        %v1941 = vadd.f32 %v1909, 1e-05
        %v1942 = vadd.f32 %v1910, 1e-05
        %v1943 = vadd.f32 %v1911, 1e-05
        %v1944 = vadd.f32 %v1912, 1e-05
        %v1945 = vadd.f32 %v1913, 1e-05
        %v1946 = vadd.f32 %v1914, 1e-05
        %v1947 = vadd.f32 %v1915, 1e-05
        %v1948 = vadd.f32 %v1916, 1e-05
        %v1949 = vadd.f32 %v1917, 1e-05
        %v1950 = vadd.f32 %v1918, 1e-05
        %v1951 = vadd.f32 %v1919, 1e-05
        %v1952 = vadd.f32 %v1920, 1e-05
        %v1953 = vadd.f32 %v1921, 1e-05
        %v1954 = vadd.f32 %v1922, 1e-05
        %v1955 = vadd.f32 %v1923, 1e-05
        %v1956 = vadd.f32 %v1924, 1e-05
        %v1957 = vrsqrt.pop %v1941
        %v1958 = vrsqrt.pop %v1942
        %v1959 = vrsqrt.pop %v1943
        %v1960 = vrsqrt.pop %v1944
        %v1961 = vrsqrt.pop %v1945
        %v1962 = vrsqrt.pop %v1946
        %v1963 = vrsqrt.pop %v1947
        %v1964 = vrsqrt.pop %v1948
        %v1965 = vrsqrt.pop %v1949
        %v1966 = vrsqrt.pop %v1950
        %v1967 = vrsqrt.pop %v1951
        %v1968 = vrsqrt.pop %v1952
        %v1969 = vrsqrt.pop %v1953
        %v1970 = vrsqrt.pop %v1954
        %v1971 = vrsqrt.pop %v1955
        %v1972 = vrsqrt.pop %v1956
        %v1973 = vmul.f32 %v1925, %v1957
        %v1974 = vmul.f32 %v1926, %v1958
        %v1975 = vmul.f32 %v1927, %v1959
        %v1976 = vmul.f32 %v1928, %v1960
        %v1977 = vmul.f32 %v1929, %v1961
        %v1978 = vmul.f32 %v1930, %v1962
        %v1979 = vmul.f32 %v1931, %v1963
        %v1980 = vmul.f32 %v1932, %v1964
        %v1981 = vmul.f32 %v1933, %v1965
        %v1982 = vmul.f32 %v1934, %v1966
        %v1983 = vmul.f32 %v1935, %v1967
        %v1984 = vmul.f32 %v1936, %v1968
        %v1985 = vmul.f32 %v1937, %v1969
        %v1986 = vmul.f32 %v1938, %v1970
        %v1987 = vmul.f32 %v1939, %v1971
        %v1988 = vmul.f32 %v1940, %v1972
        %v1990 = vlaneseq
        %v1991 = vshrl.u32 %v1990, 7
        %v1992 = vsub.s32 0, %v1991
        %v1993 = vrot.slane %v1763, %v1992
        %v1995 = vmul.f32 %v1973, %v1993
        %v1996 = vmul.f32 %v1974, %v1993
        %v1997 = vmul.f32 %v1975, %v1993
        %v1998 = vmul.f32 %v1976, %v1993
        %v1999 = vmul.f32 %v1977, %v1993
        %v2000 = vmul.f32 %v1978, %v1993
        %v2001 = vmul.f32 %v1979, %v1993
        %v2002 = vmul.f32 %v1980, %v1993
        %v2003 = vmul.f32 %v1981, %v1993
        %v2004 = vmul.f32 %v1982, %v1993
        %v2005 = vmul.f32 %v1983, %v1993
        %v2006 = vmul.f32 %v1984, %v1993
        %v2007 = vmul.f32 %v1985, %v1993
        %v2008 = vmul.f32 %v1986, %v1993
        %v2009 = vmul.f32 %v1987, %v1993
        %v2010 = vmul.f32 %v1988, %v1993
        %v2012 = vlaneseq
        %v2013 = vshrl.u32 %v2012, 7
        %v2014 = vsub.s32 0, %v2013
        %v2015 = vrot.slane %v1764, %v2014
        %v2017 = vadd.f32 %v1995, %v2015
        %v2018 = vadd.f32 %v1996, %v2015
        %v2019 = vadd.f32 %v1997, %v2015
        %v2020 = vadd.f32 %v1998, %v2015
        %v2021 = vadd.f32 %v1999, %v2015
        %v2022 = vadd.f32 %v2000, %v2015
        %v2023 = vadd.f32 %v2001, %v2015
        %v2024 = vadd.f32 %v2002, %v2015
        %v2025 = vadd.f32 %v2003, %v2015
        %v2026 = vadd.f32 %v2004, %v2015
        %v2027 = vadd.f32 %v2005, %v2015
        %v2028 = vadd.f32 %v2006, %v2015
        %v2029 = vadd.f32 %v2007, %v2015
        %v2030 = vadd.f32 %v2008, %v2015
        %v2031 = vadd.f32 %v2009, %v2015
        %v2032 = vadd.f32 %v2010, %v2015
        %v2033 = vld [vmem:[%s710] sm:$0xff]
        %v2034 = vld [vmem:[%s710 + $0x8] sm:$0xff]
        %v2035 = vld [vmem:[%s710 + $0x10] sm:$0xff]
        %v2036 = vld [vmem:[%s710 + $0x18] sm:$0xff]
        %v2037 = vld [vmem:[%s710 + $0x20] sm:$0xff]
        %v2038 = vld [vmem:[%s710 + $0x28] sm:$0xff]
        %v2039 = vld [vmem:[%s710 + $0x30] sm:$0xff]
        %v2040 = vld [vmem:[%s710 + $0x38] sm:$0xff]
        %v2041 = vld [vmem:[%s710 + $0x40] sm:$0xff]
        %v2042 = vld [vmem:[%s710 + $0x48] sm:$0xff]
        %v2043 = vld [vmem:[%s710 + $0x50] sm:$0xff]
        %v2044 = vld [vmem:[%s710 + $0x58] sm:$0xff]
        %v2045 = vld [vmem:[%s710 + $0x60] sm:$0xff]
        %v2046 = vld [vmem:[%s710 + $0x68] sm:$0xff]
        %v2047 = vld [vmem:[%s710 + $0x70] sm:$0xff]
        %v2048 = vld [vmem:[%s710 + $0x78] sm:$0xff]
        %v2049 = vld [vmem:[%s813] sm:$0xff]
        %v2050 = vld [vmem:[%s813 + $0x8] sm:$0xff]
        %v2051 = vld [vmem:[%s813 + $0x10] sm:$0xff]
        %v2052 = vld [vmem:[%s813 + $0x18] sm:$0xff]
        %v2053 = vld [vmem:[%s813 + $0x20] sm:$0xff]
        %v2054 = vld [vmem:[%s813 + $0x28] sm:$0xff]
        %v2055 = vld [vmem:[%s813 + $0x30] sm:$0xff]
        %v2056 = vld [vmem:[%s813 + $0x38] sm:$0xff]
        %v2057 = vld [vmem:[%s813 + $0x40] sm:$0xff]
        %v2058 = vld [vmem:[%s813 + $0x48] sm:$0xff]
        %v2059 = vld [vmem:[%s813 + $0x50] sm:$0xff]
        %v2060 = vld [vmem:[%s813 + $0x58] sm:$0xff]
        %v2061 = vld [vmem:[%s813 + $0x60] sm:$0xff]
        %v2062 = vld [vmem:[%s813 + $0x68] sm:$0xff]
        %v2063 = vld [vmem:[%s813 + $0x70] sm:$0xff]
        %v2064 = vld [vmem:[%s813 + $0x78] sm:$0xff]
        %2066 = vset.pattern.permute.xlu0 0
        %2067 = vperm.xlu0 %2066, %v2049
        %v2068 = vpop.permute.xlu0 %2067
        %2071 = vset.pattern.permute.xlu0 0
        %2072 = vperm.xlu0 %2071, %v2050
        %v2073 = vpop.permute.xlu0 %2072
        %2076 = vset.pattern.permute.xlu0 0
        %2077 = vperm.xlu0 %2076, %v2051
        %v2078 = vpop.permute.xlu0 %2077
        %2081 = vset.pattern.permute.xlu0 0
        %2082 = vperm.xlu0 %2081, %v2052
        %v2083 = vpop.permute.xlu0 %2082
        %2086 = vset.pattern.permute.xlu0 0
        %2087 = vperm.xlu0 %2086, %v2053
        %v2088 = vpop.permute.xlu0 %2087
        %2091 = vset.pattern.permute.xlu0 0
        %2092 = vperm.xlu0 %2091, %v2054
        %v2093 = vpop.permute.xlu0 %2092
        %2096 = vset.pattern.permute.xlu0 0
        %2097 = vperm.xlu0 %2096, %v2055
        %v2098 = vpop.permute.xlu0 %2097
        %2101 = vset.pattern.permute.xlu0 0
        %2102 = vperm.xlu0 %2101, %v2056
        %v2103 = vpop.permute.xlu0 %2102
        %2106 = vset.pattern.permute.xlu0 0
        %2107 = vperm.xlu0 %2106, %v2057
        %v2108 = vpop.permute.xlu0 %2107
        %2111 = vset.pattern.permute.xlu0 0
        %2112 = vperm.xlu0 %2111, %v2058
        %v2113 = vpop.permute.xlu0 %2112
        %2116 = vset.pattern.permute.xlu0 0
        %2117 = vperm.xlu0 %2116, %v2059
        %v2118 = vpop.permute.xlu0 %2117
        %2121 = vset.pattern.permute.xlu0 0
        %2122 = vperm.xlu0 %2121, %v2060
        %v2123 = vpop.permute.xlu0 %2122
        %2126 = vset.pattern.permute.xlu0 0
        %2127 = vperm.xlu0 %2126, %v2061
        %v2128 = vpop.permute.xlu0 %2127
        %2131 = vset.pattern.permute.xlu0 0
        %2132 = vperm.xlu0 %2131, %v2062
        %v2133 = vpop.permute.xlu0 %2132
        %2136 = vset.pattern.permute.xlu0 0
        %2137 = vperm.xlu0 %2136, %v2063
        %v2138 = vpop.permute.xlu0 %2137
        %2141 = vset.pattern.permute.xlu0 0
        %2142 = vperm.xlu0 %2141, %v2064
        %v2143 = vpop.permute.xlu0 %2142
        %v2145 = vmul.f32 %v2033, %v2068
        %v2146 = vmul.f32 %v2034, %v2073
        %v2147 = vmul.f32 %v2035, %v2078
        %v2148 = vmul.f32 %v2036, %v2083
        %v2149 = vmul.f32 %v2037, %v2088
        %v2150 = vmul.f32 %v2038, %v2093
        %v2151 = vmul.f32 %v2039, %v2098
        %v2152 = vmul.f32 %v2040, %v2103
        %v2153 = vmul.f32 %v2041, %v2108
        %v2154 = vmul.f32 %v2042, %v2113
        %v2155 = vmul.f32 %v2043, %v2118
        %v2156 = vmul.f32 %v2044, %v2123
        %v2157 = vmul.f32 %v2045, %v2128
        %v2158 = vmul.f32 %v2046, %v2133
        %v2159 = vmul.f32 %v2047, %v2138
        %v2160 = vmul.f32 %v2048, %v2143
        %v2161 = vld [vmem:[#allocation9] sm:$0xff]
        %v2162 = vld [vmem:[#allocation9 + $0x8] sm:$0xf]
        %v2163 = vld [vmem:[#allocation9 + $0xc] sm:$0xff]
        %v2164 = vld [vmem:[#allocation9 + $0x14] sm:$0xf]
        %v2165 = vld [vmem:[#allocation9 + $0x18] sm:$0xff]
        %v2166 = vld [vmem:[#allocation9 + $0x20] sm:$0xf]
        %v2167 = vld [vmem:[#allocation9 + $0x24] sm:$0xff]
        %v2168 = vld [vmem:[#allocation9 + $0x2c] sm:$0xf]
        %v2169 = vld [vmem:[#allocation9 + $0x30] sm:$0xff]
        %v2170 = vld [vmem:[#allocation9 + $0x38] sm:$0xf]
        %v2171 = vld [vmem:[#allocation9 + $0x3c] sm:$0xff]
        %v2172 = vld [vmem:[#allocation9 + $0x44] sm:$0xf]
        %v2173 = vld [vmem:[#allocation9 + $0x48] sm:$0xff]
        %v2174 = vld [vmem:[#allocation9 + $0x50] sm:$0xf]
        %v2175 = vld [vmem:[#allocation9 + $0x54] sm:$0xff]
        %v2176 = vld [vmem:[#allocation9 + $0x5c] sm:$0xf]
        %v2177 = vld [vmem:[#allocation9 + $0x60] sm:$0xff]
        %v2178 = vld [vmem:[#allocation9 + $0x68] sm:$0xf]
        %v2179 = vld [vmem:[#allocation9 + $0x6c] sm:$0xff]
        %v2180 = vld [vmem:[#allocation9 + $0x74] sm:$0xf]
        %v2181 = vld [vmem:[#allocation9 + $0x78] sm:$0xff]
        %v2182 = vld [vmem:[#allocation9 + $0x80] sm:$0xf]
        %v2183 = vld [vmem:[#allocation9 + $0x84] sm:$0xff]
        %v2184 = vld [vmem:[#allocation9 + $0x8c] sm:$0xf]
        %v2185 = vld [vmem:[#allocation9 + $0x90] sm:$0xff]
        %v2186 = vld [vmem:[#allocation9 + $0x98] sm:$0xf]
        %v2187 = vld [vmem:[#allocation9 + $0x9c] sm:$0xff]
        %v2188 = vld [vmem:[#allocation9 + $0xa4] sm:$0xf]
        %v2189 = vld [vmem:[#allocation9 + $0xa8] sm:$0xff]
        %v2190 = vld [vmem:[#allocation9 + $0xb0] sm:$0xf]
        %v2191 = vld [vmem:[#allocation9 + $0xb4] sm:$0xff]
        %v2192 = vld [vmem:[#allocation9 + $0xbc] sm:$0xf]
        %v2193 = vld [vmem:[#allocation11] sm:$0xff]
        %v2194 = vld [vmem:[#allocation11 + $0x8] sm:$0xf]
        %v2195 = vld [vmem:[#allocation11 + $0xc] sm:$0xff]
        %v2196 = vld [vmem:[#allocation11 + $0x14] sm:$0xf]
        %v2197 = vld [vmem:[#allocation11 + $0x18] sm:$0xff]
        %v2198 = vld [vmem:[#allocation11 + $0x20] sm:$0xf]
        %v2199 = vld [vmem:[#allocation11 + $0x24] sm:$0xff]
        %v2200 = vld [vmem:[#allocation11 + $0x2c] sm:$0xf]
        %v2201 = vld [vmem:[#allocation11 + $0x30] sm:$0xff]
        %v2202 = vld [vmem:[#allocation11 + $0x38] sm:$0xf]
        %v2203 = vld [vmem:[#allocation11 + $0x3c] sm:$0xff]
        %v2204 = vld [vmem:[#allocation11 + $0x44] sm:$0xf]
        %v2205 = vld [vmem:[#allocation11 + $0x48] sm:$0xff]
        %v2206 = vld [vmem:[#allocation11 + $0x50] sm:$0xf]
        %v2207 = vld [vmem:[#allocation11 + $0x54] sm:$0xff]
        %v2208 = vld [vmem:[#allocation11 + $0x5c] sm:$0xf]
        %v2209 = vld [vmem:[#allocation11 + $0x60] sm:$0xff]
        %v2210 = vld [vmem:[#allocation11 + $0x68] sm:$0xf]
        %v2211 = vld [vmem:[#allocation11 + $0x6c] sm:$0xff]
        %v2212 = vld [vmem:[#allocation11 + $0x74] sm:$0xf]
        %v2213 = vld [vmem:[#allocation11 + $0x78] sm:$0xff]
        %v2214 = vld [vmem:[#allocation11 + $0x80] sm:$0xf]
        %v2215 = vld [vmem:[#allocation11 + $0x84] sm:$0xff]
        %v2216 = vld [vmem:[#allocation11 + $0x8c] sm:$0xf]
        %v2217 = vld [vmem:[#allocation11 + $0x90] sm:$0xff]
        %v2218 = vld [vmem:[#allocation11 + $0x98] sm:$0xf]
        %v2219 = vld [vmem:[#allocation11 + $0x9c] sm:$0xff]
        %v2220 = vld [vmem:[#allocation11 + $0xa4] sm:$0xf]
        %v2221 = vld [vmem:[#allocation11 + $0xa8] sm:$0xff]
        %v2222 = vld [vmem:[#allocation11 + $0xb0] sm:$0xf]
        %v2223 = vld [vmem:[#allocation11 + $0xb4] sm:$0xff]
        %v2224 = vld [vmem:[#allocation11 + $0xbc] sm:$0xf]
        %v2225 = vpack.c.bf16 %v2018, %v2017
        %v2226 = vpack.c.bf16 %v2020, %v2019
        %v2227 = vpack.c.bf16 %v2022, %v2021
        %v2228 = vpack.c.bf16 %v2024, %v2023
        %v2229 = vpack.c.bf16 %v2026, %v2025
        %v2230 = vpack.c.bf16 %v2028, %v2027
        %v2231 = vpack.c.bf16 %v2030, %v2029
        %v2232 = vpack.c.bf16 %v2032, %v2031
        %v2233 = vld [vmem:[%s14] sm:$0x7]
        %v2235 = vlaneseq
        %v2236 = vshrl.u32 %v2235, 7
        %v2237 = vsub.s32 0, %v2236
        %v2238 = vrot.slane %v2233, %v2237
        %v2239 = vlaneseq
        %v2240 = vshrl.u32 %v2239, 7
        %v2241 = vsub.s32 1, %v2240
        %v2242 = vrot.slane %v2233, %v2241
        %v2243 = vlaneseq
        %v2244 = vshrl.u32 %v2243, 7
        %v2245 = vsub.s32 2, %v2244
        %v2246 = vrot.slane %v2233, %v2245
        %v2282 = vunpack.c.l.b16 %v2161
        %v2283 = vunpack.c.h.b16 %v2161
        %v2284 = vunpack.c.l.b16 %v2162
        %v2285 = vunpack.c.l.b16 %v2163
        %v2286 = vunpack.c.h.b16 %v2163
        %v2287 = vunpack.c.l.b16 %v2164
        %v2288 = vunpack.c.l.b16 %v2165
        %v2289 = vunpack.c.h.b16 %v2165
        %v2290 = vunpack.c.l.b16 %v2166
        %v2291 = vunpack.c.l.b16 %v2167
        %v2292 = vunpack.c.h.b16 %v2167
        %v2293 = vunpack.c.l.b16 %v2168
        %v2294 = vunpack.c.l.b16 %v2169
        %v2295 = vunpack.c.h.b16 %v2169
        %v2296 = vunpack.c.l.b16 %v2170
        %v2297 = vunpack.c.l.b16 %v2171
        %v2298 = vunpack.c.h.b16 %v2171
        %v2299 = vunpack.c.l.b16 %v2172
        %v2300 = vunpack.c.l.b16 %v2173
        %v2301 = vunpack.c.h.b16 %v2173
        %v2302 = vunpack.c.l.b16 %v2174
        %v2303 = vunpack.c.l.b16 %v2175
        %v2304 = vunpack.c.h.b16 %v2175
        %v2305 = vunpack.c.l.b16 %v2176
        %v2306 = vunpack.c.l.b16 %v2177
        %v2307 = vunpack.c.h.b16 %v2177
        %v2308 = vunpack.c.l.b16 %v2178
        %v2309 = vunpack.c.l.b16 %v2179
        %v2310 = vunpack.c.h.b16 %v2179
        %v2311 = vunpack.c.l.b16 %v2180
        %v2312 = vunpack.c.l.b16 %v2181
        %v2313 = vunpack.c.h.b16 %v2181
        %v2314 = vunpack.c.l.b16 %v2182
        %v2315 = vunpack.c.l.b16 %v2183
        %v2316 = vunpack.c.h.b16 %v2183
        %v2317 = vunpack.c.l.b16 %v2184
        %v2318 = vunpack.c.l.b16 %v2185
        %v2319 = vunpack.c.h.b16 %v2185
        %v2320 = vunpack.c.l.b16 %v2186
        %v2321 = vunpack.c.l.b16 %v2187
        %v2322 = vunpack.c.h.b16 %v2187
        %v2323 = vunpack.c.l.b16 %v2188
        %v2324 = vunpack.c.l.b16 %v2189
        %v2325 = vunpack.c.h.b16 %v2189
        %v2326 = vunpack.c.l.b16 %v2190
        %v2327 = vunpack.c.l.b16 %v2191
        %v2328 = vunpack.c.h.b16 %v2191
        %v2329 = vunpack.c.l.b16 %v2192
        %v2330 = vpack.c.b16 %v2285, %v2282
        %v2331 = vpack.c.b16 %v2286, %v2283
        %v2332 = vpack.c.b16 %v2287, %v2284
        %v2333 = vpack.c.b16 %v2291, %v2288
        %v2334 = vpack.c.b16 %v2292, %v2289
        %v2335 = vpack.c.b16 %v2293, %v2290
        %v2336 = vpack.c.b16 %v2297, %v2294
        %v2337 = vpack.c.b16 %v2298, %v2295
        %v2338 = vpack.c.b16 %v2299, %v2296
        %v2339 = vpack.c.b16 %v2303, %v2300
        %v2340 = vpack.c.b16 %v2304, %v2301
        %v2341 = vpack.c.b16 %v2305, %v2302
        %v2342 = vpack.c.b16 %v2309, %v2306
        %v2343 = vpack.c.b16 %v2310, %v2307
        %v2344 = vpack.c.b16 %v2311, %v2308
        %v2345 = vpack.c.b16 %v2315, %v2312
        %v2346 = vpack.c.b16 %v2316, %v2313
        %v2347 = vpack.c.b16 %v2317, %v2314
        %v2348 = vpack.c.b16 %v2321, %v2318
        %v2349 = vpack.c.b16 %v2322, %v2319
        %v2350 = vpack.c.b16 %v2323, %v2320
        %v2351 = vpack.c.b16 %v2327, %v2324
        %v2352 = vpack.c.b16 %v2328, %v2325
        %v2353 = vpack.c.b16 %v2329, %v2326
        %2378 = vmatprep.subr.bf16.mxu0 %v2352
        %2379 = vmatpush1.bf16.msra.mxu0 %v2351
        %2380 = vmatprep.subr.bf16.mxu0 %v2349
        %2381 = vmatpush1.bf16.msra.mxu0 %v2348
        %2382 = vmatprep.subr.bf16.mxu0 %v2346
        %2383 = vmatpush1.bf16.msra.mxu0 %v2345
        %2384 = vmatprep.subr.bf16.mxu0 %v2343
        %2385 = vmatpush1.bf16.msra.mxu0 %v2342
        %2386 = vmatprep.subr.bf16.mxu0 %v2340
        %2387 = vmatpush1.bf16.msra.mxu0 %v2339
        %2388 = vmatprep.subr.bf16.mxu0 %v2337
        %2389 = vmatpush1.bf16.msra.mxu0 %v2336
        %2390 = vmatprep.subr.bf16.mxu0 %v2334
        %2391 = vmatpush1.bf16.msra.mxu0 %v2333
        %2392 = vmatprep.subr.bf16.mxu0 %v2331
        %2393 = vmatpush1.bf16.msra.mxu0 %v2330
        %2394 = vmatprep.subr.bf16.mxu0 0
        %2395 = vmatpush2.bf16.msra.mxu0 0
        %2396 = vmatprep.subr.bf16.mxu0 0
        %2397 = vmatpush2.bf16.msra.mxu0 0
        %2398 = vmatprep.subr.bf16.mxu0 0
        %2399 = vmatpush2.bf16.msra.mxu0 0
        %2400 = vmatprep.subr.bf16.mxu0 0
        %2401 = vmatpush2.bf16.msra.mxu0 0
        %2402 = vmatprep.subr.bf16.mxu0 0
        %2403 = vmatpush2.bf16.msra.mxu0 0
        %2404 = vmatprep.subr.bf16.mxu0 0
        %2405 = vmatpush2.bf16.msra.mxu0 0
        %2406 = vmatprep.subr.bf16.mxu0 0
        %2407 = vmatpush2.bf16.msra.mxu0 0
        %2408 = vmatprep.subr.bf16.mxu0 0
        %2409 = vmatpush2.bf16.msra.mxu0 0
        %2410 = vmatprep.mubr.bf16.mxu0 0
        %2411 = vmatmul.mubr.bf16.gmra.mxu0 %v2225
        %v2412 = vpop.f32.mrf.mxu0
        %v2413 = vadd.f32 %v2238, %v2412
        %v2414 = vpop.f32.mrf.mxu0
        %v2415 = vadd.f32 %v2242, %v2414
        %v2416 = vpop.f32.mrf.mxu0
        %v2417 = vadd.f32 %v2238, %v2416
        %v2418 = vpop.f32.mrf.mxu0
        %v2419 = vadd.f32 %v2242, %v2418
        %2420 = vmatprep.mubr.bf16.mxu0 0
        %2421 = vmatmul.mubr.bf16.gmra.mxu0 %v2226
        %v2422 = vpop.f32.mrf.mxu0
        %v2423 = vadd.f32 %v2238, %v2422
        %v2424 = vpop.f32.mrf.mxu0
        %v2425 = vadd.f32 %v2242, %v2424
        %v2426 = vpop.f32.mrf.mxu0
        %v2427 = vadd.f32 %v2238, %v2426
        %v2428 = vpop.f32.mrf.mxu0
        %v2429 = vadd.f32 %v2242, %v2428
        %2430 = vmatprep.mubr.bf16.mxu0 0
        %2431 = vmatmul.mubr.bf16.gmra.mxu0 %v2227
        %v2432 = vpop.f32.mrf.mxu0
        %v2433 = vadd.f32 %v2238, %v2432
        %v2434 = vpop.f32.mrf.mxu0
        %v2435 = vadd.f32 %v2242, %v2434
        %v2436 = vpop.f32.mrf.mxu0
        %v2437 = vadd.f32 %v2238, %v2436
        %v2438 = vpop.f32.mrf.mxu0
        %v2439 = vadd.f32 %v2242, %v2438
        %2440 = vmatprep.mubr.bf16.mxu0 0
        %2441 = vmatmul.mubr.bf16.gmra.mxu0 %v2228
        %v2442 = vpop.f32.mrf.mxu0
        %v2443 = vadd.f32 %v2238, %v2442
        %v2444 = vpop.f32.mrf.mxu0
        %v2445 = vadd.f32 %v2242, %v2444
        %v2446 = vpop.f32.mrf.mxu0
        %v2447 = vadd.f32 %v2238, %v2446
        %v2448 = vpop.f32.mrf.mxu0
        %v2449 = vadd.f32 %v2242, %v2448
        %2450 = vmatprep.mubr.bf16.mxu0 0
        %2451 = vmatmul.mubr.bf16.gmra.mxu0 %v2229
        %v2452 = vpop.f32.mrf.mxu0
        %v2453 = vadd.f32 %v2238, %v2452
        %v2454 = vpop.f32.mrf.mxu0
        %v2455 = vadd.f32 %v2242, %v2454
        %v2456 = vpop.f32.mrf.mxu0
        %v2457 = vadd.f32 %v2238, %v2456
        %v2458 = vpop.f32.mrf.mxu0
        %v2459 = vadd.f32 %v2242, %v2458
        %2460 = vmatprep.mubr.bf16.mxu0 0
        %2461 = vmatmul.mubr.bf16.gmra.mxu0 %v2230
        %v2462 = vpop.f32.mrf.mxu0
        %v2463 = vadd.f32 %v2238, %v2462
        %v2464 = vpop.f32.mrf.mxu0
        %v2465 = vadd.f32 %v2242, %v2464
        %v2466 = vpop.f32.mrf.mxu0
        %v2467 = vadd.f32 %v2238, %v2466
        %v2468 = vpop.f32.mrf.mxu0
        %v2469 = vadd.f32 %v2242, %v2468
        %2470 = vmatprep.mubr.bf16.mxu0 0
        %2471 = vmatmul.mubr.bf16.gmra.mxu0 %v2231
        %v2472 = vpop.f32.mrf.mxu0
        %v2473 = vadd.f32 %v2238, %v2472
        %v2474 = vpop.f32.mrf.mxu0
        %v2475 = vadd.f32 %v2242, %v2474
        %v2476 = vpop.f32.mrf.mxu0
        %v2477 = vadd.f32 %v2238, %v2476
        %v2478 = vpop.f32.mrf.mxu0
        %v2479 = vadd.f32 %v2242, %v2478
        %2480 = vmatprep.mubr.bf16.mxu0 0
        %2481 = vmatmul.mubr.bf16.gmra.mxu0 %v2232
        %v2482 = vpop.f32.mrf.mxu0
        %v2483 = vadd.f32 %v2238, %v2482
        %v2484 = vpop.f32.mrf.mxu0
        %v2485 = vadd.f32 %v2242, %v2484
        %v2486 = vpop.f32.mrf.mxu0
        %v2487 = vadd.f32 %v2238, %v2486
        %v2488 = vpop.f32.mrf.mxu0
        %v2489 = vadd.f32 %v2242, %v2488
        %2490 = vdwg.mxu0
        %2491 = vmatprep.subr.bf16.mxu0 0
        %2492 = vmatpush1.bf16.msra.mxu0 %v2353
        %2493 = vmatprep.subr.bf16.mxu0 0
        %2494 = vmatpush1.bf16.msra.mxu0 %v2350
        %2495 = vmatprep.subr.bf16.mxu0 0
        %2496 = vmatpush1.bf16.msra.mxu0 %v2347
        %2497 = vmatprep.subr.bf16.mxu0 0
        %2498 = vmatpush1.bf16.msra.mxu0 %v2344
        %2499 = vmatprep.subr.bf16.mxu0 0
        %2500 = vmatpush1.bf16.msra.mxu0 %v2341
        %2501 = vmatprep.subr.bf16.mxu0 0
        %2502 = vmatpush1.bf16.msra.mxu0 %v2338
        %2503 = vmatprep.subr.bf16.mxu0 0
        %2504 = vmatpush1.bf16.msra.mxu0 %v2335
        %2505 = vmatprep.subr.bf16.mxu0 0
        %2506 = vmatpush1.bf16.msra.mxu0 %v2332
        %2507 = vmatprep.subr.bf16.mxu0 0
        %2508 = vmatpush2.bf16.msra.mxu0 0
        %2509 = vmatprep.subr.bf16.mxu0 0
        %2510 = vmatpush2.bf16.msra.mxu0 0
        %2511 = vmatprep.subr.bf16.mxu0 0
        %2512 = vmatpush2.bf16.msra.mxu0 0
        %2513 = vmatprep.subr.bf16.mxu0 0
        %2514 = vmatpush2.bf16.msra.mxu0 0
        %2515 = vmatprep.subr.bf16.mxu0 0
        %2516 = vmatpush2.bf16.msra.mxu0 0
        %2517 = vmatprep.subr.bf16.mxu0 0
        %2518 = vmatpush2.bf16.msra.mxu0 0
        %2519 = vmatprep.subr.bf16.mxu0 0
        %2520 = vmatpush2.bf16.msra.mxu0 0
        %2521 = vmatprep.subr.bf16.mxu0 0
        %2522 = vmatpush2.bf16.msra.mxu0 0
        %2523 = vmatprep.mubr.bf16.mxu0 0
        %2524 = vmatmul.mubr.bf16.gmra.mxu0 %v2225
        %v2525 = vpop.f32.mrf.mxu0
        %v2526 = vadd.f32 %v2246, %v2525
        %v2527 = vpop.f32.mrf.mxu0
        %v2528 = vpop.f32.mrf.mxu0
        %v2529 = vadd.f32 %v2246, %v2528
        %v2530 = vpop.f32.mrf.mxu0
        %2531 = vmatprep.mubr.bf16.mxu0 0
        %2532 = vmatmul.mubr.bf16.gmra.mxu0 %v2226
        %v2533 = vpop.f32.mrf.mxu0
        %v2534 = vadd.f32 %v2246, %v2533
        %v2535 = vpop.f32.mrf.mxu0
        %v2536 = vpop.f32.mrf.mxu0
        %v2537 = vadd.f32 %v2246, %v2536
        %v2538 = vpop.f32.mrf.mxu0
        %2539 = vmatprep.mubr.bf16.mxu0 0
        %2540 = vmatmul.mubr.bf16.gmra.mxu0 %v2227
        %v2541 = vpop.f32.mrf.mxu0
        %v2542 = vadd.f32 %v2246, %v2541
        %v2543 = vpop.f32.mrf.mxu0
        %v2544 = vpop.f32.mrf.mxu0
        %v2545 = vadd.f32 %v2246, %v2544
        %v2546 = vpop.f32.mrf.mxu0
        %2547 = vmatprep.mubr.bf16.mxu0 0
        %2548 = vmatmul.mubr.bf16.gmra.mxu0 %v2228
        %v2549 = vpop.f32.mrf.mxu0
        %v2550 = vadd.f32 %v2246, %v2549
        %v2551 = vpop.f32.mrf.mxu0
        %v2552 = vpop.f32.mrf.mxu0
        %v2553 = vadd.f32 %v2246, %v2552
        %v2554 = vpop.f32.mrf.mxu0
        %2555 = vmatprep.mubr.bf16.mxu0 0
        %2556 = vmatmul.mubr.bf16.gmra.mxu0 %v2229
        %v2557 = vpop.f32.mrf.mxu0
        %v2558 = vadd.f32 %v2246, %v2557
        %v2559 = vpop.f32.mrf.mxu0
        %v2560 = vpop.f32.mrf.mxu0
        %v2561 = vadd.f32 %v2246, %v2560
        %v2562 = vpop.f32.mrf.mxu0
        %2563 = vmatprep.mubr.bf16.mxu0 0
        %2564 = vmatmul.mubr.bf16.gmra.mxu0 %v2230
        %v2565 = vpop.f32.mrf.mxu0
        %v2566 = vadd.f32 %v2246, %v2565
        %v2567 = vpop.f32.mrf.mxu0
        %v2568 = vpop.f32.mrf.mxu0
        %v2569 = vadd.f32 %v2246, %v2568
        %v2570 = vpop.f32.mrf.mxu0
        %2571 = vmatprep.mubr.bf16.mxu0 0
        %2572 = vmatmul.mubr.bf16.gmra.mxu0 %v2231
        %v2573 = vpop.f32.mrf.mxu0
        %v2574 = vadd.f32 %v2246, %v2573
        %v2575 = vpop.f32.mrf.mxu0
        %v2576 = vpop.f32.mrf.mxu0
        %v2577 = vadd.f32 %v2246, %v2576
        %v2578 = vpop.f32.mrf.mxu0
        %2579 = vmatprep.mubr.bf16.mxu0 0
        %2580 = vmatmul.mubr.bf16.gmra.mxu0 %v2232
        %v2581 = vpop.f32.mrf.mxu0
        %v2582 = vadd.f32 %v2246, %v2581
        %v2583 = vpop.f32.mrf.mxu0
        %v2584 = vpop.f32.mrf.mxu0
        %v2585 = vadd.f32 %v2246, %v2584
        %v2586 = vpop.f32.mrf.mxu0
        %2587 = vdwg.mxu0
        %v2588 = vpack.c.bf16 %v2146, %v2145
        %v2589 = vpack.c.bf16 %v2148, %v2147
        %v2590 = vpack.c.bf16 %v2150, %v2149
        %v2591 = vpack.c.bf16 %v2152, %v2151
        %v2592 = vpack.c.bf16 %v2154, %v2153
        %v2593 = vpack.c.bf16 %v2156, %v2155
        %v2594 = vpack.c.bf16 %v2158, %v2157
        %v2595 = vpack.c.bf16 %v2160, %v2159
        %v2628 = vunpack.c.l.b16 %v2193
        %v2629 = vunpack.c.h.b16 %v2193
        %v2630 = vunpack.c.l.b16 %v2194
        %v2631 = vunpack.c.l.b16 %v2195
        %v2632 = vunpack.c.h.b16 %v2195
        %v2633 = vunpack.c.l.b16 %v2196
        %v2634 = vunpack.c.l.b16 %v2197
        %v2635 = vunpack.c.h.b16 %v2197
        %v2636 = vunpack.c.l.b16 %v2198
        %v2637 = vunpack.c.l.b16 %v2199
        %v2638 = vunpack.c.h.b16 %v2199
        %v2639 = vunpack.c.l.b16 %v2200
        %v2640 = vunpack.c.l.b16 %v2201
        %v2641 = vunpack.c.h.b16 %v2201
        %v2642 = vunpack.c.l.b16 %v2202
        %v2643 = vunpack.c.l.b16 %v2203
        %v2644 = vunpack.c.h.b16 %v2203
        %v2645 = vunpack.c.l.b16 %v2204
        %v2646 = vunpack.c.l.b16 %v2205
        %v2647 = vunpack.c.h.b16 %v2205
        %v2648 = vunpack.c.l.b16 %v2206
        %v2649 = vunpack.c.l.b16 %v2207
        %v2650 = vunpack.c.h.b16 %v2207
        %v2651 = vunpack.c.l.b16 %v2208
        %v2652 = vunpack.c.l.b16 %v2209
        %v2653 = vunpack.c.h.b16 %v2209
        %v2654 = vunpack.c.l.b16 %v2210
        %v2655 = vunpack.c.l.b16 %v2211
        %v2656 = vunpack.c.h.b16 %v2211
        %v2657 = vunpack.c.l.b16 %v2212
        %v2658 = vunpack.c.l.b16 %v2213
        %v2659 = vunpack.c.h.b16 %v2213
        %v2660 = vunpack.c.l.b16 %v2214
        %v2661 = vunpack.c.l.b16 %v2215
        %v2662 = vunpack.c.h.b16 %v2215
        %v2663 = vunpack.c.l.b16 %v2216
        %v2664 = vunpack.c.l.b16 %v2217
        %v2665 = vunpack.c.h.b16 %v2217
        %v2666 = vunpack.c.l.b16 %v2218
        %v2667 = vunpack.c.l.b16 %v2219
        %v2668 = vunpack.c.h.b16 %v2219
        %v2669 = vunpack.c.l.b16 %v2220
        %v2670 = vunpack.c.l.b16 %v2221
        %v2671 = vunpack.c.h.b16 %v2221
        %v2672 = vunpack.c.l.b16 %v2222
        %v2673 = vunpack.c.l.b16 %v2223
        %v2674 = vunpack.c.h.b16 %v2223
        %v2675 = vunpack.c.l.b16 %v2224
        %v2676 = vpack.c.b16 %v2631, %v2628
        %v2677 = vpack.c.b16 %v2632, %v2629
        %v2678 = vpack.c.b16 %v2633, %v2630
        %v2679 = vpack.c.b16 %v2637, %v2634
        %v2680 = vpack.c.b16 %v2638, %v2635
        %v2681 = vpack.c.b16 %v2639, %v2636
        %v2682 = vpack.c.b16 %v2643, %v2640
        %v2683 = vpack.c.b16 %v2644, %v2641
        %v2684 = vpack.c.b16 %v2645, %v2642
        %v2685 = vpack.c.b16 %v2649, %v2646
        %v2686 = vpack.c.b16 %v2650, %v2647
        %v2687 = vpack.c.b16 %v2651, %v2648
        %v2688 = vpack.c.b16 %v2655, %v2652
        %v2689 = vpack.c.b16 %v2656, %v2653
        %v2690 = vpack.c.b16 %v2657, %v2654
        %v2691 = vpack.c.b16 %v2661, %v2658
        %v2692 = vpack.c.b16 %v2662, %v2659
        %v2693 = vpack.c.b16 %v2663, %v2660
        %v2694 = vpack.c.b16 %v2667, %v2664
        %v2695 = vpack.c.b16 %v2668, %v2665
        %v2696 = vpack.c.b16 %v2669, %v2666
        %v2697 = vpack.c.b16 %v2673, %v2670
        %v2698 = vpack.c.b16 %v2674, %v2671
        %v2699 = vpack.c.b16 %v2675, %v2672
        %2724 = vmatprep.subr.bf16.mxu0 %v2698
        %2725 = vmatpush1.bf16.msra.mxu0 %v2697
        %2726 = vmatprep.subr.bf16.mxu0 %v2695
        %2727 = vmatpush1.bf16.msra.mxu0 %v2694
        %2728 = vmatprep.subr.bf16.mxu0 %v2692
        %2729 = vmatpush1.bf16.msra.mxu0 %v2691
        %2730 = vmatprep.subr.bf16.mxu0 %v2689
        %2731 = vmatpush1.bf16.msra.mxu0 %v2688
        %2732 = vmatprep.subr.bf16.mxu0 %v2686
        %2733 = vmatpush1.bf16.msra.mxu0 %v2685
        %2734 = vmatprep.subr.bf16.mxu0 %v2683
        %2735 = vmatpush1.bf16.msra.mxu0 %v2682
        %2736 = vmatprep.subr.bf16.mxu0 %v2680
        %2737 = vmatpush1.bf16.msra.mxu0 %v2679
        %2738 = vmatprep.subr.bf16.mxu0 %v2677
        %2739 = vmatpush1.bf16.msra.mxu0 %v2676
        %2740 = vmatprep.subr.bf16.mxu0 0
        %2741 = vmatpush2.bf16.msra.mxu0 0
        %2742 = vmatprep.subr.bf16.mxu0 0
        %2743 = vmatpush2.bf16.msra.mxu0 0
        %2744 = vmatprep.subr.bf16.mxu0 0
        %2745 = vmatpush2.bf16.msra.mxu0 0
        %2746 = vmatprep.subr.bf16.mxu0 0
        %2747 = vmatpush2.bf16.msra.mxu0 0
        %2748 = vmatprep.subr.bf16.mxu0 0
        %2749 = vmatpush2.bf16.msra.mxu0 0
        %2750 = vmatprep.subr.bf16.mxu0 0
        %2751 = vmatpush2.bf16.msra.mxu0 0
        %2752 = vmatprep.subr.bf16.mxu0 0
        %2753 = vmatpush2.bf16.msra.mxu0 0
        %2754 = vmatprep.subr.bf16.mxu0 0
        %2755 = vmatpush2.bf16.msra.mxu0 0
        %2756 = vmatprep.mubr.bf16.mxu0 0
        %2757 = vmatmul.mubr.bf16.gmra.mxu0 %v2588
        %v2758 = vpop.f32.mrf.mxu0
        %v2759 = vadd.f32 0.0, %v2758
        %v2760 = vpop.f32.mrf.mxu0
        %v2761 = vadd.f32 0.0, %v2760
        %v2762 = vpop.f32.mrf.mxu0
        %v2763 = vadd.f32 0.0, %v2762
        %v2764 = vpop.f32.mrf.mxu0
        %v2765 = vadd.f32 0.0, %v2764
        %2766 = vmatprep.mubr.bf16.mxu0 0
        %2767 = vmatmul.mubr.bf16.gmra.mxu0 %v2589
        %v2768 = vpop.f32.mrf.mxu0
        %v2769 = vadd.f32 0.0, %v2768
        %v2770 = vpop.f32.mrf.mxu0
        %v2771 = vadd.f32 0.0, %v2770
        %v2772 = vpop.f32.mrf.mxu0
        %v2773 = vadd.f32 0.0, %v2772
        %v2774 = vpop.f32.mrf.mxu0
        %v2775 = vadd.f32 0.0, %v2774
        %2776 = vmatprep.mubr.bf16.mxu0 0
        %2777 = vmatmul.mubr.bf16.gmra.mxu0 %v2590
        %v2778 = vpop.f32.mrf.mxu0
        %v2779 = vadd.f32 0.0, %v2778
        %v2780 = vpop.f32.mrf.mxu0
        %v2781 = vadd.f32 0.0, %v2780
        %v2782 = vpop.f32.mrf.mxu0
        %v2783 = vadd.f32 0.0, %v2782
        %v2784 = vpop.f32.mrf.mxu0
        %v2785 = vadd.f32 0.0, %v2784
        %2786 = vmatprep.mubr.bf16.mxu0 0
        %2787 = vmatmul.mubr.bf16.gmra.mxu0 %v2591
        %v2788 = vpop.f32.mrf.mxu0
        %v2789 = vadd.f32 0.0, %v2788
        %v2790 = vpop.f32.mrf.mxu0
        %v2791 = vadd.f32 0.0, %v2790
        %v2792 = vpop.f32.mrf.mxu0
        %v2793 = vadd.f32 0.0, %v2792
        %v2794 = vpop.f32.mrf.mxu0
        %v2795 = vadd.f32 0.0, %v2794
        %2796 = vmatprep.mubr.bf16.mxu0 0
        %2797 = vmatmul.mubr.bf16.gmra.mxu0 %v2592
        %v2798 = vpop.f32.mrf.mxu0
        %v2799 = vadd.f32 0.0, %v2798
        %v2800 = vpop.f32.mrf.mxu0
        %v2801 = vadd.f32 0.0, %v2800
        %v2802 = vpop.f32.mrf.mxu0
        %v2803 = vadd.f32 0.0, %v2802
        %v2804 = vpop.f32.mrf.mxu0
        %v2805 = vadd.f32 0.0, %v2804
        %2806 = vmatprep.mubr.bf16.mxu0 0
        %2807 = vmatmul.mubr.bf16.gmra.mxu0 %v2593
        %v2808 = vpop.f32.mrf.mxu0
        %v2809 = vadd.f32 0.0, %v2808
        %v2810 = vpop.f32.mrf.mxu0
        %v2811 = vadd.f32 0.0, %v2810
        %v2812 = vpop.f32.mrf.mxu0
        %v2813 = vadd.f32 0.0, %v2812
        %v2814 = vpop.f32.mrf.mxu0
        %v2815 = vadd.f32 0.0, %v2814
        %2816 = vmatprep.mubr.bf16.mxu0 0
        %2817 = vmatmul.mubr.bf16.gmra.mxu0 %v2594
        %v2818 = vpop.f32.mrf.mxu0
        %v2819 = vadd.f32 0.0, %v2818
        %v2820 = vpop.f32.mrf.mxu0
        %v2821 = vadd.f32 0.0, %v2820
        %v2822 = vpop.f32.mrf.mxu0
        %v2823 = vadd.f32 0.0, %v2822
        %v2824 = vpop.f32.mrf.mxu0
        %v2825 = vadd.f32 0.0, %v2824
        %2826 = vmatprep.mubr.bf16.mxu0 0
        %2827 = vmatmul.mubr.bf16.gmra.mxu0 %v2595
        %v2828 = vpop.f32.mrf.mxu0
        %v2829 = vadd.f32 0.0, %v2828
        %v2830 = vpop.f32.mrf.mxu0
        %v2831 = vadd.f32 0.0, %v2830
        %v2832 = vpop.f32.mrf.mxu0
        %v2833 = vadd.f32 0.0, %v2832
        %v2834 = vpop.f32.mrf.mxu0
        %v2835 = vadd.f32 0.0, %v2834
        %2836 = vdwg.mxu0
        %2837 = vmatprep.subr.bf16.mxu0 0
        %2838 = vmatpush1.bf16.msra.mxu0 %v2699
        %2839 = vmatprep.subr.bf16.mxu0 0
        %2840 = vmatpush1.bf16.msra.mxu0 %v2696
        %2841 = vmatprep.subr.bf16.mxu0 0
        %2842 = vmatpush1.bf16.msra.mxu0 %v2693
        %2843 = vmatprep.subr.bf16.mxu0 0
        %2844 = vmatpush1.bf16.msra.mxu0 %v2690
        %2845 = vmatprep.subr.bf16.mxu0 0
        %2846 = vmatpush1.bf16.msra.mxu0 %v2687
        %2847 = vmatprep.subr.bf16.mxu0 0
        %2848 = vmatpush1.bf16.msra.mxu0 %v2684
        %2849 = vmatprep.subr.bf16.mxu0 0
        %2850 = vmatpush1.bf16.msra.mxu0 %v2681
        %2851 = vmatprep.subr.bf16.mxu0 0
        %2852 = vmatpush1.bf16.msra.mxu0 %v2678
        %2853 = vmatprep.subr.bf16.mxu0 0
        %2854 = vmatpush2.bf16.msra.mxu0 0
        %2855 = vmatprep.subr.bf16.mxu0 0
        %2856 = vmatpush2.bf16.msra.mxu0 0
        %2857 = vmatprep.subr.bf16.mxu0 0
        %2858 = vmatpush2.bf16.msra.mxu0 0
        %2859 = vmatprep.subr.bf16.mxu0 0
        %2860 = vmatpush2.bf16.msra.mxu0 0
        %2861 = vmatprep.subr.bf16.mxu0 0
        %2862 = vmatpush2.bf16.msra.mxu0 0
        %2863 = vmatprep.subr.bf16.mxu0 0
        %2864 = vmatpush2.bf16.msra.mxu0 0
        %2865 = vmatprep.subr.bf16.mxu0 0
        %2866 = vmatpush2.bf16.msra.mxu0 0
        %2867 = vmatprep.subr.bf16.mxu0 0
        %2868 = vmatpush2.bf16.msra.mxu0 0
        %2869 = vmatprep.mubr.bf16.mxu0 0
        %2870 = vmatmul.mubr.bf16.gmra.mxu0 %v2588
        %v2871 = vpop.f32.mrf.mxu0
        %v2872 = vadd.f32 0.0, %v2871
        %v2873 = vpop.f32.mrf.mxu0
        %v2874 = vpop.f32.mrf.mxu0
        %v2875 = vadd.f32 0.0, %v2874
        %v2876 = vpop.f32.mrf.mxu0
        %2877 = vmatprep.mubr.bf16.mxu0 0
        %2878 = vmatmul.mubr.bf16.gmra.mxu0 %v2589
        %v2879 = vpop.f32.mrf.mxu0
        %v2880 = vadd.f32 0.0, %v2879
        %v2881 = vpop.f32.mrf.mxu0
        %v2882 = vpop.f32.mrf.mxu0
        %v2883 = vadd.f32 0.0, %v2882
        %v2884 = vpop.f32.mrf.mxu0
        %2885 = vmatprep.mubr.bf16.mxu0 0
        %2886 = vmatmul.mubr.bf16.gmra.mxu0 %v2590
        %v2887 = vpop.f32.mrf.mxu0
        %v2888 = vadd.f32 0.0, %v2887
        %v2889 = vpop.f32.mrf.mxu0
        %v2890 = vpop.f32.mrf.mxu0
        %v2891 = vadd.f32 0.0, %v2890
        %v2892 = vpop.f32.mrf.mxu0
        %2893 = vmatprep.mubr.bf16.mxu0 0
        %2894 = vmatmul.mubr.bf16.gmra.mxu0 %v2591
        %v2895 = vpop.f32.mrf.mxu0
        %v2896 = vadd.f32 0.0, %v2895
        %v2897 = vpop.f32.mrf.mxu0
        %v2898 = vpop.f32.mrf.mxu0
        %v2899 = vadd.f32 0.0, %v2898
        %v2900 = vpop.f32.mrf.mxu0
        %2901 = vmatprep.mubr.bf16.mxu0 0
        %2902 = vmatmul.mubr.bf16.gmra.mxu0 %v2592
        %v2903 = vpop.f32.mrf.mxu0
        %v2904 = vadd.f32 0.0, %v2903
        %v2905 = vpop.f32.mrf.mxu0
        %v2906 = vpop.f32.mrf.mxu0
        %v2907 = vadd.f32 0.0, %v2906
        %v2908 = vpop.f32.mrf.mxu0
        %2909 = vmatprep.mubr.bf16.mxu0 0
        %2910 = vmatmul.mubr.bf16.gmra.mxu0 %v2593
        %v2911 = vpop.f32.mrf.mxu0
        %v2912 = vadd.f32 0.0, %v2911
        %v2913 = vpop.f32.mrf.mxu0
        %v2914 = vpop.f32.mrf.mxu0
        %v2915 = vadd.f32 0.0, %v2914
        %v2916 = vpop.f32.mrf.mxu0
        %2917 = vmatprep.mubr.bf16.mxu0 0
        %2918 = vmatmul.mubr.bf16.gmra.mxu0 %v2594
        %v2919 = vpop.f32.mrf.mxu0
        %v2920 = vadd.f32 0.0, %v2919
        %v2921 = vpop.f32.mrf.mxu0
        %v2922 = vpop.f32.mrf.mxu0
        %v2923 = vadd.f32 0.0, %v2922
        %v2924 = vpop.f32.mrf.mxu0
        %2925 = vmatprep.mubr.bf16.mxu0 0
        %2926 = vmatmul.mubr.bf16.gmra.mxu0 %v2595
        %v2927 = vpop.f32.mrf.mxu0
        %v2928 = vadd.f32 0.0, %v2927
        %v2929 = vpop.f32.mrf.mxu0
        %v2930 = vpop.f32.mrf.mxu0
        %v2931 = vadd.f32 0.0, %v2930
        %v2932 = vpop.f32.mrf.mxu0
        %2933 = vdwg.mxu0
        %v2934 = vadd.f32 %v2413, %v2759
        %v2935 = vadd.f32 %v2415, %v2761
        %v2936 = vadd.f32 %v2417, %v2763
        %v2937 = vadd.f32 %v2419, %v2765
        %v2938 = vadd.f32 %v2423, %v2769
        %v2939 = vadd.f32 %v2425, %v2771
        %v2940 = vadd.f32 %v2427, %v2773
        %v2941 = vadd.f32 %v2429, %v2775
        %v2942 = vadd.f32 %v2433, %v2779
        %v2943 = vadd.f32 %v2435, %v2781
        %v2944 = vadd.f32 %v2437, %v2783
        %v2945 = vadd.f32 %v2439, %v2785
        %v2946 = vadd.f32 %v2443, %v2789
        %v2947 = vadd.f32 %v2445, %v2791
        %v2948 = vadd.f32 %v2447, %v2793
        %v2949 = vadd.f32 %v2449, %v2795
        %v2950 = vadd.f32 %v2453, %v2799
        %v2951 = vadd.f32 %v2455, %v2801
        %v2952 = vadd.f32 %v2457, %v2803
        %v2953 = vadd.f32 %v2459, %v2805
        %v2954 = vadd.f32 %v2463, %v2809
        %v2955 = vadd.f32 %v2465, %v2811
        %v2956 = vadd.f32 %v2467, %v2813
        %v2957 = vadd.f32 %v2469, %v2815
        %v2958 = vadd.f32 %v2473, %v2819
        %v2959 = vadd.f32 %v2475, %v2821
        %v2960 = vadd.f32 %v2477, %v2823
        %v2961 = vadd.f32 %v2479, %v2825
        %v2962 = vadd.f32 %v2483, %v2829
        %v2963 = vadd.f32 %v2485, %v2831
        %v2964 = vadd.f32 %v2487, %v2833
        %v2965 = vadd.f32 %v2489, %v2835
        %v2966 = vxor.u32 %v2934, 2147483648
        %v2967 = vxor.u32 %v2935, 2147483648
        %v2968 = vxor.u32 %v2936, 2147483648
        %v2969 = vxor.u32 %v2937, 2147483648
        %v2970 = vxor.u32 %v2938, 2147483648
        %v2971 = vxor.u32 %v2939, 2147483648
        %v2972 = vxor.u32 %v2940, 2147483648
        %v2973 = vxor.u32 %v2941, 2147483648
        %v2974 = vxor.u32 %v2942, 2147483648
        %v2975 = vxor.u32 %v2943, 2147483648
        %v2976 = vxor.u32 %v2944, 2147483648
        %v2977 = vxor.u32 %v2945, 2147483648
        %v2978 = vxor.u32 %v2946, 2147483648
        %v2979 = vxor.u32 %v2947, 2147483648
        %v2980 = vxor.u32 %v2948, 2147483648
        %v2981 = vxor.u32 %v2949, 2147483648
        %v2982 = vxor.u32 %v2950, 2147483648
        %v2983 = vxor.u32 %v2951, 2147483648
        %v2984 = vxor.u32 %v2952, 2147483648
        %v2985 = vxor.u32 %v2953, 2147483648
        %v2986 = vxor.u32 %v2954, 2147483648
        %v2987 = vxor.u32 %v2955, 2147483648
        %v2988 = vxor.u32 %v2956, 2147483648
        %v2989 = vxor.u32 %v2957, 2147483648
        %v2990 = vxor.u32 %v2958, 2147483648
        %v2991 = vxor.u32 %v2959, 2147483648
        %v2992 = vxor.u32 %v2960, 2147483648
        %v2993 = vxor.u32 %v2961, 2147483648
        %v2994 = vxor.u32 %v2962, 2147483648
        %v2995 = vxor.u32 %v2963, 2147483648
        %v2996 = vxor.u32 %v2964, 2147483648
        %v2997 = vxor.u32 %v2965, 2147483648
        %v2998 = vmul.f32 %v2966, 1.442695
        %v2999 = vpow.pop %v2998
        %v3000 = vmul.f32 %v2967, 1.442695
        %v3001 = vpow.pop %v3000
        %v3002 = vmul.f32 %v2968, 1.442695
        %v3003 = vpow.pop %v3002
        %v3004 = vmul.f32 %v2969, 1.442695
        %v3005 = vpow.pop %v3004
        %v3006 = vmul.f32 %v2970, 1.442695
        %v3007 = vpow.pop %v3006
        %v3008 = vmul.f32 %v2971, 1.442695
        %v3009 = vpow.pop %v3008
        %v3010 = vmul.f32 %v2972, 1.442695
        %v3011 = vpow.pop %v3010
        %v3012 = vmul.f32 %v2973, 1.442695
        %v3013 = vpow.pop %v3012
        %v3014 = vmul.f32 %v2974, 1.442695
        %v3015 = vpow.pop %v3014
        %v3016 = vmul.f32 %v2975, 1.442695
        %v3017 = vpow.pop %v3016
        %v3018 = vmul.f32 %v2976, 1.442695
        %v3019 = vpow.pop %v3018
        %v3020 = vmul.f32 %v2977, 1.442695
        %v3021 = vpow.pop %v3020
        %v3022 = vmul.f32 %v2978, 1.442695
        %v3023 = vpow.pop %v3022
        %v3024 = vmul.f32 %v2979, 1.442695
        %v3025 = vpow.pop %v3024
        %v3026 = vmul.f32 %v2980, 1.442695
        %v3027 = vpow.pop %v3026
        %v3028 = vmul.f32 %v2981, 1.442695
        %v3029 = vpow.pop %v3028
        %v3030 = vmul.f32 %v2982, 1.442695
        %v3031 = vpow.pop %v3030
        %v3032 = vmul.f32 %v2983, 1.442695
        %v3033 = vpow.pop %v3032
        %v3034 = vmul.f32 %v2984, 1.442695
        %v3035 = vpow.pop %v3034
        %v3036 = vmul.f32 %v2985, 1.442695
        %v3037 = vpow.pop %v3036
        %v3038 = vmul.f32 %v2986, 1.442695
        %v3039 = vpow.pop %v3038
        %v3040 = vmul.f32 %v2987, 1.442695
        %v3041 = vpow.pop %v3040
        %v3042 = vmul.f32 %v2988, 1.442695
        %v3043 = vpow.pop %v3042
        %v3044 = vmul.f32 %v2989, 1.442695
        %v3045 = vpow.pop %v3044
        %v3046 = vmul.f32 %v2990, 1.442695
        %v3047 = vpow.pop %v3046
        %v3048 = vmul.f32 %v2991, 1.442695
        %v3049 = vpow.pop %v3048
        %v3050 = vmul.f32 %v2992, 1.442695
        %v3051 = vpow.pop %v3050
        %v3052 = vmul.f32 %v2993, 1.442695
        %v3053 = vpow.pop %v3052
        %v3054 = vmul.f32 %v2994, 1.442695
        %v3055 = vpow.pop %v3054
        %v3056 = vmul.f32 %v2995, 1.442695
        %v3057 = vpow.pop %v3056
        %v3058 = vmul.f32 %v2996, 1.442695
        %v3059 = vpow.pop %v3058
        %v3060 = vmul.f32 %v2997, 1.442695
        %v3061 = vpow.pop %v3060
        %v3062 = vadd.f32 %v2999, 1.0
        %v3063 = vadd.f32 %v3001, 1.0
        %v3064 = vadd.f32 %v3003, 1.0
        %v3065 = vadd.f32 %v3005, 1.0
        %v3066 = vadd.f32 %v3007, 1.0
        %v3067 = vadd.f32 %v3009, 1.0
        %v3068 = vadd.f32 %v3011, 1.0
        %v3069 = vadd.f32 %v3013, 1.0
        %v3070 = vadd.f32 %v3015, 1.0
        %v3071 = vadd.f32 %v3017, 1.0
        %v3072 = vadd.f32 %v3019, 1.0
        %v3073 = vadd.f32 %v3021, 1.0
        %v3074 = vadd.f32 %v3023, 1.0
        %v3075 = vadd.f32 %v3025, 1.0
        %v3076 = vadd.f32 %v3027, 1.0
        %v3077 = vadd.f32 %v3029, 1.0
        %v3078 = vadd.f32 %v3031, 1.0
        %v3079 = vadd.f32 %v3033, 1.0
        %v3080 = vadd.f32 %v3035, 1.0
        %v3081 = vadd.f32 %v3037, 1.0
        %v3082 = vadd.f32 %v3039, 1.0
        %v3083 = vadd.f32 %v3041, 1.0
        %v3084 = vadd.f32 %v3043, 1.0
        %v3085 = vadd.f32 %v3045, 1.0
        %v3086 = vadd.f32 %v3047, 1.0
        %v3087 = vadd.f32 %v3049, 1.0
        %v3088 = vadd.f32 %v3051, 1.0
        %v3089 = vadd.f32 %v3053, 1.0
        %v3090 = vadd.f32 %v3055, 1.0
        %v3091 = vadd.f32 %v3057, 1.0
        %v3092 = vadd.f32 %v3059, 1.0
        %v3093 = vadd.f32 %v3061, 1.0
        %v3094 = vrcp.pop %v3062
        %v3095 = vmul.f32 1.0, %v3094
        %v3096 = vrcp.pop %v3063
        %v3097 = vmul.f32 1.0, %v3096
        %v3098 = vrcp.pop %v3064
        %v3099 = vmul.f32 1.0, %v3098
        %v3100 = vrcp.pop %v3065
        %v3101 = vmul.f32 1.0, %v3100
        %v3102 = vrcp.pop %v3066
        %v3103 = vmul.f32 1.0, %v3102
        %v3104 = vrcp.pop %v3067
        %v3105 = vmul.f32 1.0, %v3104
        %v3106 = vrcp.pop %v3068
        %v3107 = vmul.f32 1.0, %v3106
        %v3108 = vrcp.pop %v3069
        %v3109 = vmul.f32 1.0, %v3108
        %v3110 = vrcp.pop %v3070
        %v3111 = vmul.f32 1.0, %v3110
        %v3112 = vrcp.pop %v3071
        %v3113 = vmul.f32 1.0, %v3112
        %v3114 = vrcp.pop %v3072
        %v3115 = vmul.f32 1.0, %v3114
        %v3116 = vrcp.pop %v3073
        %v3117 = vmul.f32 1.0, %v3116
        %v3118 = vrcp.pop %v3074
        %v3119 = vmul.f32 1.0, %v3118
        %v3120 = vrcp.pop %v3075
        %v3121 = vmul.f32 1.0, %v3120
        %v3122 = vrcp.pop %v3076
        %v3123 = vmul.f32 1.0, %v3122
        %v3124 = vrcp.pop %v3077
        %v3125 = vmul.f32 1.0, %v3124
        %v3126 = vrcp.pop %v3078
        %v3127 = vmul.f32 1.0, %v3126
        %v3128 = vrcp.pop %v3079
        %v3129 = vmul.f32 1.0, %v3128
        %v3130 = vrcp.pop %v3080
        %v3131 = vmul.f32 1.0, %v3130
        %v3132 = vrcp.pop %v3081
        %v3133 = vmul.f32 1.0, %v3132
        %v3134 = vrcp.pop %v3082
        %v3135 = vmul.f32 1.0, %v3134
        %v3136 = vrcp.pop %v3083
        %v3137 = vmul.f32 1.0, %v3136
        %v3138 = vrcp.pop %v3084
        %v3139 = vmul.f32 1.0, %v3138
        %v3140 = vrcp.pop %v3085
        %v3141 = vmul.f32 1.0, %v3140
        %v3142 = vrcp.pop %v3086
        %v3143 = vmul.f32 1.0, %v3142
        %v3144 = vrcp.pop %v3087
        %v3145 = vmul.f32 1.0, %v3144
        %v3146 = vrcp.pop %v3088
        %v3147 = vmul.f32 1.0, %v3146
        %v3148 = vrcp.pop %v3089
        %v3149 = vmul.f32 1.0, %v3148
        %v3150 = vrcp.pop %v3090
        %v3151 = vmul.f32 1.0, %v3150
        %v3152 = vrcp.pop %v3091
        %v3153 = vmul.f32 1.0, %v3152
        %v3154 = vrcp.pop %v3092
        %v3155 = vmul.f32 1.0, %v3154
        %v3156 = vrcp.pop %v3093
        %v3157 = vmul.f32 1.0, %v3156
        %v3158 = vld [vmem:[%s16] sm:$0x1]
        %v3160 = vlaneseq
        %v3161 = vshrl.u32 %v3160, 7
        %v3162 = vsub.s32 0, %v3161
        %v3163 = vrot.slane %v3158, %v3162
        %v3165 = vadd.f32 %v2872, %v3163
        %v3166 = vadd.f32 %v2875, %v3163
        %v3167 = vadd.f32 %v2880, %v3163
        %v3168 = vadd.f32 %v2883, %v3163
        %v3169 = vadd.f32 %v2888, %v3163
        %v3170 = vadd.f32 %v2891, %v3163
        %v3171 = vadd.f32 %v2896, %v3163
        %v3172 = vadd.f32 %v2899, %v3163
        %v3173 = vadd.f32 %v2904, %v3163
        %v3174 = vadd.f32 %v2907, %v3163
        %v3175 = vadd.f32 %v2912, %v3163
        %v3176 = vadd.f32 %v2915, %v3163
        %v3177 = vadd.f32 %v2920, %v3163
        %v3178 = vadd.f32 %v2923, %v3163
        %v3179 = vadd.f32 %v2928, %v3163
        %v3180 = vadd.f32 %v2931, %v3163
        %v3181 = vmul.f32 %v3095, %v3165
        %v3182 = vmul.f32 %v3099, %v3166
        %v3183 = vmul.f32 %v3103, %v3167
        %v3184 = vmul.f32 %v3107, %v3168
        %v3185 = vmul.f32 %v3111, %v3169
        %v3186 = vmul.f32 %v3115, %v3170
        %v3187 = vmul.f32 %v3119, %v3171
        %v3188 = vmul.f32 %v3123, %v3172
        %v3189 = vmul.f32 %v3127, %v3173
        %v3190 = vmul.f32 %v3131, %v3174
        %v3191 = vmul.f32 %v3135, %v3175
        %v3192 = vmul.f32 %v3139, %v3176
        %v3193 = vmul.f32 %v3143, %v3177
        %v3194 = vmul.f32 %v3147, %v3178
        %v3195 = vmul.f32 %v3151, %v3179
        %v3196 = vmul.f32 %v3155, %v3180
        %v3197 = vadd.f32 %v2526, %v3181
        %v3198 = vadd.f32 %v2529, %v3182
        %v3199 = vadd.f32 %v2534, %v3183
        %v3200 = vadd.f32 %v2537, %v3184
        %v3201 = vadd.f32 %v2542, %v3185
        %v3202 = vadd.f32 %v2545, %v3186
        %v3203 = vadd.f32 %v2550, %v3187
        %v3204 = vadd.f32 %v2553, %v3188
        %v3205 = vadd.f32 %v2558, %v3189
        %v3206 = vadd.f32 %v2561, %v3190
        %v3207 = vadd.f32 %v2566, %v3191
        %v3208 = vadd.f32 %v2569, %v3192
        %v3209 = vadd.f32 %v2574, %v3193
        %v3210 = vadd.f32 %v2577, %v3194
        %v3211 = vadd.f32 %v2582, %v3195
        %v3212 = vadd.f32 %v2585, %v3196
        %v3213 = vtanh.pop %v3197
        %v3214 = vtanh.pop %v3198
        %v3215 = vtanh.pop %v3199
        %v3216 = vtanh.pop %v3200
        %v3217 = vtanh.pop %v3201
        %v3218 = vtanh.pop %v3202
        %v3219 = vtanh.pop %v3203
        %v3220 = vtanh.pop %v3204
        %v3221 = vtanh.pop %v3205
        %v3222 = vtanh.pop %v3206
        %v3223 = vtanh.pop %v3207
        %v3224 = vtanh.pop %v3208
        %v3225 = vtanh.pop %v3209
        %v3226 = vtanh.pop %v3210
        %v3227 = vtanh.pop %v3211
        %v3228 = vtanh.pop %v3212
        %v3229 = vsub.f32 1.0, %v3097
        %v3230 = vsub.f32 1.0, %v3101
        %v3231 = vsub.f32 1.0, %v3105
        %v3232 = vsub.f32 1.0, %v3109
        %v3233 = vsub.f32 1.0, %v3113
        %v3234 = vsub.f32 1.0, %v3117
        %v3235 = vsub.f32 1.0, %v3121
        %v3236 = vsub.f32 1.0, %v3125
        %v3237 = vsub.f32 1.0, %v3129
        %v3238 = vsub.f32 1.0, %v3133
        %v3239 = vsub.f32 1.0, %v3137
        %v3240 = vsub.f32 1.0, %v3141
        %v3241 = vsub.f32 1.0, %v3145
        %v3242 = vsub.f32 1.0, %v3149
        %v3243 = vsub.f32 1.0, %v3153
        %v3244 = vsub.f32 1.0, %v3157
        %v3245 = vmul.f32 %v3229, %v3213
        %v3246 = vmul.f32 %v3230, %v3214
        %v3247 = vmul.f32 %v3231, %v3215
        %v3248 = vmul.f32 %v3232, %v3216
        %v3249 = vmul.f32 %v3233, %v3217
        %v3250 = vmul.f32 %v3234, %v3218
        %v3251 = vmul.f32 %v3235, %v3219
        %v3252 = vmul.f32 %v3236, %v3220
        %v3253 = vmul.f32 %v3237, %v3221
        %v3254 = vmul.f32 %v3238, %v3222
        %v3255 = vmul.f32 %v3239, %v3223
        %v3256 = vmul.f32 %v3240, %v3224
        %v3257 = vmul.f32 %v3241, %v3225
        %v3258 = vmul.f32 %v3242, %v3226
        %v3259 = vmul.f32 %v3243, %v3227
        %v3260 = vmul.f32 %v3244, %v3228
        %v3261 = vmul.f32 %v3097, %v2145
        %v3262 = vmul.f32 %v3101, %v2146
        %v3263 = vmul.f32 %v3105, %v2147
        %v3264 = vmul.f32 %v3109, %v2148
        %v3265 = vmul.f32 %v3113, %v2149
        %v3266 = vmul.f32 %v3117, %v2150
        %v3267 = vmul.f32 %v3121, %v2151
        %v3268 = vmul.f32 %v3125, %v2152
        %v3269 = vmul.f32 %v3129, %v2153
        %v3270 = vmul.f32 %v3133, %v2154
        %v3271 = vmul.f32 %v3137, %v2155
        %v3272 = vmul.f32 %v3141, %v2156
        %v3273 = vmul.f32 %v3145, %v2157
        %v3274 = vmul.f32 %v3149, %v2158
        %v3275 = vmul.f32 %v3153, %v2159
        %v3276 = vmul.f32 %v3157, %v2160
        %v3277 = vadd.f32 %v3245, %v3261
        %v3278 = vadd.f32 %v3246, %v3262
        %v3279 = vadd.f32 %v3247, %v3263
        %v3280 = vadd.f32 %v3248, %v3264
        %v3281 = vadd.f32 %v3249, %v3265
        %v3282 = vadd.f32 %v3250, %v3266
        %v3283 = vadd.f32 %v3251, %v3267
        %v3284 = vadd.f32 %v3252, %v3268
        %v3285 = vadd.f32 %v3253, %v3269
        %v3286 = vadd.f32 %v3254, %v3270
        %v3287 = vadd.f32 %v3255, %v3271
        %v3288 = vadd.f32 %v3256, %v3272
        %v3289 = vadd.f32 %v3257, %v3273
        %v3290 = vadd.f32 %v3258, %v3274
        %v3291 = vadd.f32 %v3259, %v3275
        %v3292 = vadd.f32 %v3260, %v3276
        %3293 = vst [vmem:[%s801] sm:$0xff] %v3277
        %3294 = vst [vmem:[%s801 + $0x8] sm:$0xff] %v3278
        %3295 = vst [vmem:[%s801 + $0x10] sm:$0xff] %v3279
        %3296 = vst [vmem:[%s801 + $0x18] sm:$0xff] %v3280
        %3297 = vst [vmem:[%s801 + $0x20] sm:$0xff] %v3281
        %3298 = vst [vmem:[%s801 + $0x28] sm:$0xff] %v3282
        %3299 = vst [vmem:[%s801 + $0x30] sm:$0xff] %v3283
        %3300 = vst [vmem:[%s801 + $0x38] sm:$0xff] %v3284
        %3301 = vst [vmem:[%s801 + $0x40] sm:$0xff] %v3285
        %3302 = vst [vmem:[%s801 + $0x48] sm:$0xff] %v3286
        %3303 = vst [vmem:[%s801 + $0x50] sm:$0xff] %v3287
        %3304 = vst [vmem:[%s801 + $0x58] sm:$0xff] %v3288
        %3305 = vst [vmem:[%s801 + $0x60] sm:$0xff] %v3289
        %3306 = vst [vmem:[%s801 + $0x68] sm:$0xff] %v3290
        %3307 = vst [vmem:[%s801 + $0x70] sm:$0xff] %v3291
        %3308 = vst [vmem:[%s801 + $0x78] sm:$0xff] %v3292
        %v3309 = vld [vmem:[%s17] sm:$0x1]
        %v3310 = vld [vmem:[%s18] sm:$0x1]
        %3311 = vadd.xlane.f32.xlu0 %v3277
        %v3312 = vpop.xlane.xlu0 %3311
        %3313 = vadd.xlane.f32.xlu0 %v3278
        %v3314 = vpop.xlane.xlu0 %3313
        %3315 = vadd.xlane.f32.xlu0 %v3279
        %v3316 = vpop.xlane.xlu0 %3315
        %3317 = vadd.xlane.f32.xlu0 %v3280
        %v3318 = vpop.xlane.xlu0 %3317
        %3319 = vadd.xlane.f32.xlu0 %v3281
        %v3320 = vpop.xlane.xlu0 %3319
        %3321 = vadd.xlane.f32.xlu0 %v3282
        %v3322 = vpop.xlane.xlu0 %3321
        %3323 = vadd.xlane.f32.xlu0 %v3283
        %v3324 = vpop.xlane.xlu0 %3323
        %3325 = vadd.xlane.f32.xlu0 %v3284
        %v3326 = vpop.xlane.xlu0 %3325
        %3327 = vadd.xlane.f32.xlu0 %v3285
        %v3328 = vpop.xlane.xlu0 %3327
        %3329 = vadd.xlane.f32.xlu0 %v3286
        %v3330 = vpop.xlane.xlu0 %3329
        %3331 = vadd.xlane.f32.xlu0 %v3287
        %v3332 = vpop.xlane.xlu0 %3331
        %3333 = vadd.xlane.f32.xlu0 %v3288
        %v3334 = vpop.xlane.xlu0 %3333
        %3335 = vadd.xlane.f32.xlu0 %v3289
        %v3336 = vpop.xlane.xlu0 %3335
        %3337 = vadd.xlane.f32.xlu0 %v3290
        %v3338 = vpop.xlane.xlu0 %3337
        %3339 = vadd.xlane.f32.xlu0 %v3291
        %v3340 = vpop.xlane.xlu0 %3339
        %3341 = vadd.xlane.f32.xlu0 %v3292
        %v3342 = vpop.xlane.xlu0 %3341
        %v3343 = vmul.f32 %v3277, %v3277
        %v3344 = vmul.f32 %v3278, %v3278
        %v3345 = vmul.f32 %v3279, %v3279
        %v3346 = vmul.f32 %v3280, %v3280
        %v3347 = vmul.f32 %v3281, %v3281
        %v3348 = vmul.f32 %v3282, %v3282
        %v3349 = vmul.f32 %v3283, %v3283
        %v3350 = vmul.f32 %v3284, %v3284
        %v3351 = vmul.f32 %v3285, %v3285
        %v3352 = vmul.f32 %v3286, %v3286
        %v3353 = vmul.f32 %v3287, %v3287
        %v3354 = vmul.f32 %v3288, %v3288
        %v3355 = vmul.f32 %v3289, %v3289
        %v3356 = vmul.f32 %v3290, %v3290
        %v3357 = vmul.f32 %v3291, %v3291
        %v3358 = vmul.f32 %v3292, %v3292
        %3359 = vadd.xlane.f32.xlu0 %v3343
        %v3360 = vpop.xlane.xlu0 %3359
        %3361 = vadd.xlane.f32.xlu0 %v3344
        %v3362 = vpop.xlane.xlu0 %3361
        %3363 = vadd.xlane.f32.xlu0 %v3345
        %v3364 = vpop.xlane.xlu0 %3363
        %3365 = vadd.xlane.f32.xlu0 %v3346
        %v3366 = vpop.xlane.xlu0 %3365
        %3367 = vadd.xlane.f32.xlu0 %v3347
        %v3368 = vpop.xlane.xlu0 %3367
        %3369 = vadd.xlane.f32.xlu0 %v3348
        %v3370 = vpop.xlane.xlu0 %3369
        %3371 = vadd.xlane.f32.xlu0 %v3349
        %v3372 = vpop.xlane.xlu0 %3371
        %3373 = vadd.xlane.f32.xlu0 %v3350
        %v3374 = vpop.xlane.xlu0 %3373
        %3375 = vadd.xlane.f32.xlu0 %v3351
        %v3376 = vpop.xlane.xlu0 %3375
        %3377 = vadd.xlane.f32.xlu0 %v3352
        %v3378 = vpop.xlane.xlu0 %3377
        %3379 = vadd.xlane.f32.xlu0 %v3353
        %v3380 = vpop.xlane.xlu0 %3379
        %3381 = vadd.xlane.f32.xlu0 %v3354
        %v3382 = vpop.xlane.xlu0 %3381
        %3383 = vadd.xlane.f32.xlu0 %v3355
        %v3384 = vpop.xlane.xlu0 %3383
        %3385 = vadd.xlane.f32.xlu0 %v3356
        %v3386 = vpop.xlane.xlu0 %3385
        %3387 = vadd.xlane.f32.xlu0 %v3357
        %v3388 = vpop.xlane.xlu0 %3387
        %3389 = vadd.xlane.f32.xlu0 %v3358
        %v3390 = vpop.xlane.xlu0 %3389
        %v3391 = vmul.f32 %v3312, 0.015625
        %v3392 = vmul.f32 %v3314, 0.015625
        %v3393 = vmul.f32 %v3316, 0.015625
        %v3394 = vmul.f32 %v3318, 0.015625
        %v3395 = vmul.f32 %v3320, 0.015625
        %v3396 = vmul.f32 %v3322, 0.015625
        %v3397 = vmul.f32 %v3324, 0.015625
        %v3398 = vmul.f32 %v3326, 0.015625
        %v3399 = vmul.f32 %v3328, 0.015625
        %v3400 = vmul.f32 %v3330, 0.015625
        %v3401 = vmul.f32 %v3332, 0.015625
        %v3402 = vmul.f32 %v3334, 0.015625
        %v3403 = vmul.f32 %v3336, 0.015625
        %v3404 = vmul.f32 %v3338, 0.015625
        %v3405 = vmul.f32 %v3340, 0.015625
        %v3406 = vmul.f32 %v3342, 0.015625
        %v3407 = vmul.f32 %v3360, 0.015625
        %v3408 = vmul.f32 %v3362, 0.015625
        %v3409 = vmul.f32 %v3364, 0.015625
        %v3410 = vmul.f32 %v3366, 0.015625
        %v3411 = vmul.f32 %v3368, 0.015625
        %v3412 = vmul.f32 %v3370, 0.015625
        %v3413 = vmul.f32 %v3372, 0.015625
        %v3414 = vmul.f32 %v3374, 0.015625
        %v3415 = vmul.f32 %v3376, 0.015625
        %v3416 = vmul.f32 %v3378, 0.015625
        %v3417 = vmul.f32 %v3380, 0.015625
        %v3418 = vmul.f32 %v3382, 0.015625
        %v3419 = vmul.f32 %v3384, 0.015625
        %v3420 = vmul.f32 %v3386, 0.015625
        %v3421 = vmul.f32 %v3388, 0.015625
        %v3422 = vmul.f32 %v3390, 0.015625
        %v3423 = vmul.f32 %v3391, %v3391
        %v3424 = vmul.f32 %v3392, %v3392
        %v3425 = vmul.f32 %v3393, %v3393
        %v3426 = vmul.f32 %v3394, %v3394
        %v3427 = vmul.f32 %v3395, %v3395
        %v3428 = vmul.f32 %v3396, %v3396
        %v3429 = vmul.f32 %v3397, %v3397
        %v3430 = vmul.f32 %v3398, %v3398
        %v3431 = vmul.f32 %v3399, %v3399
        %v3432 = vmul.f32 %v3400, %v3400
        %v3433 = vmul.f32 %v3401, %v3401
        %v3434 = vmul.f32 %v3402, %v3402
        %v3435 = vmul.f32 %v3403, %v3403
        %v3436 = vmul.f32 %v3404, %v3404
        %v3437 = vmul.f32 %v3405, %v3405
        %v3438 = vmul.f32 %v3406, %v3406
        %v3439 = vsub.f32 %v3407, %v3423
        %v3440 = vsub.f32 %v3408, %v3424
        %v3441 = vsub.f32 %v3409, %v3425
        %v3442 = vsub.f32 %v3410, %v3426
        %v3443 = vsub.f32 %v3411, %v3427
        %v3444 = vsub.f32 %v3412, %v3428
        %v3445 = vsub.f32 %v3413, %v3429
        %v3446 = vsub.f32 %v3414, %v3430
        %v3447 = vsub.f32 %v3415, %v3431
        %v3448 = vsub.f32 %v3416, %v3432
        %v3449 = vsub.f32 %v3417, %v3433
        %v3450 = vsub.f32 %v3418, %v3434
        %v3451 = vsub.f32 %v3419, %v3435
        %v3452 = vsub.f32 %v3420, %v3436
        %v3453 = vsub.f32 %v3421, %v3437
        %v3454 = vsub.f32 %v3422, %v3438
        %v3455 = vmax.f32 %v3439, 0.0
        %v3456 = vmax.f32 %v3440, 0.0
        %v3457 = vmax.f32 %v3441, 0.0
        %v3458 = vmax.f32 %v3442, 0.0
        %v3459 = vmax.f32 %v3443, 0.0
        %v3460 = vmax.f32 %v3444, 0.0
        %v3461 = vmax.f32 %v3445, 0.0
        %v3462 = vmax.f32 %v3446, 0.0
        %v3463 = vmax.f32 %v3447, 0.0
        %v3464 = vmax.f32 %v3448, 0.0
        %v3465 = vmax.f32 %v3449, 0.0
        %v3466 = vmax.f32 %v3450, 0.0
        %v3467 = vmax.f32 %v3451, 0.0
        %v3468 = vmax.f32 %v3452, 0.0
        %v3469 = vmax.f32 %v3453, 0.0
        %v3470 = vmax.f32 %v3454, 0.0
        %v3471 = vsub.f32 %v3277, %v3391
        %v3472 = vsub.f32 %v3278, %v3392
        %v3473 = vsub.f32 %v3279, %v3393
        %v3474 = vsub.f32 %v3280, %v3394
        %v3475 = vsub.f32 %v3281, %v3395
        %v3476 = vsub.f32 %v3282, %v3396
        %v3477 = vsub.f32 %v3283, %v3397
        %v3478 = vsub.f32 %v3284, %v3398
        %v3479 = vsub.f32 %v3285, %v3399
        %v3480 = vsub.f32 %v3286, %v3400
        %v3481 = vsub.f32 %v3287, %v3401
        %v3482 = vsub.f32 %v3288, %v3402
        %v3483 = vsub.f32 %v3289, %v3403
        %v3484 = vsub.f32 %v3290, %v3404
        %v3485 = vsub.f32 %v3291, %v3405
        %v3486 = vsub.f32 %v3292, %v3406
        %v3487 = vadd.f32 %v3455, 1e-05
        %v3488 = vadd.f32 %v3456, 1e-05
        %v3489 = vadd.f32 %v3457, 1e-05
        %v3490 = vadd.f32 %v3458, 1e-05
        %v3491 = vadd.f32 %v3459, 1e-05
        %v3492 = vadd.f32 %v3460, 1e-05
        %v3493 = vadd.f32 %v3461, 1e-05
        %v3494 = vadd.f32 %v3462, 1e-05
        %v3495 = vadd.f32 %v3463, 1e-05
        %v3496 = vadd.f32 %v3464, 1e-05
        %v3497 = vadd.f32 %v3465, 1e-05
        %v3498 = vadd.f32 %v3466, 1e-05
        %v3499 = vadd.f32 %v3467, 1e-05
        %v3500 = vadd.f32 %v3468, 1e-05
        %v3501 = vadd.f32 %v3469, 1e-05
        %v3502 = vadd.f32 %v3470, 1e-05
        %v3503 = vrsqrt.pop %v3487
        %v3504 = vrsqrt.pop %v3488
        %v3505 = vrsqrt.pop %v3489
        %v3506 = vrsqrt.pop %v3490
        %v3507 = vrsqrt.pop %v3491
        %v3508 = vrsqrt.pop %v3492
        %v3509 = vrsqrt.pop %v3493
        %v3510 = vrsqrt.pop %v3494
        %v3511 = vrsqrt.pop %v3495
        %v3512 = vrsqrt.pop %v3496
        %v3513 = vrsqrt.pop %v3497
        %v3514 = vrsqrt.pop %v3498
        %v3515 = vrsqrt.pop %v3499
        %v3516 = vrsqrt.pop %v3500
        %v3517 = vrsqrt.pop %v3501
        %v3518 = vrsqrt.pop %v3502
        %v3519 = vmul.f32 %v3471, %v3503
        %v3520 = vmul.f32 %v3472, %v3504
        %v3521 = vmul.f32 %v3473, %v3505
        %v3522 = vmul.f32 %v3474, %v3506
        %v3523 = vmul.f32 %v3475, %v3507
        %v3524 = vmul.f32 %v3476, %v3508
        %v3525 = vmul.f32 %v3477, %v3509
        %v3526 = vmul.f32 %v3478, %v3510
        %v3527 = vmul.f32 %v3479, %v3511
        %v3528 = vmul.f32 %v3480, %v3512
        %v3529 = vmul.f32 %v3481, %v3513
        %v3530 = vmul.f32 %v3482, %v3514
        %v3531 = vmul.f32 %v3483, %v3515
        %v3532 = vmul.f32 %v3484, %v3516
        %v3533 = vmul.f32 %v3485, %v3517
        %v3534 = vmul.f32 %v3486, %v3518
        %v3536 = vlaneseq
        %v3537 = vshrl.u32 %v3536, 7
        %v3538 = vsub.s32 0, %v3537
        %v3539 = vrot.slane %v3309, %v3538
        %v3541 = vmul.f32 %v3519, %v3539
        %v3542 = vmul.f32 %v3520, %v3539
        %v3543 = vmul.f32 %v3521, %v3539
        %v3544 = vmul.f32 %v3522, %v3539
        %v3545 = vmul.f32 %v3523, %v3539
        %v3546 = vmul.f32 %v3524, %v3539
        %v3547 = vmul.f32 %v3525, %v3539
        %v3548 = vmul.f32 %v3526, %v3539
        %v3549 = vmul.f32 %v3527, %v3539
        %v3550 = vmul.f32 %v3528, %v3539
        %v3551 = vmul.f32 %v3529, %v3539
        %v3552 = vmul.f32 %v3530, %v3539
        %v3553 = vmul.f32 %v3531, %v3539
        %v3554 = vmul.f32 %v3532, %v3539
        %v3555 = vmul.f32 %v3533, %v3539
        %v3556 = vmul.f32 %v3534, %v3539
        %v3558 = vlaneseq
        %v3559 = vshrl.u32 %v3558, 7
        %v3560 = vsub.s32 0, %v3559
        %v3561 = vrot.slane %v3310, %v3560
        %v3563 = vadd.f32 %v3541, %v3561
        %v3564 = vadd.f32 %v3542, %v3561
        %v3565 = vadd.f32 %v3543, %v3561
        %v3566 = vadd.f32 %v3544, %v3561
        %v3567 = vadd.f32 %v3545, %v3561
        %v3568 = vadd.f32 %v3546, %v3561
        %v3569 = vadd.f32 %v3547, %v3561
        %v3570 = vadd.f32 %v3548, %v3561
        %v3571 = vadd.f32 %v3549, %v3561
        %v3572 = vadd.f32 %v3550, %v3561
        %v3573 = vadd.f32 %v3551, %v3561
        %v3574 = vadd.f32 %v3552, %v3561
        %v3575 = vadd.f32 %v3553, %v3561
        %v3576 = vadd.f32 %v3554, %v3561
        %v3577 = vadd.f32 %v3555, %v3561
        %v3578 = vadd.f32 %v3556, %v3561
        %v3579 = vld [vmem:[%s19] sm:$0x1]
        %v3581 = vlaneseq
        %v3582 = vshrl.u32 %v3581, 7
        %v3583 = vsub.s32 0, %v3582
        %v3584 = vrot.slane %v3579, %v3583
        %v3586 = vmul.f32 %v3563, %v3584
        %v3587 = vmul.f32 %v3564, %v3584
        %v3588 = vmul.f32 %v3565, %v3584
        %v3589 = vmul.f32 %v3566, %v3584
        %v3590 = vmul.f32 %v3567, %v3584
        %v3591 = vmul.f32 %v3568, %v3584
        %v3592 = vmul.f32 %v3569, %v3584
        %v3593 = vmul.f32 %v3570, %v3584
        %v3594 = vmul.f32 %v3571, %v3584
        %v3595 = vmul.f32 %v3572, %v3584
        %v3596 = vmul.f32 %v3573, %v3584
        %v3597 = vmul.f32 %v3574, %v3584
        %v3598 = vmul.f32 %v3575, %v3584
        %v3599 = vmul.f32 %v3576, %v3584
        %v3600 = vmul.f32 %v3577, %v3584
        %v3601 = vmul.f32 %v3578, %v3584
        %3602 = vadd.xlane.f32.xlu0 %v3586
        %v3603 = vpop.xlane.xlu0 %3602
        %3604 = vadd.xlane.f32.xlu0 %v3587
        %v3605 = vpop.xlane.xlu0 %3604
        %3606 = vadd.xlane.f32.xlu0 %v3588
        %v3607 = vpop.xlane.xlu0 %3606
        %3608 = vadd.xlane.f32.xlu0 %v3589
        %v3609 = vpop.xlane.xlu0 %3608
        %3610 = vadd.xlane.f32.xlu0 %v3590
        %v3611 = vpop.xlane.xlu0 %3610
        %3612 = vadd.xlane.f32.xlu0 %v3591
        %v3613 = vpop.xlane.xlu0 %3612
        %3614 = vadd.xlane.f32.xlu0 %v3592
        %v3615 = vpop.xlane.xlu0 %3614
        %3616 = vadd.xlane.f32.xlu0 %v3593
        %v3617 = vpop.xlane.xlu0 %3616
        %3618 = vadd.xlane.f32.xlu0 %v3594
        %v3619 = vpop.xlane.xlu0 %3618
        %3620 = vadd.xlane.f32.xlu0 %v3595
        %v3621 = vpop.xlane.xlu0 %3620
        %3622 = vadd.xlane.f32.xlu0 %v3596
        %v3623 = vpop.xlane.xlu0 %3622
        %3624 = vadd.xlane.f32.xlu0 %v3597
        %v3625 = vpop.xlane.xlu0 %3624
        %3626 = vadd.xlane.f32.xlu0 %v3598
        %v3627 = vpop.xlane.xlu0 %3626
        %3628 = vadd.xlane.f32.xlu0 %v3599
        %v3629 = vpop.xlane.xlu0 %3628
        %3630 = vadd.xlane.f32.xlu0 %v3600
        %v3631 = vpop.xlane.xlu0 %3630
        %3632 = vadd.xlane.f32.xlu0 %v3601
        %v3633 = vpop.xlane.xlu0 %3632
        %v3634 = vld [vmem:[#allocation2] sm:$0x1]
        %v3636 = vlaneseq
        %v3637 = vshrl.u32 %v3636, 7
        %v3638 = vsub.s32 0, %v3637
        %v3639 = vrot.slane %v3634, %v3638
        %v3641 = vadd.f32 %v3603, %v3639
        %v3642 = vadd.f32 %v3605, %v3639
        %v3643 = vadd.f32 %v3607, %v3639
        %v3644 = vadd.f32 %v3609, %v3639
        %v3645 = vadd.f32 %v3611, %v3639
        %v3646 = vadd.f32 %v3613, %v3639
        %v3647 = vadd.f32 %v3615, %v3639
        %v3648 = vadd.f32 %v3617, %v3639
        %v3649 = vadd.f32 %v3619, %v3639
        %v3650 = vadd.f32 %v3621, %v3639
        %v3651 = vadd.f32 %v3623, %v3639
        %v3652 = vadd.f32 %v3625, %v3639
        %v3653 = vadd.f32 %v3627, %v3639
        %v3654 = vadd.f32 %v3629, %v3639
        %v3655 = vadd.f32 %v3631, %v3639
        %v3656 = vadd.f32 %v3633, %v3639
        %vm3657 = vcmask 7168
        %3658 = vst.msk [vmem:[%s819] sm:$0xff] %vm3657, %v3641
        %3659 = vst.msk [vmem:[%s819 + $0x8] sm:$0xff] %vm3657, %v3642
        %3660 = vst.msk [vmem:[%s819 + $0x10] sm:$0xff] %vm3657, %v3643
        %3661 = vst.msk [vmem:[%s819 + $0x18] sm:$0xff] %vm3657, %v3644
        %3662 = vst.msk [vmem:[%s819 + $0x20] sm:$0xff] %vm3657, %v3645
        %3663 = vst.msk [vmem:[%s819 + $0x28] sm:$0xff] %vm3657, %v3646
        %3664 = vst.msk [vmem:[%s819 + $0x30] sm:$0xff] %vm3657, %v3647
        %3665 = vst.msk [vmem:[%s819 + $0x38] sm:$0xff] %vm3657, %v3648
        %3666 = vst.msk [vmem:[%s819 + $0x40] sm:$0xff] %vm3657, %v3649
        %3667 = vst.msk [vmem:[%s819 + $0x48] sm:$0xff] %vm3657, %v3650
        %3668 = vst.msk [vmem:[%s819 + $0x50] sm:$0xff] %vm3657, %v3651
        %3669 = vst.msk [vmem:[%s819 + $0x58] sm:$0xff] %vm3657, %v3652
        %3670 = vst.msk [vmem:[%s819 + $0x60] sm:$0xff] %vm3657, %v3653
        %3671 = vst.msk [vmem:[%s819 + $0x68] sm:$0xff] %vm3657, %v3654
        %3672 = vst.msk [vmem:[%s819 + $0x70] sm:$0xff] %vm3657, %v3655
        %3673 = vst.msk [vmem:[%s819 + $0x78] sm:$0xff] %vm3657, %v3656
        %s3674 = smul.u32 16, %s44
        %p3675 = scmp.lt.s32.totalorder %s3674, 31
        %s3676 = scalar_select %p3675, %s3674, 31
        %s3677 = smul.addr %s3676, 8
        %s3678 = scalar_lea.vmem %s21, %s3677
        %s3679 = sand.u32 %s534, 1
        %s3680 = scalar_lea.sflag [#allocation5], %s3679
        %s3681 = sand.u32 %s534, 1
        %s3682 = smul.addr %s3681, 128
        %s3683 = scalar_lea.vmem [#allocation12], %s3682
        // Predicated region
        $region125: #{tpu_custom_call.1} parent=103 // pred_check
          %p3684 = pneg %p518
        $region126: #{tpu_custom_call.1} parent=103 // pred_check_branch
          %3686 = sbr.rel (%p3684) target = $region128
        $region127: #{tpu_custom_call.1} parent=103 // pred_region
          %s3687 = smul.u32 16, %s44
        $region128: #{tpu_custom_call.1} parent=103 // pred_fallthru
          _
        // Predicated region
        $region129: #{tpu_custom_call.1} parent=103 // pred_check
          %p3688 = pneg %p544
        $region130: #{tpu_custom_call.1} parent=103 // pred_check_branch
          %3690 = sbr.rel (%p3688) target = $region132
        $region131: #{tpu_custom_call.1} parent=103 // pred_region
          %s3691 = smul.u32 16, %s44
          %s3693 = ssub.s32 2048, 2048
          %3694 = vsyncadd %s3680, %s3693
          %s3695 = smul.addr %s3691, 128
          %s3696 = scalar_lea.hbm %s22, %s3695
          %s3697 = sshll.u32 %s3683, 4
          %s3698 = int_to_ptr.vmem [resolvable:$true] %s3697
          %3703 = dma.vmem_to_hbm [thread:$0]  %s3698, 2048, %s3696, %s3680, 128, 128, 8
        $region132: #{tpu_custom_call.1} parent=103 // pred_fallthru
          _
      $region104: #{tpu_custom_call.1} parent=5 // pred_fallthru
        _
      %p3704 = scmp.le.s32.totalorder 2, %s39
      // Predicated region
      $region133: #{tpu_custom_call.1} parent=5 // pred_check
        %p3705 = pneg %p3704
      $region134: #{tpu_custom_call.1} parent=5 // pred_check_branch
        %3707 = sbr.rel (%p3705) target = $region136
      $region135: #{tpu_custom_call.1} parent=5 // pred_region
        %s3708 = ssub.s32 %s39, 2
        // Predicated region
        $region137: #{tpu_custom_call.1} parent=135 // pred_check
          %p3709 = pneg %p524
        $region138: #{tpu_custom_call.1} parent=135 // pred_check_branch
          %3711 = sbr.rel (%p3709) target = $region140
        $region139: #{tpu_custom_call.1} parent=135 // pred_region
          %s3712 = smul.u32 16, %s45
          %p3713 = scmp.lt.s32.totalorder %s3712, 31
          %s3714 = scalar_select %p3713, %s3712, 31
          %s3715 = smul.addr %s3714, 8
          %s3716 = scalar_lea.vmem %s21, %s3715
        $region140: #{tpu_custom_call.1} parent=135 // pred_fallthru
          _
        // Predicated region
        $region141: #{tpu_custom_call.1} parent=135 // pred_check
          %p3717 = pneg %p550
        $region142: #{tpu_custom_call.1} parent=135 // pred_check_branch
          %3719 = sbr.rel (%p3717) target = $region144
        $region143: #{tpu_custom_call.1} parent=135 // pred_region
          %s3720 = sand.u32 %s535, 1
          %s3721 = scalar_lea.sflag [#allocation5], %s3720
          %s3722 = sand.u32 %s535, 1
          %s3723 = smul.addr %s3722, 128
          %s3724 = scalar_lea.vmem [#allocation12], %s3723
          %3725 = dma.done %s3721, 2048
        $region144: #{tpu_custom_call.1} parent=135 // pred_fallthru
          _
      $region136: #{tpu_custom_call.1} parent=5 // pred_fallthru
        _
    $region6: #{tpu_custom_call.1} parent=1 // loop_footer
      %s43 = sadd.s32 1, %s39
    $region7: #{tpu_custom_call.1} parent=1 // loop_footer_branch
      %38 = sbr.rel target = $region3
    $region8: #{tpu_custom_call.1} parent=1 // loop_exit
      _
    %3726 = vsyncpa [#allocation4], 1
    %s3727 = scalar_lea.sflag [#allocation4], 1
    %3728 = vsyncpa %s3727, 1
    %3729 = vsyncpa [#allocation7], 1
    %3730 = vsyncpa [#allocation10], 1
    %3731 = vsyncpa [#allocation5], 1
    %s3732 = scalar_lea.sflag [#allocation5], 1
    %3733 = vsyncpa %s3732, 1

</llo_original>
